<compile_context>
chip_gen: v7x
topology: tpu7x:2x2x1
jax: 0.10.0
libtpu: 0.0.40
codegen_flags: <defaults>
</compile_context>

<pallas_src>
import functools

import jax
import jax.numpy as jnp
from jax.experimental import pallas as pl
from jax.experimental.pallas import tpu as pltpu

LANES = 128
SUBLANES = 8


def _round_up(n, m):
    return ((n + m - 1) // m) * m


def _sigmoid(z):
    # Exact logistic via tanh: lands on the EUP slot, avoids the VPU divide of
    # 1/(1+exp(-z)) on the fully serial per-timestep chain.
    return 0.5 * jnp.tanh(0.5 * z) + 0.5


def _lstm_kernel(x_ref, *refs, num_layers, hidden_pad, batch_pad, t_chunk):
    """One grid step = t_chunk timesteps through all stacked LSTM layers.

    x_ref : (t_chunk*Bp, Dp)  time-major, lane-dense input chunk (row = s*Bp+b)
    refs  : w_in0 (Dp,4Hp), w_hh0 (Hp,4Hp), b0 (1,4Hp),
            [W_l (2Hp,4Hp), b_l (1,4Hp)] for l = 1..L-1,
            w_fc (Hp,Op), b_fc (1,Op),
            out_ref (Bp,Op),
            xp_ref (t_chunk*Bp,4Hp), h_ref (L,Bp,Hp), c_ref (L,Bp,Hp)
    """
    nl, Hp, Bp = num_layers, hidden_pad, batch_pad
    nw = 2 * nl + 3                        # number of weight/bias operands
    w_in0_ref, w_hh0_ref, b0_ref = refs[0], refs[1], refs[2]
    deep_refs = refs[3:3 + 2 * (nl - 1)]   # (W_l, b_l) pairs for layers >= 1
    w_fc_ref, b_fc_ref = refs[nw - 2], refs[nw - 1]
    out_ref = refs[nw]
    xp_ref, h_ref, c_ref = refs[nw + 1], refs[nw + 2], refs[nw + 3]

    @pl.when(pl.program_id(0) == 0)
    def _init():
        h_ref[...] = jnp.zeros_like(h_ref)
        c_ref[...] = jnp.zeros_like(c_ref)

    # Hoisted layer-0 input projection (+ merged bias) for the whole chunk:
    # one well-occupied MXU matmul instead of t_chunk tiny serial ones.
    xp_ref[...] = (
        jnp.dot(x_ref[...], w_in0_ref[...], preferred_element_type=jnp.float32)
        + b0_ref[...])

    def cell(gates, c_prev):
        i_g = _sigmoid(gates[:, 0 * Hp:1 * Hp])
        f_g = _sigmoid(gates[:, 1 * Hp:2 * Hp])
        g_g = jnp.tanh(gates[:, 2 * Hp:3 * Hp])
        o_g = _sigmoid(gates[:, 3 * Hp:4 * Hp])
        c_new = f_g * c_prev + i_g * g_g
        h_new = o_g * jnp.tanh(c_new)
        return h_new, c_new

    for s in range(t_chunk):               # static, bounded unroll (<= 8)
        # ---- layer 0: only the recurrent matmul sits on the serial chain ---
        gates = (xp_ref[s * Bp:(s + 1) * Bp, :]
                 + jnp.dot(h_ref[0], w_hh0_ref[...],
                           preferred_element_type=jnp.float32))
        h_new, c_new = cell(gates, c_ref[0])
        h_ref[0] = h_new
        c_ref[0] = c_new
        inp = h_new

        # ---- layers 1..L-1: one fused [inp | h_prev] @ [W_ih; W_hh] --------
        for l in range(1, nl):
            w_ref = deep_refs[2 * (l - 1)]
            b_ref = deep_refs[2 * (l - 1) + 1]
            zin = jnp.concatenate([inp, h_ref[l]], axis=1)      # (Bp, 2Hp)
            gates = (jnp.dot(zin, w_ref[...],
                             preferred_element_type=jnp.float32)
                     + b_ref[...])
            h_new, c_new = cell(gates, c_ref[l])
            h_ref[l] = h_new
            c_ref[l] = c_new
            inp = h_new

    @pl.when(pl.program_id(0) == pl.num_programs(0) - 1)
    def _final():
        # FC on the last timestep's top-layer hidden state (pad lanes are 0).
        out_ref[...] = (
            jnp.dot(h_ref[nl - 1], w_fc_ref[...],
                    preferred_element_type=jnp.float32) + b_fc_ref[...])


# ----------------------------- host-side prep -------------------------------

def _pad_gate_cols(w_t, rows_pad, h, hp):
    """(rows, 4h) -> (rows_pad, 4hp): each gate in its own 128-lane band."""
    rows = w_t.shape[0]
    out = jnp.zeros((rows_pad, 4 * hp), jnp.float32)
    for g in range(4):
        out = out.at[:rows, g * hp:g * hp + h].set(w_t[:, g * h:(g + 1) * h])
    return out


def _pad_gate_bias(b, h, hp):
    out = jnp.zeros((1, 4 * hp), jnp.float32)
    for g in range(4):
        out = out.at[0, g * hp:g * hp + h].set(b[g * h:(g + 1) * h])
    return out


def prepare_lstm_params(layer_params, fc_params, input_dim):
    """One-time prep: transpose, merge biases, gate-band, fuse W_ih/W_hh."""
    H = layer_params[0][1].shape[1]
    Hp = _round_up(H, LANES)
    Dp = _round_up(input_dim, LANES)
    w_fc, b_fc = fc_params
    O = w_fc.shape[0]
    Op = _round_up(O, LANES)

    flat = []
    for l, (w_ih, w_hh, b_ih, b_hh) in enumerate(layer_params):
        w_ih_t = jnp.asarray(w_ih, jnp.float32).T            # (in_l, 4H)
        w_hh_t = jnp.asarray(w_hh, jnp.float32).T            # (H, 4H)
        b = jnp.asarray(b_ih, jnp.float32) + jnp.asarray(b_hh, jnp.float32)
        if l == 0:
            flat.append(_pad_gate_cols(w_ih_t, Dp, H, Hp))    # w_in0 (Dp,4Hp)
            flat.append(_pad_gate_cols(w_hh_t, Hp, H, Hp))    # w_hh0 (Hp,4Hp)
        else:
            w_ih_p = _pad_gate_cols(w_ih_t, Hp, H, Hp)
            w_hh_p = _pad_gate_cols(w_hh_t, Hp, H, Hp)
            flat.append(jnp.concatenate([w_ih_p, w_hh_p], 0))  # W_l (2Hp,4Hp)
        flat.append(_pad_gate_bias(b, H, Hp))                  # b_l (1,4Hp)

    w_fc_p = jnp.zeros((Hp, Op), jnp.float32).at[:H, :O].set(
        jnp.asarray(w_fc, jnp.float32).T)
    b_fc_p = jnp.zeros((1, Op), jnp.float32).at[0, :O].set(
        jnp.asarray(b_fc, jnp.float32))
    flat += [w_fc_p, b_fc_p]

    meta = dict(num_layers=len(layer_params), hidden_pad=Hp, in_dim=input_dim,
                in_pad=Dp, out_dim=O, out_pad=Op)
    return tuple(flat), meta


def make_lstm_forward(layer_params, fc_params, input_dim, *, t_chunk=None):
    """Builds a jitted forward(x); padded/fused weights are prepared once."""
    weights, meta = prepare_lstm_params(layer_params, fc_params, input_dim)
    nl = meta["num_layers"]
    Hp = meta["hidden_pad"]
    Dp = meta["in_pad"]
    O = meta["out_dim"]
    Op = meta["out_pad"]

    @jax.jit
    def forward(x):
        x = x.astype(jnp.float32)
        B, T, D_in = x.shape
        assert D_in == meta["in_dim"]
        Bp = _round_up(B, SUBLANES)
        tc = t_chunk
        if tc is None:
            # biggest divisor of T that is <= 8: amortizes per-grid-step
            # pipeline overhead while keeping the unrolled body bounded.
            tc = max(c for c in range(1, min(T, 8) + 1) if T % c == 0)
        assert T % tc == 0
        n_chunks = T // tc

        # Lane/sublane-dense time-major slab: row = t*Bp + b, D_in padded to
        # 128 lanes (pad rows/lanes are zero; pad-lane weights are zero too).
        x_tm = jnp.transpose(x, (1, 0, 2))                     # (T, B, D_in)
        x_slab = jnp.zeros((T, Bp, Dp), jnp.float32).at[:, :B, :D_in].set(
            x_tm).reshape(T * Bp, Dp)

        in_specs = [pl.BlockSpec((tc * Bp, Dp), lambda i: (i, 0))]
        # Full-array blocks + constant index maps: weights DMA'd once and kept
        # VMEM-resident across the whole grid.
        in_specs += [pl.BlockSpec(w.shape, lambda i: (0, 0)) for w in weights]

        kern = functools.partial(_lstm_kernel, num_layers=nl, hidden_pad=Hp,
                                 batch_pad=Bp, t_chunk=tc)
        out = pl.pallas_call(
            kern,
            out_shape=jax.ShapeDtypeStruct((Bp, Op), jnp.float32),
            grid_spec=pltpu.PrefetchScalarGridSpec(
                num_scalar_prefetch=0,
                grid=(n_chunks,),
                in_specs=in_specs,
                out_specs=pl.BlockSpec((Bp, Op), lambda i: (0, 0)),
                scratch_shapes=[
                    pltpu.VMEM((tc * Bp, 4 * Hp), jnp.float32),  # x projection
                    pltpu.VMEM((nl, Bp, Hp), jnp.float32),       # h state
                    pltpu.VMEM((nl, Bp, Hp), jnp.float32),       # c state
                ]),
            compiler_params=pltpu.CompilerParams(
                dimension_semantics=("arbitrary",),  # time recurrence: serial
                vmem_limit_bytes=32 * 1024 * 1024),
        )(x_slab, *weights)
        return out[:B, :O]

    return forward


def lstm_model_ref(x, layer_params, fc_params):
    """Pure-JAX reference mirroring PyTorch nn.LSTM(batch_first) + nn.Linear."""
    x = x.astype(jnp.float32)
    B, T, _ = x.shape
    H = layer_params[0][1].shape[1]
    L = len(layer_params)
    hs = [jnp.zeros((B, H), jnp.float32) for _ in range(L)]
    cs = [jnp.zeros((B, H), jnp.float32) for _ in range(L)]
    for t in range(T):
        inp = x[:, t, :]
        for l, (w_ih, w_hh, b_ih, b_hh) in enumerate(layer_params):
            gates = inp @ w_ih.T + hs[l] @ w_hh.T + b_ih + b_hh
            i = jax.nn.sigmoid(gates[:, 0 * H:1 * H])
            f = jax.nn.sigmoid(gates[:, 1 * H:2 * H])
            g = jnp.tanh(gates[:, 2 * H:3 * H])
            o = jax.nn.sigmoid(gates[:, 3 * H:4 * H])
            cs[l] = f * cs[l] + i * g
            hs[l] = o * jnp.tanh(cs[l])
            inp = hs[l]
    w_fc, b_fc = fc_params
    return hs[-1] @ w_fc.T + b_fc


if __name__ == "__main__":
    # Small shapes consistent with the module: batch=2, seq=8, input_dim=16,
    # hidden_dim=32, output_dim=4, num_layers=3.
    B, T, D_IN, HID, OUT, NL = 2, 8, 16, 32, 4, 3
    key = jax.random.PRNGKey(0)
    keys = jax.random.split(key, 1 + 4 * NL + 2)

    x = jax.random.normal(keys[0], (B, T, D_IN), dtype=jnp.float32)

    scale = 1.0 / (HID ** 0.5)   # ~ PyTorch default U(-1/sqrt(H), 1/sqrt(H))
    layer_params = []
    kk = 1
    for l in range(NL):
        in_l = D_IN if l == 0 else HID
        w_ih = scale * jax.random.normal(keys[kk], (4 * HID, in_l), jnp.float32); kk += 1
        w_hh = scale * jax.random.normal(keys[kk], (4 * HID, HID), jnp.float32); kk += 1
        b_ih = scale * jax.random.normal(keys[kk], (4 * HID,), jnp.float32); kk += 1
        b_hh = scale * jax.random.normal(keys[kk], (4 * HID,), jnp.float32); kk += 1
        layer_params.append((w_ih, w_hh, b_ih, b_hh))
    w_fc = scale * jax.random.normal(keys[kk], (OUT, HID), jnp.float32); kk += 1
    b_fc = scale * jax.random.normal(keys[kk], (OUT,), jnp.float32); kk += 1
    fc_params = (w_fc, b_fc)

    # t_chunk=4 -> grid=(2,), exercising the VMEM-carried (h, c) state across
    # grid steps as well as the chunked, hoisted layer-0 projection.
    forward = make_lstm_forward(layer_params, fc_params, D_IN, t_chunk=4)
    out = jax.block_until_ready(forward(x))

    ref = lstm_model_ref(x, layer_params, fc_params)
    assert out.shape == (B, OUT), (out.shape, (B, OUT))
    assert jnp.allclose(out, ref, rtol=1e-3, atol=1e-4), (out, ref)

    print("KERNEL_OK")
</pallas_src>

<mosaic_0001>
module attributes {stable_mosaic.version = 11 : i64} {
  func.func @_lstm_kernel(%arg0: i32, %arg1: memref<32x128xf32, #tpu.memory_space<vmem>>, %arg2: memref<128x512xf32, #tpu.memory_space<vmem>>, %arg3: memref<128x512xf32, #tpu.memory_space<vmem>>, %arg4: memref<1x512xf32, #tpu.memory_space<vmem>>, %arg5: memref<256x512xf32, #tpu.memory_space<vmem>>, %arg6: memref<1x512xf32, #tpu.memory_space<vmem>>, %arg7: memref<256x512xf32, #tpu.memory_space<vmem>>, %arg8: memref<1x512xf32, #tpu.memory_space<vmem>>, %arg9: memref<128x128xf32, #tpu.memory_space<vmem>>, %arg10: memref<1x128xf32, #tpu.memory_space<vmem>>, %arg11: memref<8x128xf32, #tpu.memory_space<vmem>>, %arg12: memref<32x512xf32, #tpu.memory_space<vmem>>, %arg13: memref<3x8x128xf32, #tpu.memory_space<vmem>>, %arg14: memref<3x8x128xf32, #tpu.memory_space<vmem>>) attributes {dimension_semantics = [#tpu.dimension_semantics<arbitrary>], iteration_bounds = array<i64: 2>, scalar_prefetch = 0 : i64, scratch_operands = 3 : i64, tpu.core_type = #tpu.core_type<tc>, window_params = [{transform_indices = @transform_0, window_bounds = array<i64: 32, 128>}, {pipeline_mode = #tpu.pipeline_mode<synchronous>, transform_indices = @transform_1, window_bounds = array<i64: 128, 512>}, {pipeline_mode = #tpu.pipeline_mode<synchronous>, transform_indices = @transform_2, window_bounds = array<i64: 128, 512>}, {pipeline_mode = #tpu.pipeline_mode<synchronous>, transform_indices = @transform_3, window_bounds = array<i64: 1, 512>}, {pipeline_mode = #tpu.pipeline_mode<synchronous>, transform_indices = @transform_4, window_bounds = array<i64: 256, 512>}, {pipeline_mode = #tpu.pipeline_mode<synchronous>, transform_indices = @transform_5, window_bounds = array<i64: 1, 512>}, {pipeline_mode = #tpu.pipeline_mode<synchronous>, transform_indices = @transform_6, window_bounds = array<i64: 256, 512>}, {pipeline_mode = #tpu.pipeline_mode<synchronous>, transform_indices = @transform_7, window_bounds = array<i64: 1, 512>}, {pipeline_mode = #tpu.pipeline_mode<synchronous>, transform_indices = @transform_8, window_bounds = array<i64: 128, 128>}, {pipeline_mode = #tpu.pipeline_mode<synchronous>, transform_indices = @transform_9, window_bounds = array<i64: 1, 128>}, {pipeline_mode = #tpu.pipeline_mode<synchronous>, transform_indices = @transform_10, window_bounds = array<i64: 8, 128>}]} {
    %c0_i32 = arith.constant 0 : i32
    %0 = arith.cmpi eq, %arg0, %c0_i32 : i32
    %1 = arith.extui %0 : i1 to i32
    %c0_i32_0 = arith.constant 0 : i32
    %2 = arith.cmpi ne, %1, %c0_i32_0 : i32
    scf.if %2 {
      %cst_316 = arith.constant 0.000000e+00 : f32
      %569 = vector.broadcast %cst_316 : f32 to vector<3x8x128xf32>
      %c0_317 = arith.constant 0 : index
      %c0_318 = arith.constant 0 : index
      %c0_319 = arith.constant 0 : index
      %570 = vector.load %arg13[%c0_317, %c0_318, %c0_319] : memref<3x8x128xf32, #tpu.memory_space<vmem>>, vector<3x8x128xf32>
      tpu.vector_store %arg13[%c0_317, %c0_318, %c0_319], %569 {strides = array<i32>} : memref<3x8x128xf32, #tpu.memory_space<vmem>>, vector<3x8x128xf32>,
      %cst_320 = arith.constant 0.000000e+00 : f32
      %571 = vector.broadcast %cst_320 : f32 to vector<3x8x128xf32>
      %c0_321 = arith.constant 0 : index
      %c0_322 = arith.constant 0 : index
      %c0_323 = arith.constant 0 : index
      %572 = vector.load %arg14[%c0_321, %c0_322, %c0_323] : memref<3x8x128xf32, #tpu.memory_space<vmem>>, vector<3x8x128xf32>
      tpu.vector_store %arg14[%c0_321, %c0_322, %c0_323], %571 {strides = array<i32>} : memref<3x8x128xf32, #tpu.memory_space<vmem>>, vector<3x8x128xf32>,
    } else {
    }
    %c0 = arith.constant 0 : index
    %c0_1 = arith.constant 0 : index
    %3 = vector.load %arg1[%c0, %c0_1] : memref<32x128xf32, #tpu.memory_space<vmem>>, vector<32x128xf32>
    %c0_2 = arith.constant 0 : index
    %c0_3 = arith.constant 0 : index
    %4 = vector.load %arg2[%c0_2, %c0_3] : memref<128x512xf32, #tpu.memory_space<vmem>>, vector<128x512xf32>
    %cst = arith.constant dense<0.000000e+00> : vector<32x512xf32>
    %5 = tpu.matmul %3, %4, %cst {dimension_numbers = #tpu.dot_dimension_numbers<[1], [0], [0], [1], [0, 0, 1, 1], [], []>} : vector<32x128xf32>, vector<128x512xf32>, vector<32x512xf32> -> vector<32x512xf32>
    %c0_4 = arith.constant 0 : index
    %c0_5 = arith.constant 0 : index
    %6 = vector.load %arg4[%c0_4, %c0_5] : memref<1x512xf32, #tpu.memory_space<vmem>>, vector<1x512xf32>
    %7 = vector.broadcast %6 : vector<1x512xf32> to vector<32x512xf32>
    %8 = arith.addf %5, %7 : vector<32x512xf32>
    %c0_6 = arith.constant 0 : index
    %c0_7 = arith.constant 0 : index
    %9 = vector.load %arg12[%c0_6, %c0_7] : memref<32x512xf32, #tpu.memory_space<vmem>>, vector<32x512xf32>
    tpu.vector_store %arg12[%c0_6, %c0_7], %8 {strides = array<i32>} : memref<32x512xf32, #tpu.memory_space<vmem>>, vector<32x512xf32>,
    %c0_8 = arith.constant 0 : index
    %c0_9 = arith.constant 0 : index
    %10 = vector.load %arg12[%c0_8, %c0_9] : memref<32x512xf32, #tpu.memory_space<vmem>>, vector<8x512xf32>
    %c0_10 = arith.constant 0 : index
    %c0_11 = arith.constant 0 : index
    %c0_12 = arith.constant 0 : index
    %11 = vector.load %arg13[%c0_10, %c0_11, %c0_12] : memref<3x8x128xf32, #tpu.memory_space<vmem>>, vector<1x8x128xf32>
    %12 = vector.shape_cast %11 : vector<1x8x128xf32> to vector<8x128xf32>
    %c0_13 = arith.constant 0 : index
    %c0_14 = arith.constant 0 : index
    %13 = vector.load %arg3[%c0_13, %c0_14] : memref<128x512xf32, #tpu.memory_space<vmem>>, vector<128x512xf32>
    %cst_15 = arith.constant dense<0.000000e+00> : vector<8x512xf32>
    %14 = tpu.matmul %12, %13, %cst_15 {dimension_numbers = #tpu.dot_dimension_numbers<[1], [0], [0], [1], [0, 0, 1, 1], [], []>} : vector<8x128xf32>, vector<128x512xf32>, vector<8x512xf32> -> vector<8x512xf32>
    %15 = arith.addf %10, %14 : vector<8x512xf32>
    %c0_16 = arith.constant 0 : index
    %c0_17 = arith.constant 0 : index
    %c0_18 = arith.constant 0 : index
    %16 = vector.load %arg14[%c0_16, %c0_17, %c0_18] : memref<3x8x128xf32, #tpu.memory_space<vmem>>, vector<1x8x128xf32>
    %17 = vector.shape_cast %16 : vector<1x8x128xf32> to vector<8x128xf32>
    %18 = vector.extract_strided_slice %15 {offsets = [0, 0], sizes = [8, 128], strides = [1, 1]} : vector<8x512xf32> to vector<8x128xf32>
    %cst_19 = arith.constant 5.000000e-01 : f32
    %19 = vector.broadcast %cst_19 : f32 to vector<8x128xf32>
    %20 = arith.mulf %19, %18 : vector<8x128xf32>
    %21 = math.tanh %20 : vector<8x128xf32>
    %cst_20 = arith.constant 5.000000e-01 : f32
    %22 = vector.broadcast %cst_20 : f32 to vector<8x128xf32>
    %23 = arith.mulf %22, %21 : vector<8x128xf32>
    %cst_21 = arith.constant 5.000000e-01 : f32
    %24 = vector.broadcast %cst_21 : f32 to vector<8x128xf32>
    %25 = arith.addf %23, %24 : vector<8x128xf32>
    %26 = vector.extract_strided_slice %15 {offsets = [0, 128], sizes = [8, 128], strides = [1, 1]} : vector<8x512xf32> to vector<8x128xf32>
    %cst_22 = arith.constant 5.000000e-01 : f32
    %27 = vector.broadcast %cst_22 : f32 to vector<8x128xf32>
    %28 = arith.mulf %27, %26 : vector<8x128xf32>
    %29 = math.tanh %28 : vector<8x128xf32>
    %cst_23 = arith.constant 5.000000e-01 : f32
    %30 = vector.broadcast %cst_23 : f32 to vector<8x128xf32>
    %31 = arith.mulf %30, %29 : vector<8x128xf32>
    %cst_24 = arith.constant 5.000000e-01 : f32
    %32 = vector.broadcast %cst_24 : f32 to vector<8x128xf32>
    %33 = arith.addf %31, %32 : vector<8x128xf32>
    %34 = vector.extract_strided_slice %15 {offsets = [0, 256], sizes = [8, 128], strides = [1, 1]} : vector<8x512xf32> to vector<8x128xf32>
    %35 = math.tanh %34 : vector<8x128xf32>
    %36 = vector.extract_strided_slice %15 {offsets = [0, 384], sizes = [8, 128], strides = [1, 1]} : vector<8x512xf32> to vector<8x128xf32>
    %cst_25 = arith.constant 5.000000e-01 : f32
    %37 = vector.broadcast %cst_25 : f32 to vector<8x128xf32>
    %38 = arith.mulf %37, %36 : vector<8x128xf32>
    %39 = math.tanh %38 : vector<8x128xf32>
    %cst_26 = arith.constant 5.000000e-01 : f32
    %40 = vector.broadcast %cst_26 : f32 to vector<8x128xf32>
    %41 = arith.mulf %40, %39 : vector<8x128xf32>
    %cst_27 = arith.constant 5.000000e-01 : f32
    %42 = vector.broadcast %cst_27 : f32 to vector<8x128xf32>
    %43 = arith.addf %41, %42 : vector<8x128xf32>
    %44 = arith.mulf %33, %17 : vector<8x128xf32>
    %45 = arith.mulf %25, %35 : vector<8x128xf32>
    %46 = arith.addf %44, %45 : vector<8x128xf32>
    %47 = math.tanh %46 : vector<8x128xf32>
    %48 = arith.mulf %43, %47 : vector<8x128xf32>
    %c0_28 = arith.constant 0 : index
    %c0_29 = arith.constant 0 : index
    %c0_30 = arith.constant 0 : index
    %49 = vector.load %arg13[%c0_28, %c0_29, %c0_30] : memref<3x8x128xf32, #tpu.memory_space<vmem>>, vector<1x8x128xf32>
    %50 = vector.shape_cast %49 : vector<1x8x128xf32> to vector<8x128xf32>
    %51 = vector.shape_cast %48 : vector<8x128xf32> to vector<1x8x128xf32>
    tpu.vector_store %arg13[%c0_28, %c0_29, %c0_30], %51 {strides = array<i32>} : memref<3x8x128xf32, #tpu.memory_space<vmem>>, vector<1x8x128xf32>,
    %c0_31 = arith.constant 0 : index
    %c0_32 = arith.constant 0 : index
    %c0_33 = arith.constant 0 : index
    %52 = vector.load %arg14[%c0_31, %c0_32, %c0_33] : memref<3x8x128xf32, #tpu.memory_space<vmem>>, vector<1x8x128xf32>
    %53 = vector.shape_cast %52 : vector<1x8x128xf32> to vector<8x128xf32>
    %54 = vector.shape_cast %46 : vector<8x128xf32> to vector<1x8x128xf32>
    tpu.vector_store %arg14[%c0_31, %c0_32, %c0_33], %54 {strides = array<i32>} : memref<3x8x128xf32, #tpu.memory_space<vmem>>, vector<1x8x128xf32>,
    %c1 = arith.constant 1 : index
    %c0_34 = arith.constant 0 : index
    %c0_35 = arith.constant 0 : index
    %55 = vector.load %arg13[%c1, %c0_34, %c0_35] : memref<3x8x128xf32, #tpu.memory_space<vmem>>, vector<1x8x128xf32>
    %56 = vector.shape_cast %55 : vector<1x8x128xf32> to vector<8x128xf32>
    %57 = tpu.concatenate %48, %56 in 1 : vector<8x128xf32>, vector<8x128xf32> -> vector<8x256xf32>
    %c0_36 = arith.constant 0 : index
    %c0_37 = arith.constant 0 : index
    %58 = vector.load %arg5[%c0_36, %c0_37] : memref<256x512xf32, #tpu.memory_space<vmem>>, vector<256x512xf32>
    %cst_38 = arith.constant dense<0.000000e+00> : vector<8x512xf32>
    %59 = tpu.matmul %57, %58, %cst_38 {dimension_numbers = #tpu.dot_dimension_numbers<[1], [0], [0], [1], [0, 0, 1, 1], [], []>} : vector<8x256xf32>, vector<256x512xf32>, vector<8x512xf32> -> vector<8x512xf32>
    %c0_39 = arith.constant 0 : index
    %c0_40 = arith.constant 0 : index
    %60 = vector.load %arg6[%c0_39, %c0_40] : memref<1x512xf32, #tpu.memory_space<vmem>>, vector<1x512xf32>
    %61 = vector.broadcast %60 : vector<1x512xf32> to vector<8x512xf32>
    %62 = arith.addf %59, %61 : vector<8x512xf32>
    %c1_41 = arith.constant 1 : index
    %c0_42 = arith.constant 0 : index
    %c0_43 = arith.constant 0 : index
    %63 = vector.load %arg14[%c1_41, %c0_42, %c0_43] : memref<3x8x128xf32, #tpu.memory_space<vmem>>, vector<1x8x128xf32>
    %64 = vector.shape_cast %63 : vector<1x8x128xf32> to vector<8x128xf32>
    %65 = vector.extract_strided_slice %62 {offsets = [0, 0], sizes = [8, 128], strides = [1, 1]} : vector<8x512xf32> to vector<8x128xf32>
    %cst_44 = arith.constant 5.000000e-01 : f32
    %66 = vector.broadcast %cst_44 : f32 to vector<8x128xf32>
    %67 = arith.mulf %66, %65 : vector<8x128xf32>
    %68 = math.tanh %67 : vector<8x128xf32>
    %cst_45 = arith.constant 5.000000e-01 : f32
    %69 = vector.broadcast %cst_45 : f32 to vector<8x128xf32>
    %70 = arith.mulf %69, %68 : vector<8x128xf32>
    %cst_46 = arith.constant 5.000000e-01 : f32
    %71 = vector.broadcast %cst_46 : f32 to vector<8x128xf32>
    %72 = arith.addf %70, %71 : vector<8x128xf32>
    %73 = vector.extract_strided_slice %62 {offsets = [0, 128], sizes = [8, 128], strides = [1, 1]} : vector<8x512xf32> to vector<8x128xf32>
    %cst_47 = arith.constant 5.000000e-01 : f32
    %74 = vector.broadcast %cst_47 : f32 to vector<8x128xf32>
    %75 = arith.mulf %74, %73 : vector<8x128xf32>
    %76 = math.tanh %75 : vector<8x128xf32>
    %cst_48 = arith.constant 5.000000e-01 : f32
    %77 = vector.broadcast %cst_48 : f32 to vector<8x128xf32>
    %78 = arith.mulf %77, %76 : vector<8x128xf32>
    %cst_49 = arith.constant 5.000000e-01 : f32
    %79 = vector.broadcast %cst_49 : f32 to vector<8x128xf32>
    %80 = arith.addf %78, %79 : vector<8x128xf32>
    %81 = vector.extract_strided_slice %62 {offsets = [0, 256], sizes = [8, 128], strides = [1, 1]} : vector<8x512xf32> to vector<8x128xf32>
    %82 = math.tanh %81 : vector<8x128xf32>
    %83 = vector.extract_strided_slice %62 {offsets = [0, 384], sizes = [8, 128], strides = [1, 1]} : vector<8x512xf32> to vector<8x128xf32>
    %cst_50 = arith.constant 5.000000e-01 : f32
    %84 = vector.broadcast %cst_50 : f32 to vector<8x128xf32>
    %85 = arith.mulf %84, %83 : vector<8x128xf32>
    %86 = math.tanh %85 : vector<8x128xf32>
    %cst_51 = arith.constant 5.000000e-01 : f32
    %87 = vector.broadcast %cst_51 : f32 to vector<8x128xf32>
    %88 = arith.mulf %87, %86 : vector<8x128xf32>
    %cst_52 = arith.constant 5.000000e-01 : f32
    %89 = vector.broadcast %cst_52 : f32 to vector<8x128xf32>
    %90 = arith.addf %88, %89 : vector<8x128xf32>
    %91 = arith.mulf %80, %64 : vector<8x128xf32>
    %92 = arith.mulf %72, %82 : vector<8x128xf32>
    %93 = arith.addf %91, %92 : vector<8x128xf32>
    %94 = math.tanh %93 : vector<8x128xf32>
    %95 = arith.mulf %90, %94 : vector<8x128xf32>
    %c1_53 = arith.constant 1 : index
    %c0_54 = arith.constant 0 : index
    %c0_55 = arith.constant 0 : index
    %96 = vector.load %arg13[%c1_53, %c0_54, %c0_55] : memref<3x8x128xf32, #tpu.memory_space<vmem>>, vector<1x8x128xf32>
    %97 = vector.shape_cast %96 : vector<1x8x128xf32> to vector<8x128xf32>
    %98 = vector.shape_cast %95 : vector<8x128xf32> to vector<1x8x128xf32>
    tpu.vector_store %arg13[%c1_53, %c0_54, %c0_55], %98 {strides = array<i32>} : memref<3x8x128xf32, #tpu.memory_space<vmem>>, vector<1x8x128xf32>,
    %c1_56 = arith.constant 1 : index
    %c0_57 = arith.constant 0 : index
    %c0_58 = arith.constant 0 : index
    %99 = vector.load %arg14[%c1_56, %c0_57, %c0_58] : memref<3x8x128xf32, #tpu.memory_space<vmem>>, vector<1x8x128xf32>
    %100 = vector.shape_cast %99 : vector<1x8x128xf32> to vector<8x128xf32>
    %101 = vector.shape_cast %93 : vector<8x128xf32> to vector<1x8x128xf32>
    tpu.vector_store %arg14[%c1_56, %c0_57, %c0_58], %101 {strides = array<i32>} : memref<3x8x128xf32, #tpu.memory_space<vmem>>, vector<1x8x128xf32>,
    %c2 = arith.constant 2 : index
    %c0_59 = arith.constant 0 : index
    %c0_60 = arith.constant 0 : index
    %102 = vector.load %arg13[%c2, %c0_59, %c0_60] : memref<3x8x128xf32, #tpu.memory_space<vmem>>, vector<1x8x128xf32>
    %103 = vector.shape_cast %102 : vector<1x8x128xf32> to vector<8x128xf32>
    %104 = tpu.concatenate %95, %103 in 1 : vector<8x128xf32>, vector<8x128xf32> -> vector<8x256xf32>
    %c0_61 = arith.constant 0 : index
    %c0_62 = arith.constant 0 : index
    %105 = vector.load %arg7[%c0_61, %c0_62] : memref<256x512xf32, #tpu.memory_space<vmem>>, vector<256x512xf32>
    %cst_63 = arith.constant dense<0.000000e+00> : vector<8x512xf32>
    %106 = tpu.matmul %104, %105, %cst_63 {dimension_numbers = #tpu.dot_dimension_numbers<[1], [0], [0], [1], [0, 0, 1, 1], [], []>} : vector<8x256xf32>, vector<256x512xf32>, vector<8x512xf32> -> vector<8x512xf32>
    %c0_64 = arith.constant 0 : index
    %c0_65 = arith.constant 0 : index
    %107 = vector.load %arg8[%c0_64, %c0_65] : memref<1x512xf32, #tpu.memory_space<vmem>>, vector<1x512xf32>
    %108 = vector.broadcast %107 : vector<1x512xf32> to vector<8x512xf32>
    %109 = arith.addf %106, %108 : vector<8x512xf32>
    %c2_66 = arith.constant 2 : index
    %c0_67 = arith.constant 0 : index
    %c0_68 = arith.constant 0 : index
    %110 = vector.load %arg14[%c2_66, %c0_67, %c0_68] : memref<3x8x128xf32, #tpu.memory_space<vmem>>, vector<1x8x128xf32>
    %111 = vector.shape_cast %110 : vector<1x8x128xf32> to vector<8x128xf32>
    %112 = vector.extract_strided_slice %109 {offsets = [0, 0], sizes = [8, 128], strides = [1, 1]} : vector<8x512xf32> to vector<8x128xf32>
    %cst_69 = arith.constant 5.000000e-01 : f32
    %113 = vector.broadcast %cst_69 : f32 to vector<8x128xf32>
    %114 = arith.mulf %113, %112 : vector<8x128xf32>
    %115 = math.tanh %114 : vector<8x128xf32>
    %cst_70 = arith.constant 5.000000e-01 : f32
    %116 = vector.broadcast %cst_70 : f32 to vector<8x128xf32>
    %117 = arith.mulf %116, %115 : vector<8x128xf32>
    %cst_71 = arith.constant 5.000000e-01 : f32
    %118 = vector.broadcast %cst_71 : f32 to vector<8x128xf32>
    %119 = arith.addf %117, %118 : vector<8x128xf32>
    %120 = vector.extract_strided_slice %109 {offsets = [0, 128], sizes = [8, 128], strides = [1, 1]} : vector<8x512xf32> to vector<8x128xf32>
    %cst_72 = arith.constant 5.000000e-01 : f32
    %121 = vector.broadcast %cst_72 : f32 to vector<8x128xf32>
    %122 = arith.mulf %121, %120 : vector<8x128xf32>
    %123 = math.tanh %122 : vector<8x128xf32>
    %cst_73 = arith.constant 5.000000e-01 : f32
    %124 = vector.broadcast %cst_73 : f32 to vector<8x128xf32>
    %125 = arith.mulf %124, %123 : vector<8x128xf32>
    %cst_74 = arith.constant 5.000000e-01 : f32
    %126 = vector.broadcast %cst_74 : f32 to vector<8x128xf32>
    %127 = arith.addf %125, %126 : vector<8x128xf32>
    %128 = vector.extract_strided_slice %109 {offsets = [0, 256], sizes = [8, 128], strides = [1, 1]} : vector<8x512xf32> to vector<8x128xf32>
    %129 = math.tanh %128 : vector<8x128xf32>
    %130 = vector.extract_strided_slice %109 {offsets = [0, 384], sizes = [8, 128], strides = [1, 1]} : vector<8x512xf32> to vector<8x128xf32>
    %cst_75 = arith.constant 5.000000e-01 : f32
    %131 = vector.broadcast %cst_75 : f32 to vector<8x128xf32>
    %132 = arith.mulf %131, %130 : vector<8x128xf32>
    %133 = math.tanh %132 : vector<8x128xf32>
    %cst_76 = arith.constant 5.000000e-01 : f32
    %134 = vector.broadcast %cst_76 : f32 to vector<8x128xf32>
    %135 = arith.mulf %134, %133 : vector<8x128xf32>
    %cst_77 = arith.constant 5.000000e-01 : f32
    %136 = vector.broadcast %cst_77 : f32 to vector<8x128xf32>
    %137 = arith.addf %135, %136 : vector<8x128xf32>
    %138 = arith.mulf %127, %111 : vector<8x128xf32>
    %139 = arith.mulf %119, %129 : vector<8x128xf32>
    %140 = arith.addf %138, %139 : vector<8x128xf32>
    %141 = math.tanh %140 : vector<8x128xf32>
    %142 = arith.mulf %137, %141 : vector<8x128xf32>
    %c2_78 = arith.constant 2 : index
    %c0_79 = arith.constant 0 : index
    %c0_80 = arith.constant 0 : index
    %143 = vector.load %arg13[%c2_78, %c0_79, %c0_80] : memref<3x8x128xf32, #tpu.memory_space<vmem>>, vector<1x8x128xf32>
    %144 = vector.shape_cast %143 : vector<1x8x128xf32> to vector<8x128xf32>
    %145 = vector.shape_cast %142 : vector<8x128xf32> to vector<1x8x128xf32>
    tpu.vector_store %arg13[%c2_78, %c0_79, %c0_80], %145 {strides = array<i32>} : memref<3x8x128xf32, #tpu.memory_space<vmem>>, vector<1x8x128xf32>,
    %c2_81 = arith.constant 2 : index
    %c0_82 = arith.constant 0 : index
    %c0_83 = arith.constant 0 : index
    %146 = vector.load %arg14[%c2_81, %c0_82, %c0_83] : memref<3x8x128xf32, #tpu.memory_space<vmem>>, vector<1x8x128xf32>
    %147 = vector.shape_cast %146 : vector<1x8x128xf32> to vector<8x128xf32>
    %148 = vector.shape_cast %140 : vector<8x128xf32> to vector<1x8x128xf32>
    tpu.vector_store %arg14[%c2_81, %c0_82, %c0_83], %148 {strides = array<i32>} : memref<3x8x128xf32, #tpu.memory_space<vmem>>, vector<1x8x128xf32>,
    %c8 = arith.constant 8 : index
    %c0_84 = arith.constant 0 : index
    %149 = vector.load %arg12[%c8, %c0_84] : memref<32x512xf32, #tpu.memory_space<vmem>>, vector<8x512xf32>
    %c0_85 = arith.constant 0 : index
    %c0_86 = arith.constant 0 : index
    %c0_87 = arith.constant 0 : index
    %150 = vector.load %arg13[%c0_85, %c0_86, %c0_87] : memref<3x8x128xf32, #tpu.memory_space<vmem>>, vector<1x8x128xf32>
    %151 = vector.shape_cast %150 : vector<1x8x128xf32> to vector<8x128xf32>
    %c0_88 = arith.constant 0 : index
    %c0_89 = arith.constant 0 : index
    %152 = vector.load %arg3[%c0_88, %c0_89] : memref<128x512xf32, #tpu.memory_space<vmem>>, vector<128x512xf32>
    %cst_90 = arith.constant dense<0.000000e+00> : vector<8x512xf32>
    %153 = tpu.matmul %151, %152, %cst_90 {dimension_numbers = #tpu.dot_dimension_numbers<[1], [0], [0], [1], [0, 0, 1, 1], [], []>} : vector<8x128xf32>, vector<128x512xf32>, vector<8x512xf32> -> vector<8x512xf32>
    %154 = arith.addf %149, %153 : vector<8x512xf32>
    %c0_91 = arith.constant 0 : index
    %c0_92 = arith.constant 0 : index
    %c0_93 = arith.constant 0 : index
    %155 = vector.load %arg14[%c0_91, %c0_92, %c0_93] : memref<3x8x128xf32, #tpu.memory_space<vmem>>, vector<1x8x128xf32>
    %156 = vector.shape_cast %155 : vector<1x8x128xf32> to vector<8x128xf32>
    %157 = vector.extract_strided_slice %154 {offsets = [0, 0], sizes = [8, 128], strides = [1, 1]} : vector<8x512xf32> to vector<8x128xf32>
    %cst_94 = arith.constant 5.000000e-01 : f32
    %158 = vector.broadcast %cst_94 : f32 to vector<8x128xf32>
    %159 = arith.mulf %158, %157 : vector<8x128xf32>
    %160 = math.tanh %159 : vector<8x128xf32>
    %cst_95 = arith.constant 5.000000e-01 : f32
    %161 = vector.broadcast %cst_95 : f32 to vector<8x128xf32>
    %162 = arith.mulf %161, %160 : vector<8x128xf32>
    %cst_96 = arith.constant 5.000000e-01 : f32
    %163 = vector.broadcast %cst_96 : f32 to vector<8x128xf32>
    %164 = arith.addf %162, %163 : vector<8x128xf32>
    %165 = vector.extract_strided_slice %154 {offsets = [0, 128], sizes = [8, 128], strides = [1, 1]} : vector<8x512xf32> to vector<8x128xf32>
    %cst_97 = arith.constant 5.000000e-01 : f32
    %166 = vector.broadcast %cst_97 : f32 to vector<8x128xf32>
    %167 = arith.mulf %166, %165 : vector<8x128xf32>
    %168 = math.tanh %167 : vector<8x128xf32>
    %cst_98 = arith.constant 5.000000e-01 : f32
    %169 = vector.broadcast %cst_98 : f32 to vector<8x128xf32>
    %170 = arith.mulf %169, %168 : vector<8x128xf32>
    %cst_99 = arith.constant 5.000000e-01 : f32
    %171 = vector.broadcast %cst_99 : f32 to vector<8x128xf32>
    %172 = arith.addf %170, %171 : vector<8x128xf32>
    %173 = vector.extract_strided_slice %154 {offsets = [0, 256], sizes = [8, 128], strides = [1, 1]} : vector<8x512xf32> to vector<8x128xf32>
    %174 = math.tanh %173 : vector<8x128xf32>
    %175 = vector.extract_strided_slice %154 {offsets = [0, 384], sizes = [8, 128], strides = [1, 1]} : vector<8x512xf32> to vector<8x128xf32>
    %cst_100 = arith.constant 5.000000e-01 : f32
    %176 = vector.broadcast %cst_100 : f32 to vector<8x128xf32>
    %177 = arith.mulf %176, %175 : vector<8x128xf32>
    %178 = math.tanh %177 : vector<8x128xf32>
    %cst_101 = arith.constant 5.000000e-01 : f32
    %179 = vector.broadcast %cst_101 : f32 to vector<8x128xf32>
    %180 = arith.mulf %179, %178 : vector<8x128xf32>
    %cst_102 = arith.constant 5.000000e-01 : f32
    %181 = vector.broadcast %cst_102 : f32 to vector<8x128xf32>
    %182 = arith.addf %180, %181 : vector<8x128xf32>
    %183 = arith.mulf %172, %156 : vector<8x128xf32>
    %184 = arith.mulf %164, %174 : vector<8x128xf32>
    %185 = arith.addf %183, %184 : vector<8x128xf32>
    %186 = math.tanh %185 : vector<8x128xf32>
    %187 = arith.mulf %182, %186 : vector<8x128xf32>
    %c0_103 = arith.constant 0 : index
    %c0_104 = arith.constant 0 : index
    %c0_105 = arith.constant 0 : index
    %188 = vector.load %arg13[%c0_103, %c0_104, %c0_105] : memref<3x8x128xf32, #tpu.memory_space<vmem>>, vector<1x8x128xf32>
    %189 = vector.shape_cast %188 : vector<1x8x128xf32> to vector<8x128xf32>
    %190 = vector.shape_cast %187 : vector<8x128xf32> to vector<1x8x128xf32>
    tpu.vector_store %arg13[%c0_103, %c0_104, %c0_105], %190 {strides = array<i32>} : memref<3x8x128xf32, #tpu.memory_space<vmem>>, vector<1x8x128xf32>,
    %c0_106 = arith.constant 0 : index
    %c0_107 = arith.constant 0 : index
    %c0_108 = arith.constant 0 : index
    %191 = vector.load %arg14[%c0_106, %c0_107, %c0_108] : memref<3x8x128xf32, #tpu.memory_space<vmem>>, vector<1x8x128xf32>
    %192 = vector.shape_cast %191 : vector<1x8x128xf32> to vector<8x128xf32>
    %193 = vector.shape_cast %185 : vector<8x128xf32> to vector<1x8x128xf32>
    tpu.vector_store %arg14[%c0_106, %c0_107, %c0_108], %193 {strides = array<i32>} : memref<3x8x128xf32, #tpu.memory_space<vmem>>, vector<1x8x128xf32>,
    %c1_109 = arith.constant 1 : index
    %c0_110 = arith.constant 0 : index
    %c0_111 = arith.constant 0 : index
    %194 = vector.load %arg13[%c1_109, %c0_110, %c0_111] : memref<3x8x128xf32, #tpu.memory_space<vmem>>, vector<1x8x128xf32>
    %195 = vector.shape_cast %194 : vector<1x8x128xf32> to vector<8x128xf32>
    %196 = tpu.concatenate %187, %195 in 1 : vector<8x128xf32>, vector<8x128xf32> -> vector<8x256xf32>
    %c0_112 = arith.constant 0 : index
    %c0_113 = arith.constant 0 : index
    %197 = vector.load %arg5[%c0_112, %c0_113] : memref<256x512xf32, #tpu.memory_space<vmem>>, vector<256x512xf32>
    %cst_114 = arith.constant dense<0.000000e+00> : vector<8x512xf32>
    %198 = tpu.matmul %196, %197, %cst_114 {dimension_numbers = #tpu.dot_dimension_numbers<[1], [0], [0], [1], [0, 0, 1, 1], [], []>} : vector<8x256xf32>, vector<256x512xf32>, vector<8x512xf32> -> vector<8x512xf32>
    %c0_115 = arith.constant 0 : index
    %c0_116 = arith.constant 0 : index
    %199 = vector.load %arg6[%c0_115, %c0_116] : memref<1x512xf32, #tpu.memory_space<vmem>>, vector<1x512xf32>
    %200 = vector.broadcast %199 : vector<1x512xf32> to vector<8x512xf32>
    %201 = arith.addf %198, %200 : vector<8x512xf32>
    %c1_117 = arith.constant 1 : index
    %c0_118 = arith.constant 0 : index
    %c0_119 = arith.constant 0 : index
    %202 = vector.load %arg14[%c1_117, %c0_118, %c0_119] : memref<3x8x128xf32, #tpu.memory_space<vmem>>, vector<1x8x128xf32>
    %203 = vector.shape_cast %202 : vector<1x8x128xf32> to vector<8x128xf32>
    %204 = vector.extract_strided_slice %201 {offsets = [0, 0], sizes = [8, 128], strides = [1, 1]} : vector<8x512xf32> to vector<8x128xf32>
    %cst_120 = arith.constant 5.000000e-01 : f32
    %205 = vector.broadcast %cst_120 : f32 to vector<8x128xf32>
    %206 = arith.mulf %205, %204 : vector<8x128xf32>
    %207 = math.tanh %206 : vector<8x128xf32>
    %cst_121 = arith.constant 5.000000e-01 : f32
    %208 = vector.broadcast %cst_121 : f32 to vector<8x128xf32>
    %209 = arith.mulf %208, %207 : vector<8x128xf32>
    %cst_122 = arith.constant 5.000000e-01 : f32
    %210 = vector.broadcast %cst_122 : f32 to vector<8x128xf32>
    %211 = arith.addf %209, %210 : vector<8x128xf32>
    %212 = vector.extract_strided_slice %201 {offsets = [0, 128], sizes = [8, 128], strides = [1, 1]} : vector<8x512xf32> to vector<8x128xf32>
    %cst_123 = arith.constant 5.000000e-01 : f32
    %213 = vector.broadcast %cst_123 : f32 to vector<8x128xf32>
    %214 = arith.mulf %213, %212 : vector<8x128xf32>
    %215 = math.tanh %214 : vector<8x128xf32>
    %cst_124 = arith.constant 5.000000e-01 : f32
    %216 = vector.broadcast %cst_124 : f32 to vector<8x128xf32>
    %217 = arith.mulf %216, %215 : vector<8x128xf32>
    %cst_125 = arith.constant 5.000000e-01 : f32
    %218 = vector.broadcast %cst_125 : f32 to vector<8x128xf32>
    %219 = arith.addf %217, %218 : vector<8x128xf32>
    %220 = vector.extract_strided_slice %201 {offsets = [0, 256], sizes = [8, 128], strides = [1, 1]} : vector<8x512xf32> to vector<8x128xf32>
    %221 = math.tanh %220 : vector<8x128xf32>
    %222 = vector.extract_strided_slice %201 {offsets = [0, 384], sizes = [8, 128], strides = [1, 1]} : vector<8x512xf32> to vector<8x128xf32>
    %cst_126 = arith.constant 5.000000e-01 : f32
    %223 = vector.broadcast %cst_126 : f32 to vector<8x128xf32>
    %224 = arith.mulf %223, %222 : vector<8x128xf32>
    %225 = math.tanh %224 : vector<8x128xf32>
    %cst_127 = arith.constant 5.000000e-01 : f32
    %226 = vector.broadcast %cst_127 : f32 to vector<8x128xf32>
    %227 = arith.mulf %226, %225 : vector<8x128xf32>
    %cst_128 = arith.constant 5.000000e-01 : f32
    %228 = vector.broadcast %cst_128 : f32 to vector<8x128xf32>
    %229 = arith.addf %227, %228 : vector<8x128xf32>
    %230 = arith.mulf %219, %203 : vector<8x128xf32>
    %231 = arith.mulf %211, %221 : vector<8x128xf32>
    %232 = arith.addf %230, %231 : vector<8x128xf32>
    %233 = math.tanh %232 : vector<8x128xf32>
    %234 = arith.mulf %229, %233 : vector<8x128xf32>
    %c1_129 = arith.constant 1 : index
    %c0_130 = arith.constant 0 : index
    %c0_131 = arith.constant 0 : index
    %235 = vector.load %arg13[%c1_129, %c0_130, %c0_131] : memref<3x8x128xf32, #tpu.memory_space<vmem>>, vector<1x8x128xf32>
    %236 = vector.shape_cast %235 : vector<1x8x128xf32> to vector<8x128xf32>
    %237 = vector.shape_cast %234 : vector<8x128xf32> to vector<1x8x128xf32>
    tpu.vector_store %arg13[%c1_129, %c0_130, %c0_131], %237 {strides = array<i32>} : memref<3x8x128xf32, #tpu.memory_space<vmem>>, vector<1x8x128xf32>,
    %c1_132 = arith.constant 1 : index
    %c0_133 = arith.constant 0 : index
    %c0_134 = arith.constant 0 : index
    %238 = vector.load %arg14[%c1_132, %c0_133, %c0_134] : memref<3x8x128xf32, #tpu.memory_space<vmem>>, vector<1x8x128xf32>
    %239 = vector.shape_cast %238 : vector<1x8x128xf32> to vector<8x128xf32>
    %240 = vector.shape_cast %232 : vector<8x128xf32> to vector<1x8x128xf32>
    tpu.vector_store %arg14[%c1_132, %c0_133, %c0_134], %240 {strides = array<i32>} : memref<3x8x128xf32, #tpu.memory_space<vmem>>, vector<1x8x128xf32>,
    %c2_135 = arith.constant 2 : index
    %c0_136 = arith.constant 0 : index
    %c0_137 = arith.constant 0 : index
    %241 = vector.load %arg13[%c2_135, %c0_136, %c0_137] : memref<3x8x128xf32, #tpu.memory_space<vmem>>, vector<1x8x128xf32>
    %242 = vector.shape_cast %241 : vector<1x8x128xf32> to vector<8x128xf32>
    %243 = tpu.concatenate %234, %242 in 1 : vector<8x128xf32>, vector<8x128xf32> -> vector<8x256xf32>
    %c0_138 = arith.constant 0 : index
    %c0_139 = arith.constant 0 : index
    %244 = vector.load %arg7[%c0_138, %c0_139] : memref<256x512xf32, #tpu.memory_space<vmem>>, vector<256x512xf32>
    %cst_140 = arith.constant dense<0.000000e+00> : vector<8x512xf32>
    %245 = tpu.matmul %243, %244, %cst_140 {dimension_numbers = #tpu.dot_dimension_numbers<[1], [0], [0], [1], [0, 0, 1, 1], [], []>} : vector<8x256xf32>, vector<256x512xf32>, vector<8x512xf32> -> vector<8x512xf32>
    %c0_141 = arith.constant 0 : index
    %c0_142 = arith.constant 0 : index
    %246 = vector.load %arg8[%c0_141, %c0_142] : memref<1x512xf32, #tpu.memory_space<vmem>>, vector<1x512xf32>
    %247 = vector.broadcast %246 : vector<1x512xf32> to vector<8x512xf32>
    %248 = arith.addf %245, %247 : vector<8x512xf32>
    %c2_143 = arith.constant 2 : index
    %c0_144 = arith.constant 0 : index
    %c0_145 = arith.constant 0 : index
    %249 = vector.load %arg14[%c2_143, %c0_144, %c0_145] : memref<3x8x128xf32, #tpu.memory_space<vmem>>, vector<1x8x128xf32>
    %250 = vector.shape_cast %249 : vector<1x8x128xf32> to vector<8x128xf32>
    %251 = vector.extract_strided_slice %248 {offsets = [0, 0], sizes = [8, 128], strides = [1, 1]} : vector<8x512xf32> to vector<8x128xf32>
    %cst_146 = arith.constant 5.000000e-01 : f32
    %252 = vector.broadcast %cst_146 : f32 to vector<8x128xf32>
    %253 = arith.mulf %252, %251 : vector<8x128xf32>
    %254 = math.tanh %253 : vector<8x128xf32>
    %cst_147 = arith.constant 5.000000e-01 : f32
    %255 = vector.broadcast %cst_147 : f32 to vector<8x128xf32>
    %256 = arith.mulf %255, %254 : vector<8x128xf32>
    %cst_148 = arith.constant 5.000000e-01 : f32
    %257 = vector.broadcast %cst_148 : f32 to vector<8x128xf32>
    %258 = arith.addf %256, %257 : vector<8x128xf32>
    %259 = vector.extract_strided_slice %248 {offsets = [0, 128], sizes = [8, 128], strides = [1, 1]} : vector<8x512xf32> to vector<8x128xf32>
    %cst_149 = arith.constant 5.000000e-01 : f32
    %260 = vector.broadcast %cst_149 : f32 to vector<8x128xf32>
    %261 = arith.mulf %260, %259 : vector<8x128xf32>
    %262 = math.tanh %261 : vector<8x128xf32>
    %cst_150 = arith.constant 5.000000e-01 : f32
    %263 = vector.broadcast %cst_150 : f32 to vector<8x128xf32>
    %264 = arith.mulf %263, %262 : vector<8x128xf32>
    %cst_151 = arith.constant 5.000000e-01 : f32
    %265 = vector.broadcast %cst_151 : f32 to vector<8x128xf32>
    %266 = arith.addf %264, %265 : vector<8x128xf32>
    %267 = vector.extract_strided_slice %248 {offsets = [0, 256], sizes = [8, 128], strides = [1, 1]} : vector<8x512xf32> to vector<8x128xf32>
    %268 = math.tanh %267 : vector<8x128xf32>
    %269 = vector.extract_strided_slice %248 {offsets = [0, 384], sizes = [8, 128], strides = [1, 1]} : vector<8x512xf32> to vector<8x128xf32>
    %cst_152 = arith.constant 5.000000e-01 : f32
    %270 = vector.broadcast %cst_152 : f32 to vector<8x128xf32>
    %271 = arith.mulf %270, %269 : vector<8x128xf32>
    %272 = math.tanh %271 : vector<8x128xf32>
    %cst_153 = arith.constant 5.000000e-01 : f32
    %273 = vector.broadcast %cst_153 : f32 to vector<8x128xf32>
    %274 = arith.mulf %273, %272 : vector<8x128xf32>
    %cst_154 = arith.constant 5.000000e-01 : f32
    %275 = vector.broadcast %cst_154 : f32 to vector<8x128xf32>
    %276 = arith.addf %274, %275 : vector<8x128xf32>
    %277 = arith.mulf %266, %250 : vector<8x128xf32>
    %278 = arith.mulf %258, %268 : vector<8x128xf32>
    %279 = arith.addf %277, %278 : vector<8x128xf32>
    %280 = math.tanh %279 : vector<8x128xf32>
    %281 = arith.mulf %276, %280 : vector<8x128xf32>
    %c2_155 = arith.constant 2 : index
    %c0_156 = arith.constant 0 : index
    %c0_157 = arith.constant 0 : index
    %282 = vector.load %arg13[%c2_155, %c0_156, %c0_157] : memref<3x8x128xf32, #tpu.memory_space<vmem>>, vector<1x8x128xf32>
    %283 = vector.shape_cast %282 : vector<1x8x128xf32> to vector<8x128xf32>
    %284 = vector.shape_cast %281 : vector<8x128xf32> to vector<1x8x128xf32>
    tpu.vector_store %arg13[%c2_155, %c0_156, %c0_157], %284 {strides = array<i32>} : memref<3x8x128xf32, #tpu.memory_space<vmem>>, vector<1x8x128xf32>,
    %c2_158 = arith.constant 2 : index
    %c0_159 = arith.constant 0 : index
    %c0_160 = arith.constant 0 : index
    %285 = vector.load %arg14[%c2_158, %c0_159, %c0_160] : memref<3x8x128xf32, #tpu.memory_space<vmem>>, vector<1x8x128xf32>
    %286 = vector.shape_cast %285 : vector<1x8x128xf32> to vector<8x128xf32>
    %287 = vector.shape_cast %279 : vector<8x128xf32> to vector<1x8x128xf32>
    tpu.vector_store %arg14[%c2_158, %c0_159, %c0_160], %287 {strides = array<i32>} : memref<3x8x128xf32, #tpu.memory_space<vmem>>, vector<1x8x128xf32>,
    %c16 = arith.constant 16 : index
    %c0_161 = arith.constant 0 : index
    %288 = vector.load %arg12[%c16, %c0_161] : memref<32x512xf32, #tpu.memory_space<vmem>>, vector<8x512xf32>
    %c0_162 = arith.constant 0 : index
    %c0_163 = arith.constant 0 : index
    %c0_164 = arith.constant 0 : index
    %289 = vector.load %arg13[%c0_162, %c0_163, %c0_164] : memref<3x8x128xf32, #tpu.memory_space<vmem>>, vector<1x8x128xf32>
    %290 = vector.shape_cast %289 : vector<1x8x128xf32> to vector<8x128xf32>
    %c0_165 = arith.constant 0 : index
    %c0_166 = arith.constant 0 : index
    %291 = vector.load %arg3[%c0_165, %c0_166] : memref<128x512xf32, #tpu.memory_space<vmem>>, vector<128x512xf32>
    %cst_167 = arith.constant dense<0.000000e+00> : vector<8x512xf32>
    %292 = tpu.matmul %290, %291, %cst_167 {dimension_numbers = #tpu.dot_dimension_numbers<[1], [0], [0], [1], [0, 0, 1, 1], [], []>} : vector<8x128xf32>, vector<128x512xf32>, vector<8x512xf32> -> vector<8x512xf32>
    %293 = arith.addf %288, %292 : vector<8x512xf32>
    %c0_168 = arith.constant 0 : index
    %c0_169 = arith.constant 0 : index
    %c0_170 = arith.constant 0 : index
    %294 = vector.load %arg14[%c0_168, %c0_169, %c0_170] : memref<3x8x128xf32, #tpu.memory_space<vmem>>, vector<1x8x128xf32>
    %295 = vector.shape_cast %294 : vector<1x8x128xf32> to vector<8x128xf32>
    %296 = vector.extract_strided_slice %293 {offsets = [0, 0], sizes = [8, 128], strides = [1, 1]} : vector<8x512xf32> to vector<8x128xf32>
    %cst_171 = arith.constant 5.000000e-01 : f32
    %297 = vector.broadcast %cst_171 : f32 to vector<8x128xf32>
    %298 = arith.mulf %297, %296 : vector<8x128xf32>
    %299 = math.tanh %298 : vector<8x128xf32>
    %cst_172 = arith.constant 5.000000e-01 : f32
    %300 = vector.broadcast %cst_172 : f32 to vector<8x128xf32>
    %301 = arith.mulf %300, %299 : vector<8x128xf32>
    %cst_173 = arith.constant 5.000000e-01 : f32
    %302 = vector.broadcast %cst_173 : f32 to vector<8x128xf32>
    %303 = arith.addf %301, %302 : vector<8x128xf32>
    %304 = vector.extract_strided_slice %293 {offsets = [0, 128], sizes = [8, 128], strides = [1, 1]} : vector<8x512xf32> to vector<8x128xf32>
    %cst_174 = arith.constant 5.000000e-01 : f32
    %305 = vector.broadcast %cst_174 : f32 to vector<8x128xf32>
    %306 = arith.mulf %305, %304 : vector<8x128xf32>
    %307 = math.tanh %306 : vector<8x128xf32>
    %cst_175 = arith.constant 5.000000e-01 : f32
    %308 = vector.broadcast %cst_175 : f32 to vector<8x128xf32>
    %309 = arith.mulf %308, %307 : vector<8x128xf32>
    %cst_176 = arith.constant 5.000000e-01 : f32
    %310 = vector.broadcast %cst_176 : f32 to vector<8x128xf32>
    %311 = arith.addf %309, %310 : vector<8x128xf32>
    %312 = vector.extract_strided_slice %293 {offsets = [0, 256], sizes = [8, 128], strides = [1, 1]} : vector<8x512xf32> to vector<8x128xf32>
    %313 = math.tanh %312 : vector<8x128xf32>
    %314 = vector.extract_strided_slice %293 {offsets = [0, 384], sizes = [8, 128], strides = [1, 1]} : vector<8x512xf32> to vector<8x128xf32>
    %cst_177 = arith.constant 5.000000e-01 : f32
    %315 = vector.broadcast %cst_177 : f32 to vector<8x128xf32>
    %316 = arith.mulf %315, %314 : vector<8x128xf32>
    %317 = math.tanh %316 : vector<8x128xf32>
    %cst_178 = arith.constant 5.000000e-01 : f32
    %318 = vector.broadcast %cst_178 : f32 to vector<8x128xf32>
    %319 = arith.mulf %318, %317 : vector<8x128xf32>
    %cst_179 = arith.constant 5.000000e-01 : f32
    %320 = vector.broadcast %cst_179 : f32 to vector<8x128xf32>
    %321 = arith.addf %319, %320 : vector<8x128xf32>
    %322 = arith.mulf %311, %295 : vector<8x128xf32>
    %323 = arith.mulf %303, %313 : vector<8x128xf32>
    %324 = arith.addf %322, %323 : vector<8x128xf32>
    %325 = math.tanh %324 : vector<8x128xf32>
    %326 = arith.mulf %321, %325 : vector<8x128xf32>
    %c0_180 = arith.constant 0 : index
    %c0_181 = arith.constant 0 : index
    %c0_182 = arith.constant 0 : index
    %327 = vector.load %arg13[%c0_180, %c0_181, %c0_182] : memref<3x8x128xf32, #tpu.memory_space<vmem>>, vector<1x8x128xf32>
    %328 = vector.shape_cast %327 : vector<1x8x128xf32> to vector<8x128xf32>
    %329 = vector.shape_cast %326 : vector<8x128xf32> to vector<1x8x128xf32>
    tpu.vector_store %arg13[%c0_180, %c0_181, %c0_182], %329 {strides = array<i32>} : memref<3x8x128xf32, #tpu.memory_space<vmem>>, vector<1x8x128xf32>,
    %c0_183 = arith.constant 0 : index
    %c0_184 = arith.constant 0 : index
    %c0_185 = arith.constant 0 : index
    %330 = vector.load %arg14[%c0_183, %c0_184, %c0_185] : memref<3x8x128xf32, #tpu.memory_space<vmem>>, vector<1x8x128xf32>
    %331 = vector.shape_cast %330 : vector<1x8x128xf32> to vector<8x128xf32>
    %332 = vector.shape_cast %324 : vector<8x128xf32> to vector<1x8x128xf32>
    tpu.vector_store %arg14[%c0_183, %c0_184, %c0_185], %332 {strides = array<i32>} : memref<3x8x128xf32, #tpu.memory_space<vmem>>, vector<1x8x128xf32>,
    %c1_186 = arith.constant 1 : index
    %c0_187 = arith.constant 0 : index
    %c0_188 = arith.constant 0 : index
    %333 = vector.load %arg13[%c1_186, %c0_187, %c0_188] : memref<3x8x128xf32, #tpu.memory_space<vmem>>, vector<1x8x128xf32>
    %334 = vector.shape_cast %333 : vector<1x8x128xf32> to vector<8x128xf32>
    %335 = tpu.concatenate %326, %334 in 1 : vector<8x128xf32>, vector<8x128xf32> -> vector<8x256xf32>
    %c0_189 = arith.constant 0 : index
    %c0_190 = arith.constant 0 : index
    %336 = vector.load %arg5[%c0_189, %c0_190] : memref<256x512xf32, #tpu.memory_space<vmem>>, vector<256x512xf32>
    %cst_191 = arith.constant dense<0.000000e+00> : vector<8x512xf32>
    %337 = tpu.matmul %335, %336, %cst_191 {dimension_numbers = #tpu.dot_dimension_numbers<[1], [0], [0], [1], [0, 0, 1, 1], [], []>} : vector<8x256xf32>, vector<256x512xf32>, vector<8x512xf32> -> vector<8x512xf32>
    %c0_192 = arith.constant 0 : index
    %c0_193 = arith.constant 0 : index
    %338 = vector.load %arg6[%c0_192, %c0_193] : memref<1x512xf32, #tpu.memory_space<vmem>>, vector<1x512xf32>
    %339 = vector.broadcast %338 : vector<1x512xf32> to vector<8x512xf32>
    %340 = arith.addf %337, %339 : vector<8x512xf32>
    %c1_194 = arith.constant 1 : index
    %c0_195 = arith.constant 0 : index
    %c0_196 = arith.constant 0 : index
    %341 = vector.load %arg14[%c1_194, %c0_195, %c0_196] : memref<3x8x128xf32, #tpu.memory_space<vmem>>, vector<1x8x128xf32>
    %342 = vector.shape_cast %341 : vector<1x8x128xf32> to vector<8x128xf32>
    %343 = vector.extract_strided_slice %340 {offsets = [0, 0], sizes = [8, 128], strides = [1, 1]} : vector<8x512xf32> to vector<8x128xf32>
    %cst_197 = arith.constant 5.000000e-01 : f32
    %344 = vector.broadcast %cst_197 : f32 to vector<8x128xf32>
    %345 = arith.mulf %344, %343 : vector<8x128xf32>
    %346 = math.tanh %345 : vector<8x128xf32>
    %cst_198 = arith.constant 5.000000e-01 : f32
    %347 = vector.broadcast %cst_198 : f32 to vector<8x128xf32>
    %348 = arith.mulf %347, %346 : vector<8x128xf32>
    %cst_199 = arith.constant 5.000000e-01 : f32
    %349 = vector.broadcast %cst_199 : f32 to vector<8x128xf32>
    %350 = arith.addf %348, %349 : vector<8x128xf32>
    %351 = vector.extract_strided_slice %340 {offsets = [0, 128], sizes = [8, 128], strides = [1, 1]} : vector<8x512xf32> to vector<8x128xf32>
    %cst_200 = arith.constant 5.000000e-01 : f32
    %352 = vector.broadcast %cst_200 : f32 to vector<8x128xf32>
    %353 = arith.mulf %352, %351 : vector<8x128xf32>
    %354 = math.tanh %353 : vector<8x128xf32>
    %cst_201 = arith.constant 5.000000e-01 : f32
    %355 = vector.broadcast %cst_201 : f32 to vector<8x128xf32>
    %356 = arith.mulf %355, %354 : vector<8x128xf32>
    %cst_202 = arith.constant 5.000000e-01 : f32
    %357 = vector.broadcast %cst_202 : f32 to vector<8x128xf32>
    %358 = arith.addf %356, %357 : vector<8x128xf32>
    %359 = vector.extract_strided_slice %340 {offsets = [0, 256], sizes = [8, 128], strides = [1, 1]} : vector<8x512xf32> to vector<8x128xf32>
    %360 = math.tanh %359 : vector<8x128xf32>
    %361 = vector.extract_strided_slice %340 {offsets = [0, 384], sizes = [8, 128], strides = [1, 1]} : vector<8x512xf32> to vector<8x128xf32>
    %cst_203 = arith.constant 5.000000e-01 : f32
    %362 = vector.broadcast %cst_203 : f32 to vector<8x128xf32>
    %363 = arith.mulf %362, %361 : vector<8x128xf32>
    %364 = math.tanh %363 : vector<8x128xf32>
    %cst_204 = arith.constant 5.000000e-01 : f32
    %365 = vector.broadcast %cst_204 : f32 to vector<8x128xf32>
    %366 = arith.mulf %365, %364 : vector<8x128xf32>
    %cst_205 = arith.constant 5.000000e-01 : f32
    %367 = vector.broadcast %cst_205 : f32 to vector<8x128xf32>
    %368 = arith.addf %366, %367 : vector<8x128xf32>
    %369 = arith.mulf %358, %342 : vector<8x128xf32>
    %370 = arith.mulf %350, %360 : vector<8x128xf32>
    %371 = arith.addf %369, %370 : vector<8x128xf32>
    %372 = math.tanh %371 : vector<8x128xf32>
    %373 = arith.mulf %368, %372 : vector<8x128xf32>
    %c1_206 = arith.constant 1 : index
    %c0_207 = arith.constant 0 : index
    %c0_208 = arith.constant 0 : index
    %374 = vector.load %arg13[%c1_206, %c0_207, %c0_208] : memref<3x8x128xf32, #tpu.memory_space<vmem>>, vector<1x8x128xf32>
    %375 = vector.shape_cast %374 : vector<1x8x128xf32> to vector<8x128xf32>
    %376 = vector.shape_cast %373 : vector<8x128xf32> to vector<1x8x128xf32>
    tpu.vector_store %arg13[%c1_206, %c0_207, %c0_208], %376 {strides = array<i32>} : memref<3x8x128xf32, #tpu.memory_space<vmem>>, vector<1x8x128xf32>,
    %c1_209 = arith.constant 1 : index
    %c0_210 = arith.constant 0 : index
    %c0_211 = arith.constant 0 : index
    %377 = vector.load %arg14[%c1_209, %c0_210, %c0_211] : memref<3x8x128xf32, #tpu.memory_space<vmem>>, vector<1x8x128xf32>
    %378 = vector.shape_cast %377 : vector<1x8x128xf32> to vector<8x128xf32>
    %379 = vector.shape_cast %371 : vector<8x128xf32> to vector<1x8x128xf32>
    tpu.vector_store %arg14[%c1_209, %c0_210, %c0_211], %379 {strides = array<i32>} : memref<3x8x128xf32, #tpu.memory_space<vmem>>, vector<1x8x128xf32>,
    %c2_212 = arith.constant 2 : index
    %c0_213 = arith.constant 0 : index
    %c0_214 = arith.constant 0 : index
    %380 = vector.load %arg13[%c2_212, %c0_213, %c0_214] : memref<3x8x128xf32, #tpu.memory_space<vmem>>, vector<1x8x128xf32>
    %381 = vector.shape_cast %380 : vector<1x8x128xf32> to vector<8x128xf32>
    %382 = tpu.concatenate %373, %381 in 1 : vector<8x128xf32>, vector<8x128xf32> -> vector<8x256xf32>
    %c0_215 = arith.constant 0 : index
    %c0_216 = arith.constant 0 : index
    %383 = vector.load %arg7[%c0_215, %c0_216] : memref<256x512xf32, #tpu.memory_space<vmem>>, vector<256x512xf32>
    %cst_217 = arith.constant dense<0.000000e+00> : vector<8x512xf32>
    %384 = tpu.matmul %382, %383, %cst_217 {dimension_numbers = #tpu.dot_dimension_numbers<[1], [0], [0], [1], [0, 0, 1, 1], [], []>} : vector<8x256xf32>, vector<256x512xf32>, vector<8x512xf32> -> vector<8x512xf32>
    %c0_218 = arith.constant 0 : index
    %c0_219 = arith.constant 0 : index
    %385 = vector.load %arg8[%c0_218, %c0_219] : memref<1x512xf32, #tpu.memory_space<vmem>>, vector<1x512xf32>
    %386 = vector.broadcast %385 : vector<1x512xf32> to vector<8x512xf32>
    %387 = arith.addf %384, %386 : vector<8x512xf32>
    %c2_220 = arith.constant 2 : index
    %c0_221 = arith.constant 0 : index
    %c0_222 = arith.constant 0 : index
    %388 = vector.load %arg14[%c2_220, %c0_221, %c0_222] : memref<3x8x128xf32, #tpu.memory_space<vmem>>, vector<1x8x128xf32>
    %389 = vector.shape_cast %388 : vector<1x8x128xf32> to vector<8x128xf32>
    %390 = vector.extract_strided_slice %387 {offsets = [0, 0], sizes = [8, 128], strides = [1, 1]} : vector<8x512xf32> to vector<8x128xf32>
    %cst_223 = arith.constant 5.000000e-01 : f32
    %391 = vector.broadcast %cst_223 : f32 to vector<8x128xf32>
    %392 = arith.mulf %391, %390 : vector<8x128xf32>
    %393 = math.tanh %392 : vector<8x128xf32>
    %cst_224 = arith.constant 5.000000e-01 : f32
    %394 = vector.broadcast %cst_224 : f32 to vector<8x128xf32>
    %395 = arith.mulf %394, %393 : vector<8x128xf32>
    %cst_225 = arith.constant 5.000000e-01 : f32
    %396 = vector.broadcast %cst_225 : f32 to vector<8x128xf32>
    %397 = arith.addf %395, %396 : vector<8x128xf32>
    %398 = vector.extract_strided_slice %387 {offsets = [0, 128], sizes = [8, 128], strides = [1, 1]} : vector<8x512xf32> to vector<8x128xf32>
    %cst_226 = arith.constant 5.000000e-01 : f32
    %399 = vector.broadcast %cst_226 : f32 to vector<8x128xf32>
    %400 = arith.mulf %399, %398 : vector<8x128xf32>
    %401 = math.tanh %400 : vector<8x128xf32>
    %cst_227 = arith.constant 5.000000e-01 : f32
    %402 = vector.broadcast %cst_227 : f32 to vector<8x128xf32>
    %403 = arith.mulf %402, %401 : vector<8x128xf32>
    %cst_228 = arith.constant 5.000000e-01 : f32
    %404 = vector.broadcast %cst_228 : f32 to vector<8x128xf32>
    %405 = arith.addf %403, %404 : vector<8x128xf32>
    %406 = vector.extract_strided_slice %387 {offsets = [0, 256], sizes = [8, 128], strides = [1, 1]} : vector<8x512xf32> to vector<8x128xf32>
    %407 = math.tanh %406 : vector<8x128xf32>
    %408 = vector.extract_strided_slice %387 {offsets = [0, 384], sizes = [8, 128], strides = [1, 1]} : vector<8x512xf32> to vector<8x128xf32>
    %cst_229 = arith.constant 5.000000e-01 : f32
    %409 = vector.broadcast %cst_229 : f32 to vector<8x128xf32>
    %410 = arith.mulf %409, %408 : vector<8x128xf32>
    %411 = math.tanh %410 : vector<8x128xf32>
    %cst_230 = arith.constant 5.000000e-01 : f32
    %412 = vector.broadcast %cst_230 : f32 to vector<8x128xf32>
    %413 = arith.mulf %412, %411 : vector<8x128xf32>
    %cst_231 = arith.constant 5.000000e-01 : f32
    %414 = vector.broadcast %cst_231 : f32 to vector<8x128xf32>
    %415 = arith.addf %413, %414 : vector<8x128xf32>
    %416 = arith.mulf %405, %389 : vector<8x128xf32>
    %417 = arith.mulf %397, %407 : vector<8x128xf32>
    %418 = arith.addf %416, %417 : vector<8x128xf32>
    %419 = math.tanh %418 : vector<8x128xf32>
    %420 = arith.mulf %415, %419 : vector<8x128xf32>
    %c2_232 = arith.constant 2 : index
    %c0_233 = arith.constant 0 : index
    %c0_234 = arith.constant 0 : index
    %421 = vector.load %arg13[%c2_232, %c0_233, %c0_234] : memref<3x8x128xf32, #tpu.memory_space<vmem>>, vector<1x8x128xf32>
    %422 = vector.shape_cast %421 : vector<1x8x128xf32> to vector<8x128xf32>
    %423 = vector.shape_cast %420 : vector<8x128xf32> to vector<1x8x128xf32>
    tpu.vector_store %arg13[%c2_232, %c0_233, %c0_234], %423 {strides = array<i32>} : memref<3x8x128xf32, #tpu.memory_space<vmem>>, vector<1x8x128xf32>,
    %c2_235 = arith.constant 2 : index
    %c0_236 = arith.constant 0 : index
    %c0_237 = arith.constant 0 : index
    %424 = vector.load %arg14[%c2_235, %c0_236, %c0_237] : memref<3x8x128xf32, #tpu.memory_space<vmem>>, vector<1x8x128xf32>
    %425 = vector.shape_cast %424 : vector<1x8x128xf32> to vector<8x128xf32>
    %426 = vector.shape_cast %418 : vector<8x128xf32> to vector<1x8x128xf32>
    tpu.vector_store %arg14[%c2_235, %c0_236, %c0_237], %426 {strides = array<i32>} : memref<3x8x128xf32, #tpu.memory_space<vmem>>, vector<1x8x128xf32>,
    %c24 = arith.constant 24 : index
    %c0_238 = arith.constant 0 : index
    %427 = vector.load %arg12[%c24, %c0_238] : memref<32x512xf32, #tpu.memory_space<vmem>>, vector<8x512xf32>
    %c0_239 = arith.constant 0 : index
    %c0_240 = arith.constant 0 : index
    %c0_241 = arith.constant 0 : index
    %428 = vector.load %arg13[%c0_239, %c0_240, %c0_241] : memref<3x8x128xf32, #tpu.memory_space<vmem>>, vector<1x8x128xf32>
    %429 = vector.shape_cast %428 : vector<1x8x128xf32> to vector<8x128xf32>
    %c0_242 = arith.constant 0 : index
    %c0_243 = arith.constant 0 : index
    %430 = vector.load %arg3[%c0_242, %c0_243] : memref<128x512xf32, #tpu.memory_space<vmem>>, vector<128x512xf32>
    %cst_244 = arith.constant dense<0.000000e+00> : vector<8x512xf32>
    %431 = tpu.matmul %429, %430, %cst_244 {dimension_numbers = #tpu.dot_dimension_numbers<[1], [0], [0], [1], [0, 0, 1, 1], [], []>} : vector<8x128xf32>, vector<128x512xf32>, vector<8x512xf32> -> vector<8x512xf32>
    %432 = arith.addf %427, %431 : vector<8x512xf32>
    %c0_245 = arith.constant 0 : index
    %c0_246 = arith.constant 0 : index
    %c0_247 = arith.constant 0 : index
    %433 = vector.load %arg14[%c0_245, %c0_246, %c0_247] : memref<3x8x128xf32, #tpu.memory_space<vmem>>, vector<1x8x128xf32>
    %434 = vector.shape_cast %433 : vector<1x8x128xf32> to vector<8x128xf32>
    %435 = vector.extract_strided_slice %432 {offsets = [0, 0], sizes = [8, 128], strides = [1, 1]} : vector<8x512xf32> to vector<8x128xf32>
    %cst_248 = arith.constant 5.000000e-01 : f32
    %436 = vector.broadcast %cst_248 : f32 to vector<8x128xf32>
    %437 = arith.mulf %436, %435 : vector<8x128xf32>
    %438 = math.tanh %437 : vector<8x128xf32>
    %cst_249 = arith.constant 5.000000e-01 : f32
    %439 = vector.broadcast %cst_249 : f32 to vector<8x128xf32>
    %440 = arith.mulf %439, %438 : vector<8x128xf32>
    %cst_250 = arith.constant 5.000000e-01 : f32
    %441 = vector.broadcast %cst_250 : f32 to vector<8x128xf32>
    %442 = arith.addf %440, %441 : vector<8x128xf32>
    %443 = vector.extract_strided_slice %432 {offsets = [0, 128], sizes = [8, 128], strides = [1, 1]} : vector<8x512xf32> to vector<8x128xf32>
    %cst_251 = arith.constant 5.000000e-01 : f32
    %444 = vector.broadcast %cst_251 : f32 to vector<8x128xf32>
    %445 = arith.mulf %444, %443 : vector<8x128xf32>
    %446 = math.tanh %445 : vector<8x128xf32>
    %cst_252 = arith.constant 5.000000e-01 : f32
    %447 = vector.broadcast %cst_252 : f32 to vector<8x128xf32>
    %448 = arith.mulf %447, %446 : vector<8x128xf32>
    %cst_253 = arith.constant 5.000000e-01 : f32
    %449 = vector.broadcast %cst_253 : f32 to vector<8x128xf32>
    %450 = arith.addf %448, %449 : vector<8x128xf32>
    %451 = vector.extract_strided_slice %432 {offsets = [0, 256], sizes = [8, 128], strides = [1, 1]} : vector<8x512xf32> to vector<8x128xf32>
    %452 = math.tanh %451 : vector<8x128xf32>
    %453 = vector.extract_strided_slice %432 {offsets = [0, 384], sizes = [8, 128], strides = [1, 1]} : vector<8x512xf32> to vector<8x128xf32>
    %cst_254 = arith.constant 5.000000e-01 : f32
    %454 = vector.broadcast %cst_254 : f32 to vector<8x128xf32>
    %455 = arith.mulf %454, %453 : vector<8x128xf32>
    %456 = math.tanh %455 : vector<8x128xf32>
    %cst_255 = arith.constant 5.000000e-01 : f32
    %457 = vector.broadcast %cst_255 : f32 to vector<8x128xf32>
    %458 = arith.mulf %457, %456 : vector<8x128xf32>
    %cst_256 = arith.constant 5.000000e-01 : f32
    %459 = vector.broadcast %cst_256 : f32 to vector<8x128xf32>
    %460 = arith.addf %458, %459 : vector<8x128xf32>
    %461 = arith.mulf %450, %434 : vector<8x128xf32>
    %462 = arith.mulf %442, %452 : vector<8x128xf32>
    %463 = arith.addf %461, %462 : vector<8x128xf32>
    %464 = math.tanh %463 : vector<8x128xf32>
    %465 = arith.mulf %460, %464 : vector<8x128xf32>
    %c0_257 = arith.constant 0 : index
    %c0_258 = arith.constant 0 : index
    %c0_259 = arith.constant 0 : index
    %466 = vector.load %arg13[%c0_257, %c0_258, %c0_259] : memref<3x8x128xf32, #tpu.memory_space<vmem>>, vector<1x8x128xf32>
    %467 = vector.shape_cast %466 : vector<1x8x128xf32> to vector<8x128xf32>
    %468 = vector.shape_cast %465 : vector<8x128xf32> to vector<1x8x128xf32>
    tpu.vector_store %arg13[%c0_257, %c0_258, %c0_259], %468 {strides = array<i32>} : memref<3x8x128xf32, #tpu.memory_space<vmem>>, vector<1x8x128xf32>,
    %c0_260 = arith.constant 0 : index
    %c0_261 = arith.constant 0 : index
    %c0_262 = arith.constant 0 : index
    %469 = vector.load %arg14[%c0_260, %c0_261, %c0_262] : memref<3x8x128xf32, #tpu.memory_space<vmem>>, vector<1x8x128xf32>
    %470 = vector.shape_cast %469 : vector<1x8x128xf32> to vector<8x128xf32>
    %471 = vector.shape_cast %463 : vector<8x128xf32> to vector<1x8x128xf32>
    tpu.vector_store %arg14[%c0_260, %c0_261, %c0_262], %471 {strides = array<i32>} : memref<3x8x128xf32, #tpu.memory_space<vmem>>, vector<1x8x128xf32>,
    %c1_263 = arith.constant 1 : index
    %c0_264 = arith.constant 0 : index
    %c0_265 = arith.constant 0 : index
    %472 = vector.load %arg13[%c1_263, %c0_264, %c0_265] : memref<3x8x128xf32, #tpu.memory_space<vmem>>, vector<1x8x128xf32>
    %473 = vector.shape_cast %472 : vector<1x8x128xf32> to vector<8x128xf32>
    %474 = tpu.concatenate %465, %473 in 1 : vector<8x128xf32>, vector<8x128xf32> -> vector<8x256xf32>
    %c0_266 = arith.constant 0 : index
    %c0_267 = arith.constant 0 : index
    %475 = vector.load %arg5[%c0_266, %c0_267] : memref<256x512xf32, #tpu.memory_space<vmem>>, vector<256x512xf32>
    %cst_268 = arith.constant dense<0.000000e+00> : vector<8x512xf32>
    %476 = tpu.matmul %474, %475, %cst_268 {dimension_numbers = #tpu.dot_dimension_numbers<[1], [0], [0], [1], [0, 0, 1, 1], [], []>} : vector<8x256xf32>, vector<256x512xf32>, vector<8x512xf32> -> vector<8x512xf32>
    %c0_269 = arith.constant 0 : index
    %c0_270 = arith.constant 0 : index
    %477 = vector.load %arg6[%c0_269, %c0_270] : memref<1x512xf32, #tpu.memory_space<vmem>>, vector<1x512xf32>
    %478 = vector.broadcast %477 : vector<1x512xf32> to vector<8x512xf32>
    %479 = arith.addf %476, %478 : vector<8x512xf32>
    %c1_271 = arith.constant 1 : index
    %c0_272 = arith.constant 0 : index
    %c0_273 = arith.constant 0 : index
    %480 = vector.load %arg14[%c1_271, %c0_272, %c0_273] : memref<3x8x128xf32, #tpu.memory_space<vmem>>, vector<1x8x128xf32>
    %481 = vector.shape_cast %480 : vector<1x8x128xf32> to vector<8x128xf32>
    %482 = vector.extract_strided_slice %479 {offsets = [0, 0], sizes = [8, 128], strides = [1, 1]} : vector<8x512xf32> to vector<8x128xf32>
    %cst_274 = arith.constant 5.000000e-01 : f32
    %483 = vector.broadcast %cst_274 : f32 to vector<8x128xf32>
    %484 = arith.mulf %483, %482 : vector<8x128xf32>
    %485 = math.tanh %484 : vector<8x128xf32>
    %cst_275 = arith.constant 5.000000e-01 : f32
    %486 = vector.broadcast %cst_275 : f32 to vector<8x128xf32>
    %487 = arith.mulf %486, %485 : vector<8x128xf32>
    %cst_276 = arith.constant 5.000000e-01 : f32
    %488 = vector.broadcast %cst_276 : f32 to vector<8x128xf32>
    %489 = arith.addf %487, %488 : vector<8x128xf32>
    %490 = vector.extract_strided_slice %479 {offsets = [0, 128], sizes = [8, 128], strides = [1, 1]} : vector<8x512xf32> to vector<8x128xf32>
    %cst_277 = arith.constant 5.000000e-01 : f32
    %491 = vector.broadcast %cst_277 : f32 to vector<8x128xf32>
    %492 = arith.mulf %491, %490 : vector<8x128xf32>
    %493 = math.tanh %492 : vector<8x128xf32>
    %cst_278 = arith.constant 5.000000e-01 : f32
    %494 = vector.broadcast %cst_278 : f32 to vector<8x128xf32>
    %495 = arith.mulf %494, %493 : vector<8x128xf32>
    %cst_279 = arith.constant 5.000000e-01 : f32
    %496 = vector.broadcast %cst_279 : f32 to vector<8x128xf32>
    %497 = arith.addf %495, %496 : vector<8x128xf32>
    %498 = vector.extract_strided_slice %479 {offsets = [0, 256], sizes = [8, 128], strides = [1, 1]} : vector<8x512xf32> to vector<8x128xf32>
    %499 = math.tanh %498 : vector<8x128xf32>
    %500 = vector.extract_strided_slice %479 {offsets = [0, 384], sizes = [8, 128], strides = [1, 1]} : vector<8x512xf32> to vector<8x128xf32>
    %cst_280 = arith.constant 5.000000e-01 : f32
    %501 = vector.broadcast %cst_280 : f32 to vector<8x128xf32>
    %502 = arith.mulf %501, %500 : vector<8x128xf32>
    %503 = math.tanh %502 : vector<8x128xf32>
    %cst_281 = arith.constant 5.000000e-01 : f32
    %504 = vector.broadcast %cst_281 : f32 to vector<8x128xf32>
    %505 = arith.mulf %504, %503 : vector<8x128xf32>
    %cst_282 = arith.constant 5.000000e-01 : f32
    %506 = vector.broadcast %cst_282 : f32 to vector<8x128xf32>
    %507 = arith.addf %505, %506 : vector<8x128xf32>
    %508 = arith.mulf %497, %481 : vector<8x128xf32>
    %509 = arith.mulf %489, %499 : vector<8x128xf32>
    %510 = arith.addf %508, %509 : vector<8x128xf32>
    %511 = math.tanh %510 : vector<8x128xf32>
    %512 = arith.mulf %507, %511 : vector<8x128xf32>
    %c1_283 = arith.constant 1 : index
    %c0_284 = arith.constant 0 : index
    %c0_285 = arith.constant 0 : index
    %513 = vector.load %arg13[%c1_283, %c0_284, %c0_285] : memref<3x8x128xf32, #tpu.memory_space<vmem>>, vector<1x8x128xf32>
    %514 = vector.shape_cast %513 : vector<1x8x128xf32> to vector<8x128xf32>
    %515 = vector.shape_cast %512 : vector<8x128xf32> to vector<1x8x128xf32>
    tpu.vector_store %arg13[%c1_283, %c0_284, %c0_285], %515 {strides = array<i32>} : memref<3x8x128xf32, #tpu.memory_space<vmem>>, vector<1x8x128xf32>,
    %c1_286 = arith.constant 1 : index
    %c0_287 = arith.constant 0 : index
    %c0_288 = arith.constant 0 : index
    %516 = vector.load %arg14[%c1_286, %c0_287, %c0_288] : memref<3x8x128xf32, #tpu.memory_space<vmem>>, vector<1x8x128xf32>
    %517 = vector.shape_cast %516 : vector<1x8x128xf32> to vector<8x128xf32>
    %518 = vector.shape_cast %510 : vector<8x128xf32> to vector<1x8x128xf32>
    tpu.vector_store %arg14[%c1_286, %c0_287, %c0_288], %518 {strides = array<i32>} : memref<3x8x128xf32, #tpu.memory_space<vmem>>, vector<1x8x128xf32>,
    %c2_289 = arith.constant 2 : index
    %c0_290 = arith.constant 0 : index
    %c0_291 = arith.constant 0 : index
    %519 = vector.load %arg13[%c2_289, %c0_290, %c0_291] : memref<3x8x128xf32, #tpu.memory_space<vmem>>, vector<1x8x128xf32>
    %520 = vector.shape_cast %519 : vector<1x8x128xf32> to vector<8x128xf32>
    %521 = tpu.concatenate %512, %520 in 1 : vector<8x128xf32>, vector<8x128xf32> -> vector<8x256xf32>
    %c0_292 = arith.constant 0 : index
    %c0_293 = arith.constant 0 : index
    %522 = vector.load %arg7[%c0_292, %c0_293] : memref<256x512xf32, #tpu.memory_space<vmem>>, vector<256x512xf32>
    %cst_294 = arith.constant dense<0.000000e+00> : vector<8x512xf32>
    %523 = tpu.matmul %521, %522, %cst_294 {dimension_numbers = #tpu.dot_dimension_numbers<[1], [0], [0], [1], [0, 0, 1, 1], [], []>} : vector<8x256xf32>, vector<256x512xf32>, vector<8x512xf32> -> vector<8x512xf32>
    %c0_295 = arith.constant 0 : index
    %c0_296 = arith.constant 0 : index
    %524 = vector.load %arg8[%c0_295, %c0_296] : memref<1x512xf32, #tpu.memory_space<vmem>>, vector<1x512xf32>
    %525 = vector.broadcast %524 : vector<1x512xf32> to vector<8x512xf32>
    %526 = arith.addf %523, %525 : vector<8x512xf32>
    %c2_297 = arith.constant 2 : index
    %c0_298 = arith.constant 0 : index
    %c0_299 = arith.constant 0 : index
    %527 = vector.load %arg14[%c2_297, %c0_298, %c0_299] : memref<3x8x128xf32, #tpu.memory_space<vmem>>, vector<1x8x128xf32>
    %528 = vector.shape_cast %527 : vector<1x8x128xf32> to vector<8x128xf32>
    %529 = vector.extract_strided_slice %526 {offsets = [0, 0], sizes = [8, 128], strides = [1, 1]} : vector<8x512xf32> to vector<8x128xf32>
    %cst_300 = arith.constant 5.000000e-01 : f32
    %530 = vector.broadcast %cst_300 : f32 to vector<8x128xf32>
    %531 = arith.mulf %530, %529 : vector<8x128xf32>
    %532 = math.tanh %531 : vector<8x128xf32>
    %cst_301 = arith.constant 5.000000e-01 : f32
    %533 = vector.broadcast %cst_301 : f32 to vector<8x128xf32>
    %534 = arith.mulf %533, %532 : vector<8x128xf32>
    %cst_302 = arith.constant 5.000000e-01 : f32
    %535 = vector.broadcast %cst_302 : f32 to vector<8x128xf32>
    %536 = arith.addf %534, %535 : vector<8x128xf32>
    %537 = vector.extract_strided_slice %526 {offsets = [0, 128], sizes = [8, 128], strides = [1, 1]} : vector<8x512xf32> to vector<8x128xf32>
    %cst_303 = arith.constant 5.000000e-01 : f32
    %538 = vector.broadcast %cst_303 : f32 to vector<8x128xf32>
    %539 = arith.mulf %538, %537 : vector<8x128xf32>
    %540 = math.tanh %539 : vector<8x128xf32>
    %cst_304 = arith.constant 5.000000e-01 : f32
    %541 = vector.broadcast %cst_304 : f32 to vector<8x128xf32>
    %542 = arith.mulf %541, %540 : vector<8x128xf32>
    %cst_305 = arith.constant 5.000000e-01 : f32
    %543 = vector.broadcast %cst_305 : f32 to vector<8x128xf32>
    %544 = arith.addf %542, %543 : vector<8x128xf32>
    %545 = vector.extract_strided_slice %526 {offsets = [0, 256], sizes = [8, 128], strides = [1, 1]} : vector<8x512xf32> to vector<8x128xf32>
    %546 = math.tanh %545 : vector<8x128xf32>
    %547 = vector.extract_strided_slice %526 {offsets = [0, 384], sizes = [8, 128], strides = [1, 1]} : vector<8x512xf32> to vector<8x128xf32>
    %cst_306 = arith.constant 5.000000e-01 : f32
    %548 = vector.broadcast %cst_306 : f32 to vector<8x128xf32>
    %549 = arith.mulf %548, %547 : vector<8x128xf32>
    %550 = math.tanh %549 : vector<8x128xf32>
    %cst_307 = arith.constant 5.000000e-01 : f32
    %551 = vector.broadcast %cst_307 : f32 to vector<8x128xf32>
    %552 = arith.mulf %551, %550 : vector<8x128xf32>
    %cst_308 = arith.constant 5.000000e-01 : f32
    %553 = vector.broadcast %cst_308 : f32 to vector<8x128xf32>
    %554 = arith.addf %552, %553 : vector<8x128xf32>
    %555 = arith.mulf %544, %528 : vector<8x128xf32>
    %556 = arith.mulf %536, %546 : vector<8x128xf32>
    %557 = arith.addf %555, %556 : vector<8x128xf32>
    %558 = math.tanh %557 : vector<8x128xf32>
    %559 = arith.mulf %554, %558 : vector<8x128xf32>
    %c2_309 = arith.constant 2 : index
    %c0_310 = arith.constant 0 : index
    %c0_311 = arith.constant 0 : index
    %560 = vector.load %arg13[%c2_309, %c0_310, %c0_311] : memref<3x8x128xf32, #tpu.memory_space<vmem>>, vector<1x8x128xf32>
    %561 = vector.shape_cast %560 : vector<1x8x128xf32> to vector<8x128xf32>
    %562 = vector.shape_cast %559 : vector<8x128xf32> to vector<1x8x128xf32>
    tpu.vector_store %arg13[%c2_309, %c0_310, %c0_311], %562 {strides = array<i32>} : memref<3x8x128xf32, #tpu.memory_space<vmem>>, vector<1x8x128xf32>,
    %c2_312 = arith.constant 2 : index
    %c0_313 = arith.constant 0 : index
    %c0_314 = arith.constant 0 : index
    %563 = vector.load %arg14[%c2_312, %c0_313, %c0_314] : memref<3x8x128xf32, #tpu.memory_space<vmem>>, vector<1x8x128xf32>
    %564 = vector.shape_cast %563 : vector<1x8x128xf32> to vector<8x128xf32>
    %565 = vector.shape_cast %557 : vector<8x128xf32> to vector<1x8x128xf32>
    tpu.vector_store %arg14[%c2_312, %c0_313, %c0_314], %565 {strides = array<i32>} : memref<3x8x128xf32, #tpu.memory_space<vmem>>, vector<1x8x128xf32>,
    %c1_i32 = arith.constant 1 : i32
    %566 = arith.cmpi eq, %arg0, %c1_i32 : i32
    %567 = arith.extui %566 : i1 to i32
    %c0_i32_315 = arith.constant 0 : i32
    %568 = arith.cmpi ne, %567, %c0_i32_315 : i32
    scf.if %568 {
      %c2_316 = arith.constant 2 : index
      %c0_317 = arith.constant 0 : index
      %c0_318 = arith.constant 0 : index
      %569 = vector.load %arg13[%c2_316, %c0_317, %c0_318] : memref<3x8x128xf32, #tpu.memory_space<vmem>>, vector<1x8x128xf32>
      %570 = vector.shape_cast %569 : vector<1x8x128xf32> to vector<8x128xf32>
      %c0_319 = arith.constant 0 : index
      %c0_320 = arith.constant 0 : index
      %571 = vector.load %arg9[%c0_319, %c0_320] : memref<128x128xf32, #tpu.memory_space<vmem>>, vector<128x128xf32>
      %cst_321 = arith.constant dense<0.000000e+00> : vector<8x128xf32>
      %572 = tpu.matmul %570, %571, %cst_321 {dimension_numbers = #tpu.dot_dimension_numbers<[1], [0], [0], [1], [0, 0, 1, 1], [], []>} : vector<8x128xf32>, vector<128x128xf32>, vector<8x128xf32> -> vector<8x128xf32>
      %c0_322 = arith.constant 0 : index
      %c0_323 = arith.constant 0 : index
      %573 = vector.load %arg10[%c0_322, %c0_323] : memref<1x128xf32, #tpu.memory_space<vmem>>, vector<1x128xf32>
      %574 = vector.broadcast %573 : vector<1x128xf32> to vector<8x128xf32>
      %575 = arith.addf %572, %574 : vector<8x128xf32>
      %c0_324 = arith.constant 0 : index
      %c0_325 = arith.constant 0 : index
      %576 = vector.load %arg11[%c0_324, %c0_325] : memref<8x128xf32, #tpu.memory_space<vmem>>, vector<8x128xf32>
      tpu.vector_store %arg11[%c0_324, %c0_325], %575 {strides = array<i32>} : memref<8x128xf32, #tpu.memory_space<vmem>>, vector<8x128xf32>,
    } else {
    }
    return
  }
  func.func @transform_0(%arg0: i32) -> (i32, i32) {
    %c0_i32 = arith.constant 0 : i32
    %c0_i32_0 = arith.constant 0 : i32
    return %arg0, %c0_i32 : i32, i32
  }
  func.func @transform_1(%arg0: i32) -> (i32, i32) {
    %c0_i32 = arith.constant 0 : i32
    %c0_i32_0 = arith.constant 0 : i32
    %c0_i32_1 = arith.constant 0 : i32
    return %c0_i32, %c0_i32_0 : i32, i32
  }
  func.func @transform_2(%arg0: i32) -> (i32, i32) {
    %c0_i32 = arith.constant 0 : i32
    %c0_i32_0 = arith.constant 0 : i32
    %c0_i32_1 = arith.constant 0 : i32
    return %c0_i32, %c0_i32_0 : i32, i32
  }
  func.func @transform_3(%arg0: i32) -> (i32, i32) {
    %c0_i32 = arith.constant 0 : i32
    %c0_i32_0 = arith.constant 0 : i32
    %c0_i32_1 = arith.constant 0 : i32
    return %c0_i32, %c0_i32_0 : i32, i32
  }
  func.func @transform_4(%arg0: i32) -> (i32, i32) {
    %c0_i32 = arith.constant 0 : i32
    %c0_i32_0 = arith.constant 0 : i32
    %c0_i32_1 = arith.constant 0 : i32
    return %c0_i32, %c0_i32_0 : i32, i32
  }
  func.func @transform_5(%arg0: i32) -> (i32, i32) {
    %c0_i32 = arith.constant 0 : i32
    %c0_i32_0 = arith.constant 0 : i32
    %c0_i32_1 = arith.constant 0 : i32
    return %c0_i32, %c0_i32_0 : i32, i32
  }
  func.func @transform_6(%arg0: i32) -> (i32, i32) {
    %c0_i32 = arith.constant 0 : i32
    %c0_i32_0 = arith.constant 0 : i32
    %c0_i32_1 = arith.constant 0 : i32
    return %c0_i32, %c0_i32_0 : i32, i32
  }
  func.func @transform_7(%arg0: i32) -> (i32, i32) {
    %c0_i32 = arith.constant 0 : i32
    %c0_i32_0 = arith.constant 0 : i32
    %c0_i32_1 = arith.constant 0 : i32
    return %c0_i32, %c0_i32_0 : i32, i32
  }
  func.func @transform_8(%arg0: i32) -> (i32, i32) {
    %c0_i32 = arith.constant 0 : i32
    %c0_i32_0 = arith.constant 0 : i32
    %c0_i32_1 = arith.constant 0 : i32
    return %c0_i32, %c0_i32_0 : i32, i32
  }
  func.func @transform_9(%arg0: i32) -> (i32, i32) {
    %c0_i32 = arith.constant 0 : i32
    %c0_i32_0 = arith.constant 0 : i32
    %c0_i32_1 = arith.constant 0 : i32
    return %c0_i32, %c0_i32_0 : i32, i32
  }
  func.func @transform_10(%arg0: i32) -> (i32, i32) {
    %c0_i32 = arith.constant 0 : i32
    %c0_i32_0 = arith.constant 0 : i32
    %c0_i32_1 = arith.constant 0 : i32
    return %c0_i32, %c0_i32_0 : i32, i32
  }
}

</mosaic_0001>

<llo_original>
// kernel: forward.1
$region0: #{forward.1}
  #allocation0 [shape = 'u32[]', space=smem, size = 0x4, offset = 0x4, fixed_abs, tag = 'smem constant byte address 0x4 - core index']
  #allocation1 [shape = 'u32[144,128]{1,0:T(1,128)}', space=vmem, size = 0x12000, scoped, tag = 'internal scratch']
  #allocation2 [shape = 'f32[32,512]{1,0:T(8,128)}', space=vmem, size = 0x10000, scoped, tag = 'scratch operand']
  #allocation3 [shape = 'f32[3,8,128]{2,1,0:T(8,128)}', space=vmem, size = 0x3000, scoped, tag = 'scratch operand']
  #allocation4 [shape = 'f32[3,8,128]{2,1,0:T(8,128)}', space=vmem, size = 0x3000, scoped, tag = 'scratch operand']
  %s0 = inlined_call_operand.vmem [shape: f32[64,128], index: 0, kind: input, shape index: {}]
  %s1 = inlined_call_operand.hbm [shape: f32[128,512], index: 1, kind: input, shape index: {}]
  %s2 = inlined_call_operand.hbm [shape: f32[128,512], index: 2, kind: input, shape index: {}]
  %s3 = inlined_call_operand.vmem [shape: f32[1,512], index: 3, kind: input, shape index: {}]
  %s4 = inlined_call_operand.hbm [shape: f32[256,512], index: 4, kind: input, shape index: {}]
  %s5 = inlined_call_operand.vmem [shape: f32[1,512], index: 5, kind: input, shape index: {}]
  %s6 = inlined_call_operand.hbm [shape: f32[256,512], index: 6, kind: input, shape index: {}]
  %s7 = inlined_call_operand.vmem [shape: f32[1,512], index: 7, kind: input, shape index: {}]
  %s8 = inlined_call_operand.vmem [shape: f32[128,128], index: 8, kind: input, shape index: {}]
  %s9 = inlined_call_operand.vmem [shape: f32[1,128], index: 9, kind: input, shape index: {}]
  %s10 = inlined_call_operand.vmem [shape: f32[8,128], index: 10, kind: output, shape index: {}]
  %s11 = sld [smem:[#allocation0]]
  $region97: #{forward.1} parent=0
    _
  %s13 = ssub.s32 1, %s11
  %s14 = scalar_select 0, %s13, %s11
  $region1: #{forward.1} parent=0
    #allocation5 [shape = 'u8[262144]{0}', space=vmem, size = 0x40000, scoped, tag = 'input window, operand 1, single buffered']
    #allocation6 [shape = 's32[2]{0}', space=sflag, size = 0x8, scoped, tag = 'scoped memory for forward.1']
    #allocation7 [shape = 'u8[262144]{0}', space=vmem, size = 0x40000, scoped, tag = 'input window, operand 2, single buffered']
    #allocation8 [shape = 's32[1]{0}', space=sflag, size = 0x4, scoped, tag = 'scoped memory for forward.1']
    #allocation9 [shape = 'u8[524288]{0}', space=vmem, size = 0x80000, scoped, tag = 'input window, operand 4, single buffered']
    #allocation10 [shape = 'u8[524288]{0}', space=vmem, size = 0x80000, scoped, tag = 'input window, operand 6, single buffered']
    #allocation11 [shape = 's32[1]{0}', space=sflag, size = 0x4, scoped, tag = 'scoped memory for forward.1']
    %15 = vsyncpa [#allocation6], 0
    %16 = vsyncpa [#allocation8], 0
    %17 = vsyncpa [#allocation11], 0
    loop: start=0, step=1, limit=4
    $region2: #{forward.1} parent=1 // loop_pre_header
      _
    $region3: #{forward.1} parent=1 // loop_header
      %s19 = sphi 0, %s23
      %p20 = scmp.ge.s32.totalorder %s19, 4
      %s29 = sphi 0, %s31
      %s32 = sphi 0, %s29
      %s33 = sphi 0, %s32
      %s49 = sphi 0, %s33
      %s53 = sphi 0, %s53
      %s55 = sphi 0, %s53
      %s56 = sphi 0, %s55
      %s70 = sphi 0, %s56
      %s74 = sphi 0, %s74
      %s76 = sphi 0, %s74
      %s77 = sphi 0, %s76
      %s91 = sphi 0, %s77
      %s95 = sphi 0, %s95
      %s97 = sphi 0, %s95
      %s98 = sphi 0, %s97
      %s112 = sphi 0, %s98
      %s116 = sphi 0, %s116
      %s118 = sphi 0, %s116
      %s119 = sphi 0, %s118
      %s133 = sphi 0, %s119
      %s137 = sphi 0, %s137
      %s139 = sphi 0, %s137
      %s140 = sphi 0, %s139
      %s154 = sphi 0, %s140
      %s158 = sphi 0, %s158
      %s160 = sphi 0, %s158
      %s161 = sphi 0, %s160
      %s175 = sphi 0, %s161
      %s179 = sphi 0, %s179
      %s181 = sphi 0, %s179
      %s182 = sphi 0, %s181
      %s196 = sphi 0, %s182
      %s200 = sphi 0, %s200
      %s202 = sphi 0, %s200
      %s203 = sphi 0, %s202
      %s217 = sphi 0, %s203
      %s221 = sphi 0, %s221
      %s223 = sphi 0, %s221
      %s224 = sphi 0, %s223
      %s238 = sphi 0, %s224
      %s242 = sphi 0, %s242
      %s244 = sphi 0, %s242
      %s245 = sphi 0, %s244
      %s259 = sphi 0, %s245
    $region4: #{forward.1} parent=1 // loop_header_branch
      %22 = sbr.rel (%p20) target = $region8
    $region5: #{forward.1} parent=1 // loop_body
      %s24 = ssub.s32 %s19, 1
      %s25 = ssub.s32 %s19, 2
      %s26 = sadd.s32 %s19, 1
      %s27 = ssub.s32 %s19, %s26
      %p28 = scmp.eq.s32.totalorder %s27, 0
      %s30 = sadd.s32 %s29, 1
      %s31 = scalar_select %p28, %s29, %s30
      %p34 = pneg %p28
      %p35 = scmp.eq.s32.totalorder %s19, 1
      %p36 = por %p34, %p35
      %p37 = scmp.ne.s32.totalorder %s29, %s32
      %p38 = scmp.eq.s32.totalorder %s19, 0
      %p39 = por %p37, %p38
      %p40 = scmp.ne.s32.totalorder %s29, %s32
      %p41 = scmp.eq.s32.totalorder %s24, 1
      %p42 = por %p40, %p41
      %p43 = scmp.ne.s32.totalorder %s32, %s33
      %p44 = scmp.eq.s32.totalorder %s24, 0
      %p45 = por %p43, %p44
      %p46 = scmp.ne.s32.totalorder %s32, %s33
      %p47 = scmp.eq.s32.totalorder %s25, 1
      %p48 = por %p46, %p47
      %p50 = scmp.ne.s32.totalorder %s33, %s49
      %p51 = scmp.eq.s32.totalorder %s25, 0
      %p52 = por %p50, %p51
      %s54 = sadd.s32 %s53, 1
      %p57 = scmp.eq.s32.totalorder %s19, 1
      %p58 = scmp.ne.s32.totalorder %s53, %s55
      %p59 = scmp.eq.s32.totalorder %s19, 0
      %p60 = por %p58, %p59
      %p61 = scmp.ne.s32.totalorder %s53, %s55
      %p62 = scmp.eq.s32.totalorder %s24, 1
      %p63 = por %p61, %p62
      %p64 = scmp.ne.s32.totalorder %s55, %s56
      %p65 = scmp.eq.s32.totalorder %s24, 0
      %p66 = por %p64, %p65
      %p67 = scmp.ne.s32.totalorder %s55, %s56
      %p68 = scmp.eq.s32.totalorder %s25, 1
      %p69 = por %p67, %p68
      %p71 = scmp.ne.s32.totalorder %s56, %s70
      %p72 = scmp.eq.s32.totalorder %s25, 0
      %p73 = por %p71, %p72
      %s75 = sadd.s32 %s74, 1
      %p78 = scmp.eq.s32.totalorder %s19, 1
      %p79 = scmp.ne.s32.totalorder %s74, %s76
      %p80 = scmp.eq.s32.totalorder %s19, 0
      %p81 = por %p79, %p80
      %p82 = scmp.ne.s32.totalorder %s74, %s76
      %p83 = scmp.eq.s32.totalorder %s24, 1
      %p84 = por %p82, %p83
      %p85 = scmp.ne.s32.totalorder %s76, %s77
      %p86 = scmp.eq.s32.totalorder %s24, 0
      %p87 = por %p85, %p86
      %p88 = scmp.ne.s32.totalorder %s76, %s77
      %p89 = scmp.eq.s32.totalorder %s25, 1
      %p90 = por %p88, %p89
      %p92 = scmp.ne.s32.totalorder %s77, %s91
      %p93 = scmp.eq.s32.totalorder %s25, 0
      %p94 = por %p92, %p93
      %s96 = sadd.s32 %s95, 1
      %p99 = scmp.eq.s32.totalorder %s19, 1
      %p100 = scmp.ne.s32.totalorder %s95, %s97
      %p101 = scmp.eq.s32.totalorder %s19, 0
      %p102 = por %p100, %p101
      %p103 = scmp.ne.s32.totalorder %s95, %s97
      %p104 = scmp.eq.s32.totalorder %s24, 1
      %p105 = por %p103, %p104
      %p106 = scmp.ne.s32.totalorder %s97, %s98
      %p107 = scmp.eq.s32.totalorder %s24, 0
      %p108 = por %p106, %p107
      %p109 = scmp.ne.s32.totalorder %s97, %s98
      %p110 = scmp.eq.s32.totalorder %s25, 1
      %p111 = por %p109, %p110
      %p113 = scmp.ne.s32.totalorder %s98, %s112
      %p114 = scmp.eq.s32.totalorder %s25, 0
      %p115 = por %p113, %p114
      %s117 = sadd.s32 %s116, 1
      %p120 = scmp.eq.s32.totalorder %s19, 1
      %p121 = scmp.ne.s32.totalorder %s116, %s118
      %p122 = scmp.eq.s32.totalorder %s19, 0
      %p123 = por %p121, %p122
      %p124 = scmp.ne.s32.totalorder %s116, %s118
      %p125 = scmp.eq.s32.totalorder %s24, 1
      %p126 = por %p124, %p125
      %p127 = scmp.ne.s32.totalorder %s118, %s119
      %p128 = scmp.eq.s32.totalorder %s24, 0
      %p129 = por %p127, %p128
      %p130 = scmp.ne.s32.totalorder %s118, %s119
      %p131 = scmp.eq.s32.totalorder %s25, 1
      %p132 = por %p130, %p131
      %p134 = scmp.ne.s32.totalorder %s119, %s133
      %p135 = scmp.eq.s32.totalorder %s25, 0
      %p136 = por %p134, %p135
      %s138 = sadd.s32 %s137, 1
      %p141 = scmp.eq.s32.totalorder %s19, 1
      %p142 = scmp.ne.s32.totalorder %s137, %s139
      %p143 = scmp.eq.s32.totalorder %s19, 0
      %p144 = por %p142, %p143
      %p145 = scmp.ne.s32.totalorder %s137, %s139
      %p146 = scmp.eq.s32.totalorder %s24, 1
      %p147 = por %p145, %p146
      %p148 = scmp.ne.s32.totalorder %s139, %s140
      %p149 = scmp.eq.s32.totalorder %s24, 0
      %p150 = por %p148, %p149
      %p151 = scmp.ne.s32.totalorder %s139, %s140
      %p152 = scmp.eq.s32.totalorder %s25, 1
      %p153 = por %p151, %p152
      %p155 = scmp.ne.s32.totalorder %s140, %s154
      %p156 = scmp.eq.s32.totalorder %s25, 0
      %p157 = por %p155, %p156
      %s159 = sadd.s32 %s158, 1
      %p162 = scmp.eq.s32.totalorder %s19, 1
      %p163 = scmp.ne.s32.totalorder %s158, %s160
      %p164 = scmp.eq.s32.totalorder %s19, 0
      %p165 = por %p163, %p164
      %p166 = scmp.ne.s32.totalorder %s158, %s160
      %p167 = scmp.eq.s32.totalorder %s24, 1
      %p168 = por %p166, %p167
      %p169 = scmp.ne.s32.totalorder %s160, %s161
      %p170 = scmp.eq.s32.totalorder %s24, 0
      %p171 = por %p169, %p170
      %p172 = scmp.ne.s32.totalorder %s160, %s161
      %p173 = scmp.eq.s32.totalorder %s25, 1
      %p174 = por %p172, %p173
      %p176 = scmp.ne.s32.totalorder %s161, %s175
      %p177 = scmp.eq.s32.totalorder %s25, 0
      %p178 = por %p176, %p177
      %s180 = sadd.s32 %s179, 1
      %p183 = scmp.eq.s32.totalorder %s19, 1
      %p184 = scmp.ne.s32.totalorder %s179, %s181
      %p185 = scmp.eq.s32.totalorder %s19, 0
      %p186 = por %p184, %p185
      %p187 = scmp.ne.s32.totalorder %s179, %s181
      %p188 = scmp.eq.s32.totalorder %s24, 1
      %p189 = por %p187, %p188
      %p190 = scmp.ne.s32.totalorder %s181, %s182
      %p191 = scmp.eq.s32.totalorder %s24, 0
      %p192 = por %p190, %p191
      %p193 = scmp.ne.s32.totalorder %s181, %s182
      %p194 = scmp.eq.s32.totalorder %s25, 1
      %p195 = por %p193, %p194
      %p197 = scmp.ne.s32.totalorder %s182, %s196
      %p198 = scmp.eq.s32.totalorder %s25, 0
      %p199 = por %p197, %p198
      %s201 = sadd.s32 %s200, 1
      %p204 = scmp.eq.s32.totalorder %s19, 1
      %p205 = scmp.ne.s32.totalorder %s200, %s202
      %p206 = scmp.eq.s32.totalorder %s19, 0
      %p207 = por %p205, %p206
      %p208 = scmp.ne.s32.totalorder %s200, %s202
      %p209 = scmp.eq.s32.totalorder %s24, 1
      %p210 = por %p208, %p209
      %p211 = scmp.ne.s32.totalorder %s202, %s203
      %p212 = scmp.eq.s32.totalorder %s24, 0
      %p213 = por %p211, %p212
      %p214 = scmp.ne.s32.totalorder %s202, %s203
      %p215 = scmp.eq.s32.totalorder %s25, 1
      %p216 = por %p214, %p215
      %p218 = scmp.ne.s32.totalorder %s203, %s217
      %p219 = scmp.eq.s32.totalorder %s25, 0
      %p220 = por %p218, %p219
      %s222 = sadd.s32 %s221, 1
      %p225 = scmp.eq.s32.totalorder %s19, 1
      %p226 = scmp.ne.s32.totalorder %s221, %s223
      %p227 = scmp.eq.s32.totalorder %s19, 0
      %p228 = por %p226, %p227
      %p229 = scmp.ne.s32.totalorder %s221, %s223
      %p230 = scmp.eq.s32.totalorder %s24, 1
      %p231 = por %p229, %p230
      %p232 = scmp.ne.s32.totalorder %s223, %s224
      %p233 = scmp.eq.s32.totalorder %s24, 0
      %p234 = por %p232, %p233
      %p235 = scmp.ne.s32.totalorder %s223, %s224
      %p236 = scmp.eq.s32.totalorder %s25, 1
      %p237 = por %p235, %p236
      %p239 = scmp.ne.s32.totalorder %s224, %s238
      %p240 = scmp.eq.s32.totalorder %s25, 0
      %p241 = por %p239, %p240
      %s243 = sadd.s32 %s242, 1
      %p246 = scmp.eq.s32.totalorder %s19, 1
      %p247 = scmp.ne.s32.totalorder %s242, %s244
      %p248 = scmp.eq.s32.totalorder %s19, 0
      %p249 = por %p247, %p248
      %p250 = scmp.ne.s32.totalorder %s242, %s244
      %p251 = scmp.eq.s32.totalorder %s24, 1
      %p252 = por %p250, %p251
      %p253 = scmp.ne.s32.totalorder %s244, %s245
      %p254 = scmp.eq.s32.totalorder %s24, 0
      %p255 = por %p253, %p254
      %p256 = scmp.ne.s32.totalorder %s244, %s245
      %p257 = scmp.eq.s32.totalorder %s25, 1
      %p258 = por %p256, %p257
      %p260 = scmp.ne.s32.totalorder %s245, %s259
      %p261 = scmp.eq.s32.totalorder %s25, 0
      %p262 = por %p260, %p261
      %p263 = scmp.le.s32.totalorder 1, %s19
      %p264 = scmp.lt.s32.totalorder %s19, 3
      %p265 = pnand %p263, %p264
      %p266 = pneg %p265
      // Predicated region
      $region9: #{forward.1} parent=5 // pred_check
        _
      $region10: #{forward.1} parent=5 // pred_check_branch
        %268 = sbr.rel (%p265) target = $region12
      $region11: #{forward.1} parent=5 // pred_region
        %s269 = ssub.s32 %s19, 1
        // Predicated region
        $region13: #{forward.1} parent=11 // pred_check
          %p270 = pneg %p66
        $region14: #{forward.1} parent=11 // pred_check_branch
          %272 = sbr.rel (%p270) target = $region16
        $region15: #{forward.1} parent=11 // pred_region
          %s274 = ssub.s32 8192, 8192
          %275 = vsyncadd [#allocation6], %s274
          %s276 = sshll.u32 [#allocation5], 4
          %s277 = int_to_ptr.vmem [resolvable:$true] %s276
          %282 = dma.hbm_to_vmem [thread:$0]  %s1, 8192, %s277, [#allocation6], 512, 512, 32
        $region16: #{forward.1} parent=11 // pred_fallthru
          _
        // Predicated region
        $region17: #{forward.1} parent=11 // pred_check
          %p283 = pneg %p87
        $region18: #{forward.1} parent=11 // pred_check_branch
          %285 = sbr.rel (%p283) target = $region20
        $region19: #{forward.1} parent=11 // pred_region
          %s287 = ssub.s32 8192, 8192
          %288 = vsyncadd [#allocation8], %s287
          %s289 = sshll.u32 [#allocation7], 4
          %s290 = int_to_ptr.vmem [resolvable:$true] %s289
          %295 = dma.hbm_to_vmem [thread:$0]  %s2, 8192, %s290, [#allocation8], 512, 512, 32
        $region20: #{forward.1} parent=11 // pred_fallthru
          _
        // Predicated region
        $region21: #{forward.1} parent=11 // pred_check
          %p296 = pneg %p108
        $region22: #{forward.1} parent=11 // pred_check_branch
          %298 = sbr.rel (%p296) target = $region24
        $region23: #{forward.1} parent=11 // pred_region
          _
        $region24: #{forward.1} parent=11 // pred_fallthru
          _
        // Predicated region
        $region25: #{forward.1} parent=11 // pred_check
          %p299 = pneg %p129
        $region26: #{forward.1} parent=11 // pred_check_branch
          %301 = sbr.rel (%p299) target = $region28
        $region27: #{forward.1} parent=11 // pred_region
          %s303 = ssub.s32 16384, 16384
          %304 = vsyncadd [#allocation8], %s303
          %s305 = sshll.u32 [#allocation9], 4
          %s306 = int_to_ptr.vmem [resolvable:$true] %s305
          %311 = dma.hbm_to_vmem [thread:$0]  %s4, 16384, %s306, [#allocation8], 512, 512, 32
        $region28: #{forward.1} parent=11 // pred_fallthru
          _
        // Predicated region
        $region29: #{forward.1} parent=11 // pred_check
          %p312 = pneg %p150
        $region30: #{forward.1} parent=11 // pred_check_branch
          %314 = sbr.rel (%p312) target = $region32
        $region31: #{forward.1} parent=11 // pred_region
          _
        $region32: #{forward.1} parent=11 // pred_fallthru
          _
        // Predicated region
        $region33: #{forward.1} parent=11 // pred_check
          %p315 = pneg %p171
        $region34: #{forward.1} parent=11 // pred_check_branch
          %317 = sbr.rel (%p315) target = $region36
        $region35: #{forward.1} parent=11 // pred_region
          %s319 = ssub.s32 16384, 16384
          %320 = vsyncadd [#allocation11], %s319
          %s321 = sshll.u32 [#allocation10], 4
          %s322 = int_to_ptr.vmem [resolvable:$true] %s321
          %327 = dma.hbm_to_vmem [thread:$0]  %s6, 16384, %s322, [#allocation11], 512, 512, 32
        $region36: #{forward.1} parent=11 // pred_fallthru
          _
        // Predicated region
        $region37: #{forward.1} parent=11 // pred_check
          %p328 = pneg %p192
        $region38: #{forward.1} parent=11 // pred_check_branch
          %330 = sbr.rel (%p328) target = $region40
        $region39: #{forward.1} parent=11 // pred_region
          _
        $region40: #{forward.1} parent=11 // pred_fallthru
          _
        // Predicated region
        $region41: #{forward.1} parent=11 // pred_check
          %p331 = pneg %p213
        $region42: #{forward.1} parent=11 // pred_check_branch
          %333 = sbr.rel (%p331) target = $region44
        $region43: #{forward.1} parent=11 // pred_region
          _
        $region44: #{forward.1} parent=11 // pred_fallthru
          _
        // Predicated region
        $region45: #{forward.1} parent=11 // pred_check
          %p334 = pneg %p234
        $region46: #{forward.1} parent=11 // pred_check_branch
          %336 = sbr.rel (%p334) target = $region48
        $region47: #{forward.1} parent=11 // pred_region
          _
        $region48: #{forward.1} parent=11 // pred_fallthru
          _
      $region12: #{forward.1} parent=5 // pred_fallthru
        _
      %p337 = scmp.lt.s32.totalorder %s19, 2
      // Predicated region
      $region49: #{forward.1} parent=5 // pred_check
        %p338 = pneg %p337
      $region50: #{forward.1} parent=5 // pred_check_branch
        %340 = sbr.rel (%p338) target = $region52
      $region51: #{forward.1} parent=5 // pred_region
        // Predicated region
        $region53: #{forward.1} parent=51 // pred_check
          %p341 = pneg %p39
        $region54: #{forward.1} parent=51 // pred_check_branch
          %343 = sbr.rel (%p341) target = $region56
        $region55: #{forward.1} parent=51 // pred_region
          %s344 = smul.u32 4, %s19
          %p345 = scmp.lt.s32.totalorder %s344, 7
          %s346 = scalar_select %p345, %s344, 7
          %s347 = smul.addr %s346, 8
          %s348 = scalar_lea.vmem %s0, %s347
          %s349 = smul.u32 4, %s19
        $region56: #{forward.1} parent=51 // pred_fallthru
          _
      $region52: #{forward.1} parent=5 // pred_fallthru
        _
      %p350 = scmp.le.s32.totalorder 1, %s19
      %p351 = scmp.lt.s32.totalorder %s19, 3
      %p352 = pnand %p350, %p351
      %p353 = pneg %p352
      // Predicated region
      $region57: #{forward.1} parent=5 // pred_check
        _
      $region58: #{forward.1} parent=5 // pred_check_branch
        %355 = sbr.rel (%p352) target = $region60
      $region59: #{forward.1} parent=5 // pred_region
        %s356 = ssub.s32 %s19, 1
        // Predicated region
        $region61: #{forward.1} parent=59 // pred_check
          %p357 = pneg %p66
        $region62: #{forward.1} parent=59 // pred_check_branch
          %359 = sbr.rel (%p357) target = $region64
        $region63: #{forward.1} parent=59 // pred_region
          %360 = dma.done [#allocation6], 8192
        $region64: #{forward.1} parent=59 // pred_fallthru
          _
        // Predicated region
        $region65: #{forward.1} parent=59 // pred_check
          %p361 = pneg %p87
        $region66: #{forward.1} parent=59 // pred_check_branch
          %363 = sbr.rel (%p361) target = $region68
        $region67: #{forward.1} parent=59 // pred_region
          %364 = dma.done [#allocation8], 8192
        $region68: #{forward.1} parent=59 // pred_fallthru
          _
        // Predicated region
        $region69: #{forward.1} parent=59 // pred_check
          %p365 = pneg %p129
        $region70: #{forward.1} parent=59 // pred_check_branch
          %367 = sbr.rel (%p365) target = $region72
        $region71: #{forward.1} parent=59 // pred_region
          %368 = dma.done [#allocation8], 16384
        $region72: #{forward.1} parent=59 // pred_fallthru
          _
        // Predicated region
        $region73: #{forward.1} parent=59 // pred_check
          %p369 = pneg %p171
        $region74: #{forward.1} parent=59 // pred_check_branch
          %371 = sbr.rel (%p369) target = $region76
        $region75: #{forward.1} parent=59 // pred_region
          %372 = dma.done [#allocation11], 16384
        $region76: #{forward.1} parent=59 // pred_fallthru
          _
        %s373 = smul.u32 4, %s24
        %p374 = scmp.lt.s32.totalorder %s373, 7
        %s375 = scalar_select %p374, %s373, 7
        %s376 = smul.addr %s375, 8
        %s377 = scalar_lea.vmem %s0, %s376
        %p378 = pneg %p45
        %p379 = pneg %p42
        %p380 = pneg %p66
        %p381 = pneg %p63
        %p382 = pneg %p87
        %p383 = pneg %p84
        %p384 = pneg %p108
        %p385 = pneg %p105
        %p386 = pneg %p129
        %p387 = pneg %p126
        %p388 = pneg %p150
        %p389 = pneg %p147
        %p390 = pneg %p171
        %p391 = pneg %p168
        %p392 = pneg %p192
        %p393 = pneg %p189
        %p394 = pneg %p213
        %p395 = pneg %p210
        %p396 = pneg %p234
        %p397 = pneg %p231
        %p398 = pneg %p255
        %p399 = pneg %p252
        %s400 = smul.u32 4, %s24
        %p401 = scmp.lt.s32.totalorder %s400, 7
        %s402 = scalar_select %p401, %s400, 7
        %s403 = smul.addr %s402, 8
        %s404 = scalar_lea.vmem %s0, %s403
        %s405 = smul.u32 4, %s24
        %p406 = scmp.eq.s32.totalorder %s24, 0
        // Predicated region
        $region77: #{forward.1} parent=59 // pred_check
          %p407 = pneg %p406
        $region78: #{forward.1} parent=59 // pred_check_branch
          %409 = sbr.rel (%p407) target = $region80
        $region79: #{forward.1} parent=59 // pred_region
          %410 = vst [vmem:[#allocation3] sm:$0xff] 0.0
          %411 = vst [vmem:[#allocation3 + $0x8] sm:$0xff] 0.0
          %412 = vst [vmem:[#allocation3 + $0x10] sm:$0xff] 0.0
          %413 = vst [vmem:[#allocation4] sm:$0xff] 0.0
          %414 = vst [vmem:[#allocation4 + $0x8] sm:$0xff] 0.0
          %415 = vst [vmem:[#allocation4 + $0x10] sm:$0xff] 0.0
        $region80: #{forward.1} parent=59 // pred_fallthru
          _
        %v416 = vld [vmem:[%s404] sm:$0xff]
        %v417 = vld [vmem:[%s404 + $0x8] sm:$0xff]
        %v418 = vld [vmem:[%s404 + $0x10] sm:$0xff]
        %v419 = vld [vmem:[%s404 + $0x18] sm:$0xff]
        %v420 = vld [vmem:[#allocation5] sm:$0xff]
        %v421 = vld [vmem:[#allocation5 + $0x8] sm:$0xff]
        %v422 = vld [vmem:[#allocation5 + $0x10] sm:$0xff]
        %v423 = vld [vmem:[#allocation5 + $0x18] sm:$0xff]
        %v424 = vld [vmem:[#allocation5 + $0x20] sm:$0xff]
        %v425 = vld [vmem:[#allocation5 + $0x28] sm:$0xff]
        %v426 = vld [vmem:[#allocation5 + $0x30] sm:$0xff]
        %v427 = vld [vmem:[#allocation5 + $0x38] sm:$0xff]
        %v428 = vld [vmem:[#allocation5 + $0x40] sm:$0xff]
        %v429 = vld [vmem:[#allocation5 + $0x48] sm:$0xff]
        %v430 = vld [vmem:[#allocation5 + $0x50] sm:$0xff]
        %v431 = vld [vmem:[#allocation5 + $0x58] sm:$0xff]
        %v432 = vld [vmem:[#allocation5 + $0x60] sm:$0xff]
        %v433 = vld [vmem:[#allocation5 + $0x68] sm:$0xff]
        %v434 = vld [vmem:[#allocation5 + $0x70] sm:$0xff]
        %v435 = vld [vmem:[#allocation5 + $0x78] sm:$0xff]
        %v436 = vld [vmem:[#allocation5 + $0x80] sm:$0xff]
        %v437 = vld [vmem:[#allocation5 + $0x88] sm:$0xff]
        %v438 = vld [vmem:[#allocation5 + $0x90] sm:$0xff]
        %v439 = vld [vmem:[#allocation5 + $0x98] sm:$0xff]
        %v440 = vld [vmem:[#allocation5 + $0xa0] sm:$0xff]
        %v441 = vld [vmem:[#allocation5 + $0xa8] sm:$0xff]
        %v442 = vld [vmem:[#allocation5 + $0xb0] sm:$0xff]
        %v443 = vld [vmem:[#allocation5 + $0xb8] sm:$0xff]
        %v444 = vld [vmem:[#allocation5 + $0xc0] sm:$0xff]
        %v445 = vld [vmem:[#allocation5 + $0xc8] sm:$0xff]
        %v446 = vld [vmem:[#allocation5 + $0xd0] sm:$0xff]
        %v447 = vld [vmem:[#allocation5 + $0xd8] sm:$0xff]
        %v448 = vld [vmem:[#allocation5 + $0xe0] sm:$0xff]
        %v449 = vld [vmem:[#allocation5 + $0xe8] sm:$0xff]
        %v450 = vld [vmem:[#allocation5 + $0xf0] sm:$0xff]
        %v451 = vld [vmem:[#allocation5 + $0xf8] sm:$0xff]
        %v452 = vld [vmem:[#allocation5 + $0x100] sm:$0xff]
        %v453 = vld [vmem:[#allocation5 + $0x108] sm:$0xff]
        %v454 = vld [vmem:[#allocation5 + $0x110] sm:$0xff]
        %v455 = vld [vmem:[#allocation5 + $0x118] sm:$0xff]
        %v456 = vld [vmem:[#allocation5 + $0x120] sm:$0xff]
        %v457 = vld [vmem:[#allocation5 + $0x128] sm:$0xff]
        %v458 = vld [vmem:[#allocation5 + $0x130] sm:$0xff]
        %v459 = vld [vmem:[#allocation5 + $0x138] sm:$0xff]
        %v460 = vld [vmem:[#allocation5 + $0x140] sm:$0xff]
        %v461 = vld [vmem:[#allocation5 + $0x148] sm:$0xff]
        %v462 = vld [vmem:[#allocation5 + $0x150] sm:$0xff]
        %v463 = vld [vmem:[#allocation5 + $0x158] sm:$0xff]
        %v464 = vld [vmem:[#allocation5 + $0x160] sm:$0xff]
        %v465 = vld [vmem:[#allocation5 + $0x168] sm:$0xff]
        %v466 = vld [vmem:[#allocation5 + $0x170] sm:$0xff]
        %v467 = vld [vmem:[#allocation5 + $0x178] sm:$0xff]
        %v468 = vld [vmem:[#allocation5 + $0x180] sm:$0xff]
        %v469 = vld [vmem:[#allocation5 + $0x188] sm:$0xff]
        %v470 = vld [vmem:[#allocation5 + $0x190] sm:$0xff]
        %v471 = vld [vmem:[#allocation5 + $0x198] sm:$0xff]
        %v472 = vld [vmem:[#allocation5 + $0x1a0] sm:$0xff]
        %v473 = vld [vmem:[#allocation5 + $0x1a8] sm:$0xff]
        %v474 = vld [vmem:[#allocation5 + $0x1b0] sm:$0xff]
        %v475 = vld [vmem:[#allocation5 + $0x1b8] sm:$0xff]
        %v476 = vld [vmem:[#allocation5 + $0x1c0] sm:$0xff]
        %v477 = vld [vmem:[#allocation5 + $0x1c8] sm:$0xff]
        %v478 = vld [vmem:[#allocation5 + $0x1d0] sm:$0xff]
        %v479 = vld [vmem:[#allocation5 + $0x1d8] sm:$0xff]
        %v480 = vld [vmem:[#allocation5 + $0x1e0] sm:$0xff]
        %v481 = vld [vmem:[#allocation5 + $0x1e8] sm:$0xff]
        %v482 = vld [vmem:[#allocation5 + $0x1f0] sm:$0xff]
        %v483 = vld [vmem:[#allocation5 + $0x1f8] sm:$0xff]
        %v484 = vld [vmem:[%s3] sm:$0xf]
        %v486 = vlaneseq
        %v487 = vshrl.u32 %v486, 7
        %v488 = vsub.s32 0, %v487
        %v489 = vrot.slane %v484, %v488
        %v490 = vlaneseq
        %v491 = vshrl.u32 %v490, 7
        %v492 = vsub.s32 1, %v491
        %v493 = vrot.slane %v484, %v492
        %v494 = vlaneseq
        %v495 = vshrl.u32 %v494, 7
        %v496 = vsub.s32 2, %v495
        %v497 = vrot.slane %v484, %v496
        %v498 = vlaneseq
        %v499 = vshrl.u32 %v498, 7
        %v500 = vsub.s32 3, %v499
        %v501 = vrot.slane %v484, %v500
        %506 = vmatprep.subr.mxu0 %v421
        %507 = vmatpush1.msra.mxu0 %v420
        %508 = vmatprep.subr.mxu0 %v425
        %509 = vmatpush1.msra.mxu0 %v424
        %510 = vmatprep.subr.mxu0 %v429
        %511 = vmatpush1.msra.mxu0 %v428
        %512 = vmatprep.subr.mxu0 %v433
        %513 = vmatpush1.msra.mxu0 %v432
        %514 = vmatprep.subr.mxu0 %v437
        %515 = vmatpush1.msra.mxu0 %v436
        %516 = vmatprep.subr.mxu0 %v441
        %517 = vmatpush1.msra.mxu0 %v440
        %518 = vmatprep.subr.mxu0 %v445
        %519 = vmatpush1.msra.mxu0 %v444
        %520 = vmatprep.subr.mxu0 %v449
        %521 = vmatpush1.msra.mxu0 %v448
        %522 = vmatprep.subr.mxu0 %v453
        %523 = vmatpush1.msra.mxu0 %v452
        %524 = vmatprep.subr.mxu0 %v457
        %525 = vmatpush1.msra.mxu0 %v456
        %526 = vmatprep.subr.mxu0 %v461
        %527 = vmatpush1.msra.mxu0 %v460
        %528 = vmatprep.subr.mxu0 %v465
        %529 = vmatpush1.msra.mxu0 %v464
        %530 = vmatprep.subr.mxu0 %v469
        %531 = vmatpush1.msra.mxu0 %v468
        %532 = vmatprep.subr.mxu0 %v473
        %533 = vmatpush1.msra.mxu0 %v472
        %534 = vmatprep.subr.mxu0 %v477
        %535 = vmatpush1.msra.mxu0 %v476
        %536 = vmatprep.subr.mxu0 %v481
        %537 = vmatpush1.msra.mxu0 %v480
        %538 = vmatprep.subr.mxu0 0.0
        %539 = vmatpush1.msra.mxu0 0.0
        %540 = vmatprep.subr.mxu0 0.0
        %541 = vmatpush1.msra.mxu0 0.0
        %542 = vmatprep.subr.mxu0 0.0
        %543 = vmatpush1.msra.mxu0 0.0
        %544 = vmatprep.subr.mxu0 0.0
        %545 = vmatpush1.msra.mxu0 0.0
        %546 = vmatprep.subr.mxu0 0.0
        %547 = vmatpush1.msra.mxu0 0.0
        %548 = vmatprep.subr.mxu0 0.0
        %549 = vmatpush1.msra.mxu0 0.0
        %550 = vmatprep.subr.mxu0 0.0
        %551 = vmatpush1.msra.mxu0 0.0
        %552 = vmatprep.subr.mxu0 0.0
        %553 = vmatpush1.msra.mxu0 0.0
        %554 = vmatprep.subr.mxu0 0.0
        %555 = vmatpush1.msra.mxu0 0.0
        %556 = vmatprep.subr.mxu0 0.0
        %557 = vmatpush1.msra.mxu0 0.0
        %558 = vmatprep.subr.mxu0 0.0
        %559 = vmatpush1.msra.mxu0 0.0
        %560 = vmatprep.subr.mxu0 0.0
        %561 = vmatpush1.msra.mxu0 0.0
        %562 = vmatprep.subr.mxu0 0.0
        %563 = vmatpush1.msra.mxu0 0.0
        %564 = vmatprep.subr.mxu0 0.0
        %565 = vmatpush1.msra.mxu0 0.0
        %566 = vmatprep.subr.mxu0 0.0
        %567 = vmatpush1.msra.mxu0 0.0
        %568 = vmatprep.subr.mxu0 0.0
        %569 = vmatpush1.msra.mxu0 0.0
        %570 = vmatprep.mubr.f32.mxu0 0.0
        %571 = vmatmul.mubr.f32.gmra.mrb[0].mxu0 %v416
        %v572 = vpop.f32.mrb[0].mxu0
        %v573 = vadd.f32 %v489, %v572
        %v574 = vpop.f32.mrb[0].mxu0
        %v575 = vadd.f32 %v493, %v574
        %576 = vmatprep.mubr.f32.mxu0 0.0
        %577 = vmatmul.mubr.f32.gmra.mrb[0].mxu0 %v417
        %v578 = vpop.f32.mrb[0].mxu0
        %v579 = vadd.f32 %v489, %v578
        %v580 = vpop.f32.mrb[0].mxu0
        %v581 = vadd.f32 %v493, %v580
        %582 = vmatprep.mubr.f32.mxu0 0.0
        %583 = vmatmul.mubr.f32.gmra.mrb[0].mxu0 %v418
        %v584 = vpop.f32.mrb[0].mxu0
        %v585 = vadd.f32 %v489, %v584
        %v586 = vpop.f32.mrb[0].mxu0
        %v587 = vadd.f32 %v493, %v586
        %588 = vmatprep.mubr.f32.mxu0 0.0
        %589 = vmatmul.mubr.f32.gmra.mrb[0].mxu0 %v419
        %v590 = vpop.f32.mrb[0].mxu0
        %v591 = vadd.f32 %v489, %v590
        %v592 = vpop.f32.mrb[0].mxu0
        %v593 = vadd.f32 %v493, %v592
        %594 = vdwg.mxu0
        %595 = vmatprep.subr.mxu0 %v423
        %596 = vmatpush1.msra.mxu0 %v422
        %597 = vmatprep.subr.mxu0 %v427
        %598 = vmatpush1.msra.mxu0 %v426
        %599 = vmatprep.subr.mxu0 %v431
        %600 = vmatpush1.msra.mxu0 %v430
        %601 = vmatprep.subr.mxu0 %v435
        %602 = vmatpush1.msra.mxu0 %v434
        %603 = vmatprep.subr.mxu0 %v439
        %604 = vmatpush1.msra.mxu0 %v438
        %605 = vmatprep.subr.mxu0 %v443
        %606 = vmatpush1.msra.mxu0 %v442
        %607 = vmatprep.subr.mxu0 %v447
        %608 = vmatpush1.msra.mxu0 %v446
        %609 = vmatprep.subr.mxu0 %v451
        %610 = vmatpush1.msra.mxu0 %v450
        %611 = vmatprep.subr.mxu0 %v455
        %612 = vmatpush1.msra.mxu0 %v454
        %613 = vmatprep.subr.mxu0 %v459
        %614 = vmatpush1.msra.mxu0 %v458
        %615 = vmatprep.subr.mxu0 %v463
        %616 = vmatpush1.msra.mxu0 %v462
        %617 = vmatprep.subr.mxu0 %v467
        %618 = vmatpush1.msra.mxu0 %v466
        %619 = vmatprep.subr.mxu0 %v471
        %620 = vmatpush1.msra.mxu0 %v470
        %621 = vmatprep.subr.mxu0 %v475
        %622 = vmatpush1.msra.mxu0 %v474
        %623 = vmatprep.subr.mxu0 %v479
        %624 = vmatpush1.msra.mxu0 %v478
        %625 = vmatprep.subr.mxu0 %v483
        %626 = vmatpush1.msra.mxu0 %v482
        %627 = vmatprep.subr.mxu0 0.0
        %628 = vmatpush1.msra.mxu0 0.0
        %629 = vmatprep.subr.mxu0 0.0
        %630 = vmatpush1.msra.mxu0 0.0
        %631 = vmatprep.subr.mxu0 0.0
        %632 = vmatpush1.msra.mxu0 0.0
        %633 = vmatprep.subr.mxu0 0.0
        %634 = vmatpush1.msra.mxu0 0.0
        %635 = vmatprep.subr.mxu0 0.0
        %636 = vmatpush1.msra.mxu0 0.0
        %637 = vmatprep.subr.mxu0 0.0
        %638 = vmatpush1.msra.mxu0 0.0
        %639 = vmatprep.subr.mxu0 0.0
        %640 = vmatpush1.msra.mxu0 0.0
        %641 = vmatprep.subr.mxu0 0.0
        %642 = vmatpush1.msra.mxu0 0.0
        %643 = vmatprep.subr.mxu0 0.0
        %644 = vmatpush1.msra.mxu0 0.0
        %645 = vmatprep.subr.mxu0 0.0
        %646 = vmatpush1.msra.mxu0 0.0
        %647 = vmatprep.subr.mxu0 0.0
        %648 = vmatpush1.msra.mxu0 0.0
        %649 = vmatprep.subr.mxu0 0.0
        %650 = vmatpush1.msra.mxu0 0.0
        %651 = vmatprep.subr.mxu0 0.0
        %652 = vmatpush1.msra.mxu0 0.0
        %653 = vmatprep.subr.mxu0 0.0
        %654 = vmatpush1.msra.mxu0 0.0
        %655 = vmatprep.subr.mxu0 0.0
        %656 = vmatpush1.msra.mxu0 0.0
        %657 = vmatprep.subr.mxu0 0.0
        %658 = vmatpush1.msra.mxu0 0.0
        %659 = vmatprep.mubr.f32.mxu0 0.0
        %660 = vmatmul.mubr.f32.gmra.mrb[0].mxu0 %v416
        %v661 = vpop.f32.mrb[0].mxu0
        %v662 = vadd.f32 %v497, %v661
        %v663 = vpop.f32.mrb[0].mxu0
        %v664 = vadd.f32 %v501, %v663
        %665 = vmatprep.mubr.f32.mxu0 0.0
        %666 = vmatmul.mubr.f32.gmra.mrb[0].mxu0 %v417
        %v667 = vpop.f32.mrb[0].mxu0
        %v668 = vadd.f32 %v497, %v667
        %v669 = vpop.f32.mrb[0].mxu0
        %v670 = vadd.f32 %v501, %v669
        %671 = vmatprep.mubr.f32.mxu0 0.0
        %672 = vmatmul.mubr.f32.gmra.mrb[0].mxu0 %v418
        %v673 = vpop.f32.mrb[0].mxu0
        %v674 = vadd.f32 %v497, %v673
        %v675 = vpop.f32.mrb[0].mxu0
        %v676 = vadd.f32 %v501, %v675
        %677 = vmatprep.mubr.f32.mxu0 0.0
        %678 = vmatmul.mubr.f32.gmra.mrb[0].mxu0 %v419
        %v679 = vpop.f32.mrb[0].mxu0
        %v680 = vadd.f32 %v497, %v679
        %v681 = vpop.f32.mrb[0].mxu0
        %v682 = vadd.f32 %v501, %v681
        %683 = vdwg.mxu0
        %684 = vst [vmem:[#allocation2] sm:$0xff] %v573
        %685 = vst [vmem:[#allocation2 + $0x8] sm:$0xff] %v575
        %686 = vst [vmem:[#allocation2 + $0x10] sm:$0xff] %v662
        %687 = vst [vmem:[#allocation2 + $0x18] sm:$0xff] %v664
        %688 = vst [vmem:[#allocation2 + $0x20] sm:$0xff] %v579
        %689 = vst [vmem:[#allocation2 + $0x28] sm:$0xff] %v581
        %690 = vst [vmem:[#allocation2 + $0x30] sm:$0xff] %v668
        %691 = vst [vmem:[#allocation2 + $0x38] sm:$0xff] %v670
        %692 = vst [vmem:[#allocation2 + $0x40] sm:$0xff] %v585
        %693 = vst [vmem:[#allocation2 + $0x48] sm:$0xff] %v587
        %694 = vst [vmem:[#allocation2 + $0x50] sm:$0xff] %v674
        %695 = vst [vmem:[#allocation2 + $0x58] sm:$0xff] %v676
        %696 = vst [vmem:[#allocation2 + $0x60] sm:$0xff] %v591
        %697 = vst [vmem:[#allocation2 + $0x68] sm:$0xff] %v593
        %698 = vst [vmem:[#allocation2 + $0x70] sm:$0xff] %v680
        %699 = vst [vmem:[#allocation2 + $0x78] sm:$0xff] %v682
        %v700 = vld [vmem:[#allocation2] sm:$0xff]
        %v701 = vld [vmem:[#allocation2 + $0x8] sm:$0xff]
        %v702 = vld [vmem:[#allocation2 + $0x10] sm:$0xff]
        %v703 = vld [vmem:[#allocation2 + $0x18] sm:$0xff]
        %v704 = vld [vmem:[#allocation3] sm:$0xff]
        %v705 = vld [vmem:[#allocation7] sm:$0xff]
        %v706 = vld [vmem:[#allocation7 + $0x8] sm:$0xff]
        %v707 = vld [vmem:[#allocation7 + $0x10] sm:$0xff]
        %v708 = vld [vmem:[#allocation7 + $0x18] sm:$0xff]
        %v709 = vld [vmem:[#allocation7 + $0x20] sm:$0xff]
        %v710 = vld [vmem:[#allocation7 + $0x28] sm:$0xff]
        %v711 = vld [vmem:[#allocation7 + $0x30] sm:$0xff]
        %v712 = vld [vmem:[#allocation7 + $0x38] sm:$0xff]
        %v713 = vld [vmem:[#allocation7 + $0x40] sm:$0xff]
        %v714 = vld [vmem:[#allocation7 + $0x48] sm:$0xff]
        %v715 = vld [vmem:[#allocation7 + $0x50] sm:$0xff]
        %v716 = vld [vmem:[#allocation7 + $0x58] sm:$0xff]
        %v717 = vld [vmem:[#allocation7 + $0x60] sm:$0xff]
        %v718 = vld [vmem:[#allocation7 + $0x68] sm:$0xff]
        %v719 = vld [vmem:[#allocation7 + $0x70] sm:$0xff]
        %v720 = vld [vmem:[#allocation7 + $0x78] sm:$0xff]
        %v721 = vld [vmem:[#allocation7 + $0x80] sm:$0xff]
        %v722 = vld [vmem:[#allocation7 + $0x88] sm:$0xff]
        %v723 = vld [vmem:[#allocation7 + $0x90] sm:$0xff]
        %v724 = vld [vmem:[#allocation7 + $0x98] sm:$0xff]
        %v725 = vld [vmem:[#allocation7 + $0xa0] sm:$0xff]
        %v726 = vld [vmem:[#allocation7 + $0xa8] sm:$0xff]
        %v727 = vld [vmem:[#allocation7 + $0xb0] sm:$0xff]
        %v728 = vld [vmem:[#allocation7 + $0xb8] sm:$0xff]
        %v729 = vld [vmem:[#allocation7 + $0xc0] sm:$0xff]
        %v730 = vld [vmem:[#allocation7 + $0xc8] sm:$0xff]
        %v731 = vld [vmem:[#allocation7 + $0xd0] sm:$0xff]
        %v732 = vld [vmem:[#allocation7 + $0xd8] sm:$0xff]
        %v733 = vld [vmem:[#allocation7 + $0xe0] sm:$0xff]
        %v734 = vld [vmem:[#allocation7 + $0xe8] sm:$0xff]
        %v735 = vld [vmem:[#allocation7 + $0xf0] sm:$0xff]
        %v736 = vld [vmem:[#allocation7 + $0xf8] sm:$0xff]
        %v737 = vld [vmem:[#allocation7 + $0x100] sm:$0xff]
        %v738 = vld [vmem:[#allocation7 + $0x108] sm:$0xff]
        %v739 = vld [vmem:[#allocation7 + $0x110] sm:$0xff]
        %v740 = vld [vmem:[#allocation7 + $0x118] sm:$0xff]
        %v741 = vld [vmem:[#allocation7 + $0x120] sm:$0xff]
        %v742 = vld [vmem:[#allocation7 + $0x128] sm:$0xff]
        %v743 = vld [vmem:[#allocation7 + $0x130] sm:$0xff]
        %v744 = vld [vmem:[#allocation7 + $0x138] sm:$0xff]
        %v745 = vld [vmem:[#allocation7 + $0x140] sm:$0xff]
        %v746 = vld [vmem:[#allocation7 + $0x148] sm:$0xff]
        %v747 = vld [vmem:[#allocation7 + $0x150] sm:$0xff]
        %v748 = vld [vmem:[#allocation7 + $0x158] sm:$0xff]
        %v749 = vld [vmem:[#allocation7 + $0x160] sm:$0xff]
        %v750 = vld [vmem:[#allocation7 + $0x168] sm:$0xff]
        %v751 = vld [vmem:[#allocation7 + $0x170] sm:$0xff]
        %v752 = vld [vmem:[#allocation7 + $0x178] sm:$0xff]
        %v753 = vld [vmem:[#allocation7 + $0x180] sm:$0xff]
        %v754 = vld [vmem:[#allocation7 + $0x188] sm:$0xff]
        %v755 = vld [vmem:[#allocation7 + $0x190] sm:$0xff]
        %v756 = vld [vmem:[#allocation7 + $0x198] sm:$0xff]
        %v757 = vld [vmem:[#allocation7 + $0x1a0] sm:$0xff]
        %v758 = vld [vmem:[#allocation7 + $0x1a8] sm:$0xff]
        %v759 = vld [vmem:[#allocation7 + $0x1b0] sm:$0xff]
        %v760 = vld [vmem:[#allocation7 + $0x1b8] sm:$0xff]
        %v761 = vld [vmem:[#allocation7 + $0x1c0] sm:$0xff]
        %v762 = vld [vmem:[#allocation7 + $0x1c8] sm:$0xff]
        %v763 = vld [vmem:[#allocation7 + $0x1d0] sm:$0xff]
        %v764 = vld [vmem:[#allocation7 + $0x1d8] sm:$0xff]
        %v765 = vld [vmem:[#allocation7 + $0x1e0] sm:$0xff]
        %v766 = vld [vmem:[#allocation7 + $0x1e8] sm:$0xff]
        %v767 = vld [vmem:[#allocation7 + $0x1f0] sm:$0xff]
        %v768 = vld [vmem:[#allocation7 + $0x1f8] sm:$0xff]
        %769 = vmatprep.subr.mxu0 %v706
        %770 = vmatpush1.msra.mxu0 %v705
        %771 = vmatprep.subr.mxu0 %v710
        %772 = vmatpush1.msra.mxu0 %v709
        %773 = vmatprep.subr.mxu0 %v714
        %774 = vmatpush1.msra.mxu0 %v713
        %775 = vmatprep.subr.mxu0 %v718
        %776 = vmatpush1.msra.mxu0 %v717
        %777 = vmatprep.subr.mxu0 %v722
        %778 = vmatpush1.msra.mxu0 %v721
        %779 = vmatprep.subr.mxu0 %v726
        %780 = vmatpush1.msra.mxu0 %v725
        %781 = vmatprep.subr.mxu0 %v730
        %782 = vmatpush1.msra.mxu0 %v729
        %783 = vmatprep.subr.mxu0 %v734
        %784 = vmatpush1.msra.mxu0 %v733
        %785 = vmatprep.subr.mxu0 %v738
        %786 = vmatpush1.msra.mxu0 %v737
        %787 = vmatprep.subr.mxu0 %v742
        %788 = vmatpush1.msra.mxu0 %v741
        %789 = vmatprep.subr.mxu0 %v746
        %790 = vmatpush1.msra.mxu0 %v745
        %791 = vmatprep.subr.mxu0 %v750
        %792 = vmatpush1.msra.mxu0 %v749
        %793 = vmatprep.subr.mxu0 %v754
        %794 = vmatpush1.msra.mxu0 %v753
        %795 = vmatprep.subr.mxu0 %v758
        %796 = vmatpush1.msra.mxu0 %v757
        %797 = vmatprep.subr.mxu0 %v762
        %798 = vmatpush1.msra.mxu0 %v761
        %799 = vmatprep.subr.mxu0 %v766
        %800 = vmatpush1.msra.mxu0 %v765
        %801 = vmatprep.subr.mxu0 0.0
        %802 = vmatpush1.msra.mxu0 0.0
        %803 = vmatprep.subr.mxu0 0.0
        %804 = vmatpush1.msra.mxu0 0.0
        %805 = vmatprep.subr.mxu0 0.0
        %806 = vmatpush1.msra.mxu0 0.0
        %807 = vmatprep.subr.mxu0 0.0
        %808 = vmatpush1.msra.mxu0 0.0
        %809 = vmatprep.subr.mxu0 0.0
        %810 = vmatpush1.msra.mxu0 0.0
        %811 = vmatprep.subr.mxu0 0.0
        %812 = vmatpush1.msra.mxu0 0.0
        %813 = vmatprep.subr.mxu0 0.0
        %814 = vmatpush1.msra.mxu0 0.0
        %815 = vmatprep.subr.mxu0 0.0
        %816 = vmatpush1.msra.mxu0 0.0
        %817 = vmatprep.subr.mxu0 0.0
        %818 = vmatpush1.msra.mxu0 0.0
        %819 = vmatprep.subr.mxu0 0.0
        %820 = vmatpush1.msra.mxu0 0.0
        %821 = vmatprep.subr.mxu0 0.0
        %822 = vmatpush1.msra.mxu0 0.0
        %823 = vmatprep.subr.mxu0 0.0
        %824 = vmatpush1.msra.mxu0 0.0
        %825 = vmatprep.subr.mxu0 0.0
        %826 = vmatpush1.msra.mxu0 0.0
        %827 = vmatprep.subr.mxu0 0.0
        %828 = vmatpush1.msra.mxu0 0.0
        %829 = vmatprep.subr.mxu0 0.0
        %830 = vmatpush1.msra.mxu0 0.0
        %831 = vmatprep.subr.mxu0 0.0
        %832 = vmatpush1.msra.mxu0 0.0
        %833 = vmatprep.mubr.f32.mxu0 0.0
        %834 = vmatmul.mubr.f32.gmra.mrb[0].mxu0 %v704
        %v835 = vpop.f32.mrb[0].mxu0
        %v836 = vadd.f32 0.0, %v835
        %v837 = vpop.f32.mrb[0].mxu0
        %v838 = vadd.f32 0.0, %v837
        %839 = vdwg.mxu0
        %840 = vmatprep.subr.mxu0 %v708
        %841 = vmatpush1.msra.mxu0 %v707
        %842 = vmatprep.subr.mxu0 %v712
        %843 = vmatpush1.msra.mxu0 %v711
        %844 = vmatprep.subr.mxu0 %v716
        %845 = vmatpush1.msra.mxu0 %v715
        %846 = vmatprep.subr.mxu0 %v720
        %847 = vmatpush1.msra.mxu0 %v719
        %848 = vmatprep.subr.mxu0 %v724
        %849 = vmatpush1.msra.mxu0 %v723
        %850 = vmatprep.subr.mxu0 %v728
        %851 = vmatpush1.msra.mxu0 %v727
        %852 = vmatprep.subr.mxu0 %v732
        %853 = vmatpush1.msra.mxu0 %v731
        %854 = vmatprep.subr.mxu0 %v736
        %855 = vmatpush1.msra.mxu0 %v735
        %856 = vmatprep.subr.mxu0 %v740
        %857 = vmatpush1.msra.mxu0 %v739
        %858 = vmatprep.subr.mxu0 %v744
        %859 = vmatpush1.msra.mxu0 %v743
        %860 = vmatprep.subr.mxu0 %v748
        %861 = vmatpush1.msra.mxu0 %v747
        %862 = vmatprep.subr.mxu0 %v752
        %863 = vmatpush1.msra.mxu0 %v751
        %864 = vmatprep.subr.mxu0 %v756
        %865 = vmatpush1.msra.mxu0 %v755
        %866 = vmatprep.subr.mxu0 %v760
        %867 = vmatpush1.msra.mxu0 %v759
        %868 = vmatprep.subr.mxu0 %v764
        %869 = vmatpush1.msra.mxu0 %v763
        %870 = vmatprep.subr.mxu0 %v768
        %871 = vmatpush1.msra.mxu0 %v767
        %872 = vmatprep.subr.mxu0 0.0
        %873 = vmatpush1.msra.mxu0 0.0
        %874 = vmatprep.subr.mxu0 0.0
        %875 = vmatpush1.msra.mxu0 0.0
        %876 = vmatprep.subr.mxu0 0.0
        %877 = vmatpush1.msra.mxu0 0.0
        %878 = vmatprep.subr.mxu0 0.0
        %879 = vmatpush1.msra.mxu0 0.0
        %880 = vmatprep.subr.mxu0 0.0
        %881 = vmatpush1.msra.mxu0 0.0
        %882 = vmatprep.subr.mxu0 0.0
        %883 = vmatpush1.msra.mxu0 0.0
        %884 = vmatprep.subr.mxu0 0.0
        %885 = vmatpush1.msra.mxu0 0.0
        %886 = vmatprep.subr.mxu0 0.0
        %887 = vmatpush1.msra.mxu0 0.0
        %888 = vmatprep.subr.mxu0 0.0
        %889 = vmatpush1.msra.mxu0 0.0
        %890 = vmatprep.subr.mxu0 0.0
        %891 = vmatpush1.msra.mxu0 0.0
        %892 = vmatprep.subr.mxu0 0.0
        %893 = vmatpush1.msra.mxu0 0.0
        %894 = vmatprep.subr.mxu0 0.0
        %895 = vmatpush1.msra.mxu0 0.0
        %896 = vmatprep.subr.mxu0 0.0
        %897 = vmatpush1.msra.mxu0 0.0
        %898 = vmatprep.subr.mxu0 0.0
        %899 = vmatpush1.msra.mxu0 0.0
        %900 = vmatprep.subr.mxu0 0.0
        %901 = vmatpush1.msra.mxu0 0.0
        %902 = vmatprep.subr.mxu0 0.0
        %903 = vmatpush1.msra.mxu0 0.0
        %904 = vmatprep.mubr.f32.mxu0 0.0
        %905 = vmatmul.mubr.f32.gmra.mrb[0].mxu0 %v704
        %v906 = vpop.f32.mrb[0].mxu0
        %v907 = vadd.f32 0.0, %v906
        %v908 = vpop.f32.mrb[0].mxu0
        %v909 = vadd.f32 0.0, %v908
        %910 = vdwg.mxu0
        %v911 = vadd.f32 %v700, %v836
        %v912 = vadd.f32 %v701, %v838
        %v913 = vadd.f32 %v702, %v907
        %v914 = vadd.f32 %v703, %v909
        %v915 = vld [vmem:[#allocation4] sm:$0xff]
        %v916 = vmul.f32 %v911, 0.5
        %v917 = vtanh.pop %v916
        %v918 = vmul.f32 %v917, 0.5
        %v919 = vadd.f32 %v918, 0.5
        %v920 = vmul.f32 %v912, 0.5
        %v921 = vtanh.pop %v920
        %v922 = vmul.f32 %v921, 0.5
        %v923 = vadd.f32 %v922, 0.5
        %v924 = vtanh.pop %v913
        %v925 = vmul.f32 %v914, 0.5
        %v926 = vtanh.pop %v925
        %v927 = vmul.f32 %v926, 0.5
        %v928 = vadd.f32 %v927, 0.5
        %v929 = vmul.f32 %v923, %v915
        %v930 = vmul.f32 %v919, %v924
        %v931 = vadd.f32 %v929, %v930
        %v932 = vtanh.pop %v931
        %v933 = vmul.f32 %v928, %v932
        %934 = vst [vmem:[#allocation3] sm:$0xff] %v933
        %935 = vst [vmem:[#allocation4] sm:$0xff] %v931
        %s936 = scalar_lea.vmem [#allocation3], 8
        %v937 = vld [vmem:[%s936] sm:$0xff]
        %v938 = vld [vmem:[#allocation9] sm:$0xff]
        %v939 = vld [vmem:[#allocation9 + $0x8] sm:$0xff]
        %v940 = vld [vmem:[#allocation9 + $0x10] sm:$0xff]
        %v941 = vld [vmem:[#allocation9 + $0x18] sm:$0xff]
        %v942 = vld [vmem:[#allocation9 + $0x20] sm:$0xff]
        %v943 = vld [vmem:[#allocation9 + $0x28] sm:$0xff]
        %v944 = vld [vmem:[#allocation9 + $0x30] sm:$0xff]
        %v945 = vld [vmem:[#allocation9 + $0x38] sm:$0xff]
        %v946 = vld [vmem:[#allocation9 + $0x40] sm:$0xff]
        %v947 = vld [vmem:[#allocation9 + $0x48] sm:$0xff]
        %v948 = vld [vmem:[#allocation9 + $0x50] sm:$0xff]
        %v949 = vld [vmem:[#allocation9 + $0x58] sm:$0xff]
        %v950 = vld [vmem:[#allocation9 + $0x60] sm:$0xff]
        %v951 = vld [vmem:[#allocation9 + $0x68] sm:$0xff]
        %v952 = vld [vmem:[#allocation9 + $0x70] sm:$0xff]
        %v953 = vld [vmem:[#allocation9 + $0x78] sm:$0xff]
        %v954 = vld [vmem:[#allocation9 + $0x80] sm:$0xff]
        %v955 = vld [vmem:[#allocation9 + $0x88] sm:$0xff]
        %v956 = vld [vmem:[#allocation9 + $0x90] sm:$0xff]
        %v957 = vld [vmem:[#allocation9 + $0x98] sm:$0xff]
        %v958 = vld [vmem:[#allocation9 + $0xa0] sm:$0xff]
        %v959 = vld [vmem:[#allocation9 + $0xa8] sm:$0xff]
        %v960 = vld [vmem:[#allocation9 + $0xb0] sm:$0xff]
        %v961 = vld [vmem:[#allocation9 + $0xb8] sm:$0xff]
        %v962 = vld [vmem:[#allocation9 + $0xc0] sm:$0xff]
        %v963 = vld [vmem:[#allocation9 + $0xc8] sm:$0xff]
        %v964 = vld [vmem:[#allocation9 + $0xd0] sm:$0xff]
        %v965 = vld [vmem:[#allocation9 + $0xd8] sm:$0xff]
        %v966 = vld [vmem:[#allocation9 + $0xe0] sm:$0xff]
        %v967 = vld [vmem:[#allocation9 + $0xe8] sm:$0xff]
        %v968 = vld [vmem:[#allocation9 + $0xf0] sm:$0xff]
        %v969 = vld [vmem:[#allocation9 + $0xf8] sm:$0xff]
        %v970 = vld [vmem:[#allocation9 + $0x100] sm:$0xff]
        %v971 = vld [vmem:[#allocation9 + $0x108] sm:$0xff]
        %v972 = vld [vmem:[#allocation9 + $0x110] sm:$0xff]
        %v973 = vld [vmem:[#allocation9 + $0x118] sm:$0xff]
        %v974 = vld [vmem:[#allocation9 + $0x120] sm:$0xff]
        %v975 = vld [vmem:[#allocation9 + $0x128] sm:$0xff]
        %v976 = vld [vmem:[#allocation9 + $0x130] sm:$0xff]
        %v977 = vld [vmem:[#allocation9 + $0x138] sm:$0xff]
        %v978 = vld [vmem:[#allocation9 + $0x140] sm:$0xff]
        %v979 = vld [vmem:[#allocation9 + $0x148] sm:$0xff]
        %v980 = vld [vmem:[#allocation9 + $0x150] sm:$0xff]
        %v981 = vld [vmem:[#allocation9 + $0x158] sm:$0xff]
        %v982 = vld [vmem:[#allocation9 + $0x160] sm:$0xff]
        %v983 = vld [vmem:[#allocation9 + $0x168] sm:$0xff]
        %v984 = vld [vmem:[#allocation9 + $0x170] sm:$0xff]
        %v985 = vld [vmem:[#allocation9 + $0x178] sm:$0xff]
        %v986 = vld [vmem:[#allocation9 + $0x180] sm:$0xff]
        %v987 = vld [vmem:[#allocation9 + $0x188] sm:$0xff]
        %v988 = vld [vmem:[#allocation9 + $0x190] sm:$0xff]
        %v989 = vld [vmem:[#allocation9 + $0x198] sm:$0xff]
        %v990 = vld [vmem:[#allocation9 + $0x1a0] sm:$0xff]
        %v991 = vld [vmem:[#allocation9 + $0x1a8] sm:$0xff]
        %v992 = vld [vmem:[#allocation9 + $0x1b0] sm:$0xff]
        %v993 = vld [vmem:[#allocation9 + $0x1b8] sm:$0xff]
        %v994 = vld [vmem:[#allocation9 + $0x1c0] sm:$0xff]
        %v995 = vld [vmem:[#allocation9 + $0x1c8] sm:$0xff]
        %v996 = vld [vmem:[#allocation9 + $0x1d0] sm:$0xff]
        %v997 = vld [vmem:[#allocation9 + $0x1d8] sm:$0xff]
        %v998 = vld [vmem:[#allocation9 + $0x1e0] sm:$0xff]
        %v999 = vld [vmem:[#allocation9 + $0x1e8] sm:$0xff]
        %v1000 = vld [vmem:[#allocation9 + $0x1f0] sm:$0xff]
        %v1001 = vld [vmem:[#allocation9 + $0x1f8] sm:$0xff]
        %v1002 = vld [vmem:[#allocation9 + $0x200] sm:$0xff]
        %v1003 = vld [vmem:[#allocation9 + $0x208] sm:$0xff]
        %v1004 = vld [vmem:[#allocation9 + $0x210] sm:$0xff]
        %v1005 = vld [vmem:[#allocation9 + $0x218] sm:$0xff]
        %v1006 = vld [vmem:[#allocation9 + $0x220] sm:$0xff]
        %v1007 = vld [vmem:[#allocation9 + $0x228] sm:$0xff]
        %v1008 = vld [vmem:[#allocation9 + $0x230] sm:$0xff]
        %v1009 = vld [vmem:[#allocation9 + $0x238] sm:$0xff]
        %v1010 = vld [vmem:[#allocation9 + $0x240] sm:$0xff]
        %v1011 = vld [vmem:[#allocation9 + $0x248] sm:$0xff]
        %v1012 = vld [vmem:[#allocation9 + $0x250] sm:$0xff]
        %v1013 = vld [vmem:[#allocation9 + $0x258] sm:$0xff]
        %v1014 = vld [vmem:[#allocation9 + $0x260] sm:$0xff]
        %v1015 = vld [vmem:[#allocation9 + $0x268] sm:$0xff]
        %v1016 = vld [vmem:[#allocation9 + $0x270] sm:$0xff]
        %v1017 = vld [vmem:[#allocation9 + $0x278] sm:$0xff]
        %v1018 = vld [vmem:[#allocation9 + $0x280] sm:$0xff]
        %v1019 = vld [vmem:[#allocation9 + $0x288] sm:$0xff]
        %v1020 = vld [vmem:[#allocation9 + $0x290] sm:$0xff]
        %v1021 = vld [vmem:[#allocation9 + $0x298] sm:$0xff]
        %v1022 = vld [vmem:[#allocation9 + $0x2a0] sm:$0xff]
        %v1023 = vld [vmem:[#allocation9 + $0x2a8] sm:$0xff]
        %v1024 = vld [vmem:[#allocation9 + $0x2b0] sm:$0xff]
        %v1025 = vld [vmem:[#allocation9 + $0x2b8] sm:$0xff]
        %v1026 = vld [vmem:[#allocation9 + $0x2c0] sm:$0xff]
        %v1027 = vld [vmem:[#allocation9 + $0x2c8] sm:$0xff]
        %v1028 = vld [vmem:[#allocation9 + $0x2d0] sm:$0xff]
        %v1029 = vld [vmem:[#allocation9 + $0x2d8] sm:$0xff]
        %v1030 = vld [vmem:[#allocation9 + $0x2e0] sm:$0xff]
        %v1031 = vld [vmem:[#allocation9 + $0x2e8] sm:$0xff]
        %v1032 = vld [vmem:[#allocation9 + $0x2f0] sm:$0xff]
        %v1033 = vld [vmem:[#allocation9 + $0x2f8] sm:$0xff]
        %v1034 = vld [vmem:[#allocation9 + $0x300] sm:$0xff]
        %v1035 = vld [vmem:[#allocation9 + $0x308] sm:$0xff]
        %v1036 = vld [vmem:[#allocation9 + $0x310] sm:$0xff]
        %v1037 = vld [vmem:[#allocation9 + $0x318] sm:$0xff]
        %v1038 = vld [vmem:[#allocation9 + $0x320] sm:$0xff]
        %v1039 = vld [vmem:[#allocation9 + $0x328] sm:$0xff]
        %v1040 = vld [vmem:[#allocation9 + $0x330] sm:$0xff]
        %v1041 = vld [vmem:[#allocation9 + $0x338] sm:$0xff]
        %v1042 = vld [vmem:[#allocation9 + $0x340] sm:$0xff]
        %v1043 = vld [vmem:[#allocation9 + $0x348] sm:$0xff]
        %v1044 = vld [vmem:[#allocation9 + $0x350] sm:$0xff]
        %v1045 = vld [vmem:[#allocation9 + $0x358] sm:$0xff]
        %v1046 = vld [vmem:[#allocation9 + $0x360] sm:$0xff]
        %v1047 = vld [vmem:[#allocation9 + $0x368] sm:$0xff]
        %v1048 = vld [vmem:[#allocation9 + $0x370] sm:$0xff]
        %v1049 = vld [vmem:[#allocation9 + $0x378] sm:$0xff]
        %v1050 = vld [vmem:[#allocation9 + $0x380] sm:$0xff]
        %v1051 = vld [vmem:[#allocation9 + $0x388] sm:$0xff]
        %v1052 = vld [vmem:[#allocation9 + $0x390] sm:$0xff]
        %v1053 = vld [vmem:[#allocation9 + $0x398] sm:$0xff]
        %v1054 = vld [vmem:[#allocation9 + $0x3a0] sm:$0xff]
        %v1055 = vld [vmem:[#allocation9 + $0x3a8] sm:$0xff]
        %v1056 = vld [vmem:[#allocation9 + $0x3b0] sm:$0xff]
        %v1057 = vld [vmem:[#allocation9 + $0x3b8] sm:$0xff]
        %v1058 = vld [vmem:[#allocation9 + $0x3c0] sm:$0xff]
        %v1059 = vld [vmem:[#allocation9 + $0x3c8] sm:$0xff]
        %v1060 = vld [vmem:[#allocation9 + $0x3d0] sm:$0xff]
        %v1061 = vld [vmem:[#allocation9 + $0x3d8] sm:$0xff]
        %v1062 = vld [vmem:[#allocation9 + $0x3e0] sm:$0xff]
        %v1063 = vld [vmem:[#allocation9 + $0x3e8] sm:$0xff]
        %v1064 = vld [vmem:[#allocation9 + $0x3f0] sm:$0xff]
        %v1065 = vld [vmem:[#allocation9 + $0x3f8] sm:$0xff]
        %v1066 = vld [vmem:[%s5] sm:$0xf]
        %v1068 = vlaneseq
        %v1069 = vshrl.u32 %v1068, 7
        %v1070 = vsub.s32 0, %v1069
        %v1071 = vrot.slane %v1066, %v1070
        %v1072 = vlaneseq
        %v1073 = vshrl.u32 %v1072, 7
        %v1074 = vsub.s32 1, %v1073
        %v1075 = vrot.slane %v1066, %v1074
        %v1076 = vlaneseq
        %v1077 = vshrl.u32 %v1076, 7
        %v1078 = vsub.s32 2, %v1077
        %v1079 = vrot.slane %v1066, %v1078
        %v1080 = vlaneseq
        %v1081 = vshrl.u32 %v1080, 7
        %v1082 = vsub.s32 3, %v1081
        %v1083 = vrot.slane %v1066, %v1082
        %1088 = vmatprep.subr.mxu0 %v939
        %1089 = vmatpush1.msra.mxu0 %v938
        %1090 = vmatprep.subr.mxu0 %v943
        %1091 = vmatpush1.msra.mxu0 %v942
        %1092 = vmatprep.subr.mxu0 %v947
        %1093 = vmatpush1.msra.mxu0 %v946
        %1094 = vmatprep.subr.mxu0 %v951
        %1095 = vmatpush1.msra.mxu0 %v950
        %1096 = vmatprep.subr.mxu0 %v955
        %1097 = vmatpush1.msra.mxu0 %v954
        %1098 = vmatprep.subr.mxu0 %v959
        %1099 = vmatpush1.msra.mxu0 %v958
        %1100 = vmatprep.subr.mxu0 %v963
        %1101 = vmatpush1.msra.mxu0 %v962
        %1102 = vmatprep.subr.mxu0 %v967
        %1103 = vmatpush1.msra.mxu0 %v966
        %1104 = vmatprep.subr.mxu0 %v971
        %1105 = vmatpush1.msra.mxu0 %v970
        %1106 = vmatprep.subr.mxu0 %v975
        %1107 = vmatpush1.msra.mxu0 %v974
        %1108 = vmatprep.subr.mxu0 %v979
        %1109 = vmatpush1.msra.mxu0 %v978
        %1110 = vmatprep.subr.mxu0 %v983
        %1111 = vmatpush1.msra.mxu0 %v982
        %1112 = vmatprep.subr.mxu0 %v987
        %1113 = vmatpush1.msra.mxu0 %v986
        %1114 = vmatprep.subr.mxu0 %v991
        %1115 = vmatpush1.msra.mxu0 %v990
        %1116 = vmatprep.subr.mxu0 %v995
        %1117 = vmatpush1.msra.mxu0 %v994
        %1118 = vmatprep.subr.mxu0 %v999
        %1119 = vmatpush1.msra.mxu0 %v998
        %1120 = vmatprep.subr.mxu0 %v1003
        %1121 = vmatpush1.msra.mxu0 %v1002
        %1122 = vmatprep.subr.mxu0 %v1007
        %1123 = vmatpush1.msra.mxu0 %v1006
        %1124 = vmatprep.subr.mxu0 %v1011
        %1125 = vmatpush1.msra.mxu0 %v1010
        %1126 = vmatprep.subr.mxu0 %v1015
        %1127 = vmatpush1.msra.mxu0 %v1014
        %1128 = vmatprep.subr.mxu0 %v1019
        %1129 = vmatpush1.msra.mxu0 %v1018
        %1130 = vmatprep.subr.mxu0 %v1023
        %1131 = vmatpush1.msra.mxu0 %v1022
        %1132 = vmatprep.subr.mxu0 %v1027
        %1133 = vmatpush1.msra.mxu0 %v1026
        %1134 = vmatprep.subr.mxu0 %v1031
        %1135 = vmatpush1.msra.mxu0 %v1030
        %1136 = vmatprep.subr.mxu0 %v1035
        %1137 = vmatpush1.msra.mxu0 %v1034
        %1138 = vmatprep.subr.mxu0 %v1039
        %1139 = vmatpush1.msra.mxu0 %v1038
        %1140 = vmatprep.subr.mxu0 %v1043
        %1141 = vmatpush1.msra.mxu0 %v1042
        %1142 = vmatprep.subr.mxu0 %v1047
        %1143 = vmatpush1.msra.mxu0 %v1046
        %1144 = vmatprep.subr.mxu0 %v1051
        %1145 = vmatpush1.msra.mxu0 %v1050
        %1146 = vmatprep.subr.mxu0 %v1055
        %1147 = vmatpush1.msra.mxu0 %v1054
        %1148 = vmatprep.subr.mxu0 %v1059
        %1149 = vmatpush1.msra.mxu0 %v1058
        %1150 = vmatprep.subr.mxu0 %v1063
        %1151 = vmatpush1.msra.mxu0 %v1062
        %1152 = vmatprep.mubr.f32.mxu0 %v937
        %1153 = vmatmul.mubr.f32.gmra.mrb[0].mxu0 %v933
        %v1154 = vpop.f32.mrb[0].mxu0
        %v1155 = vadd.f32 %v1071, %v1154
        %v1156 = vpop.f32.mrb[0].mxu0
        %v1157 = vadd.f32 %v1075, %v1156
        %1158 = vdwg.mxu0
        %1159 = vmatprep.subr.mxu0 %v941
        %1160 = vmatpush1.msra.mxu0 %v940
        %1161 = vmatprep.subr.mxu0 %v945
        %1162 = vmatpush1.msra.mxu0 %v944
        %1163 = vmatprep.subr.mxu0 %v949
        %1164 = vmatpush1.msra.mxu0 %v948
        %1165 = vmatprep.subr.mxu0 %v953
        %1166 = vmatpush1.msra.mxu0 %v952
        %1167 = vmatprep.subr.mxu0 %v957
        %1168 = vmatpush1.msra.mxu0 %v956
        %1169 = vmatprep.subr.mxu0 %v961
        %1170 = vmatpush1.msra.mxu0 %v960
        %1171 = vmatprep.subr.mxu0 %v965
        %1172 = vmatpush1.msra.mxu0 %v964
        %1173 = vmatprep.subr.mxu0 %v969
        %1174 = vmatpush1.msra.mxu0 %v968
        %1175 = vmatprep.subr.mxu0 %v973
        %1176 = vmatpush1.msra.mxu0 %v972
        %1177 = vmatprep.subr.mxu0 %v977
        %1178 = vmatpush1.msra.mxu0 %v976
        %1179 = vmatprep.subr.mxu0 %v981
        %1180 = vmatpush1.msra.mxu0 %v980
        %1181 = vmatprep.subr.mxu0 %v985
        %1182 = vmatpush1.msra.mxu0 %v984
        %1183 = vmatprep.subr.mxu0 %v989
        %1184 = vmatpush1.msra.mxu0 %v988
        %1185 = vmatprep.subr.mxu0 %v993
        %1186 = vmatpush1.msra.mxu0 %v992
        %1187 = vmatprep.subr.mxu0 %v997
        %1188 = vmatpush1.msra.mxu0 %v996
        %1189 = vmatprep.subr.mxu0 %v1001
        %1190 = vmatpush1.msra.mxu0 %v1000
        %1191 = vmatprep.subr.mxu0 %v1005
        %1192 = vmatpush1.msra.mxu0 %v1004
        %1193 = vmatprep.subr.mxu0 %v1009
        %1194 = vmatpush1.msra.mxu0 %v1008
        %1195 = vmatprep.subr.mxu0 %v1013
        %1196 = vmatpush1.msra.mxu0 %v1012
        %1197 = vmatprep.subr.mxu0 %v1017
        %1198 = vmatpush1.msra.mxu0 %v1016
        %1199 = vmatprep.subr.mxu0 %v1021
        %1200 = vmatpush1.msra.mxu0 %v1020
        %1201 = vmatprep.subr.mxu0 %v1025
        %1202 = vmatpush1.msra.mxu0 %v1024
        %1203 = vmatprep.subr.mxu0 %v1029
        %1204 = vmatpush1.msra.mxu0 %v1028
        %1205 = vmatprep.subr.mxu0 %v1033
        %1206 = vmatpush1.msra.mxu0 %v1032
        %1207 = vmatprep.subr.mxu0 %v1037
        %1208 = vmatpush1.msra.mxu0 %v1036
        %1209 = vmatprep.subr.mxu0 %v1041
        %1210 = vmatpush1.msra.mxu0 %v1040
        %1211 = vmatprep.subr.mxu0 %v1045
        %1212 = vmatpush1.msra.mxu0 %v1044
        %1213 = vmatprep.subr.mxu0 %v1049
        %1214 = vmatpush1.msra.mxu0 %v1048
        %1215 = vmatprep.subr.mxu0 %v1053
        %1216 = vmatpush1.msra.mxu0 %v1052
        %1217 = vmatprep.subr.mxu0 %v1057
        %1218 = vmatpush1.msra.mxu0 %v1056
        %1219 = vmatprep.subr.mxu0 %v1061
        %1220 = vmatpush1.msra.mxu0 %v1060
        %1221 = vmatprep.subr.mxu0 %v1065
        %1222 = vmatpush1.msra.mxu0 %v1064
        %1223 = vmatprep.mubr.f32.mxu0 %v937
        %1224 = vmatmul.mubr.f32.gmra.mrb[0].mxu0 %v933
        %v1225 = vpop.f32.mrb[0].mxu0
        %v1226 = vadd.f32 %v1079, %v1225
        %v1227 = vpop.f32.mrb[0].mxu0
        %v1228 = vadd.f32 %v1083, %v1227
        %1229 = vdwg.mxu0
        %s1230 = scalar_lea.vmem [#allocation4], 8
        %v1231 = vld [vmem:[%s1230] sm:$0xff]
        %v1232 = vmul.f32 %v1155, 0.5
        %v1233 = vtanh.pop %v1232
        %v1234 = vmul.f32 %v1233, 0.5
        %v1235 = vadd.f32 %v1234, 0.5
        %v1236 = vmul.f32 %v1157, 0.5
        %v1237 = vtanh.pop %v1236
        %v1238 = vmul.f32 %v1237, 0.5
        %v1239 = vadd.f32 %v1238, 0.5
        %v1240 = vtanh.pop %v1226
        %v1241 = vmul.f32 %v1228, 0.5
        %v1242 = vtanh.pop %v1241
        %v1243 = vmul.f32 %v1242, 0.5
        %v1244 = vadd.f32 %v1243, 0.5
        %v1245 = vmul.f32 %v1239, %v1231
        %v1246 = vmul.f32 %v1235, %v1240
        %v1247 = vadd.f32 %v1245, %v1246
        %v1248 = vtanh.pop %v1247
        %v1249 = vmul.f32 %v1244, %v1248
        %1250 = vst [vmem:[%s936] sm:$0xff] %v1249
        %1251 = vst [vmem:[%s1230] sm:$0xff] %v1247
        %s1252 = scalar_lea.vmem [#allocation3], 16
        %v1253 = vld [vmem:[%s1252] sm:$0xff]
        %v1254 = vld [vmem:[#allocation10] sm:$0xff]
        %v1255 = vld [vmem:[#allocation10 + $0x8] sm:$0xff]
        %v1256 = vld [vmem:[#allocation10 + $0x10] sm:$0xff]
        %v1257 = vld [vmem:[#allocation10 + $0x18] sm:$0xff]
        %v1258 = vld [vmem:[#allocation10 + $0x20] sm:$0xff]
        %v1259 = vld [vmem:[#allocation10 + $0x28] sm:$0xff]
        %v1260 = vld [vmem:[#allocation10 + $0x30] sm:$0xff]
        %v1261 = vld [vmem:[#allocation10 + $0x38] sm:$0xff]
        %v1262 = vld [vmem:[#allocation10 + $0x40] sm:$0xff]
        %v1263 = vld [vmem:[#allocation10 + $0x48] sm:$0xff]
        %v1264 = vld [vmem:[#allocation10 + $0x50] sm:$0xff]
        %v1265 = vld [vmem:[#allocation10 + $0x58] sm:$0xff]
        %v1266 = vld [vmem:[#allocation10 + $0x60] sm:$0xff]
        %v1267 = vld [vmem:[#allocation10 + $0x68] sm:$0xff]
        %v1268 = vld [vmem:[#allocation10 + $0x70] sm:$0xff]
        %v1269 = vld [vmem:[#allocation10 + $0x78] sm:$0xff]
        %v1270 = vld [vmem:[#allocation10 + $0x80] sm:$0xff]
        %v1271 = vld [vmem:[#allocation10 + $0x88] sm:$0xff]
        %v1272 = vld [vmem:[#allocation10 + $0x90] sm:$0xff]
        %v1273 = vld [vmem:[#allocation10 + $0x98] sm:$0xff]
        %v1274 = vld [vmem:[#allocation10 + $0xa0] sm:$0xff]
        %v1275 = vld [vmem:[#allocation10 + $0xa8] sm:$0xff]
        %v1276 = vld [vmem:[#allocation10 + $0xb0] sm:$0xff]
        %v1277 = vld [vmem:[#allocation10 + $0xb8] sm:$0xff]
        %v1278 = vld [vmem:[#allocation10 + $0xc0] sm:$0xff]
        %v1279 = vld [vmem:[#allocation10 + $0xc8] sm:$0xff]
        %v1280 = vld [vmem:[#allocation10 + $0xd0] sm:$0xff]
        %v1281 = vld [vmem:[#allocation10 + $0xd8] sm:$0xff]
        %v1282 = vld [vmem:[#allocation10 + $0xe0] sm:$0xff]
        %v1283 = vld [vmem:[#allocation10 + $0xe8] sm:$0xff]
        %v1284 = vld [vmem:[#allocation10 + $0xf0] sm:$0xff]
        %v1285 = vld [vmem:[#allocation10 + $0xf8] sm:$0xff]
        %v1286 = vld [vmem:[#allocation10 + $0x100] sm:$0xff]
        %v1287 = vld [vmem:[#allocation10 + $0x108] sm:$0xff]
        %v1288 = vld [vmem:[#allocation10 + $0x110] sm:$0xff]
        %v1289 = vld [vmem:[#allocation10 + $0x118] sm:$0xff]
        %v1290 = vld [vmem:[#allocation10 + $0x120] sm:$0xff]
        %v1291 = vld [vmem:[#allocation10 + $0x128] sm:$0xff]
        %v1292 = vld [vmem:[#allocation10 + $0x130] sm:$0xff]
        %v1293 = vld [vmem:[#allocation10 + $0x138] sm:$0xff]
        %v1294 = vld [vmem:[#allocation10 + $0x140] sm:$0xff]
        %v1295 = vld [vmem:[#allocation10 + $0x148] sm:$0xff]
        %v1296 = vld [vmem:[#allocation10 + $0x150] sm:$0xff]
        %v1297 = vld [vmem:[#allocation10 + $0x158] sm:$0xff]
        %v1298 = vld [vmem:[#allocation10 + $0x160] sm:$0xff]
        %v1299 = vld [vmem:[#allocation10 + $0x168] sm:$0xff]
        %v1300 = vld [vmem:[#allocation10 + $0x170] sm:$0xff]
        %v1301 = vld [vmem:[#allocation10 + $0x178] sm:$0xff]
        %v1302 = vld [vmem:[#allocation10 + $0x180] sm:$0xff]
        %v1303 = vld [vmem:[#allocation10 + $0x188] sm:$0xff]
        %v1304 = vld [vmem:[#allocation10 + $0x190] sm:$0xff]
        %v1305 = vld [vmem:[#allocation10 + $0x198] sm:$0xff]
        %v1306 = vld [vmem:[#allocation10 + $0x1a0] sm:$0xff]
        %v1307 = vld [vmem:[#allocation10 + $0x1a8] sm:$0xff]
        %v1308 = vld [vmem:[#allocation10 + $0x1b0] sm:$0xff]
        %v1309 = vld [vmem:[#allocation10 + $0x1b8] sm:$0xff]
        %v1310 = vld [vmem:[#allocation10 + $0x1c0] sm:$0xff]
        %v1311 = vld [vmem:[#allocation10 + $0x1c8] sm:$0xff]
        %v1312 = vld [vmem:[#allocation10 + $0x1d0] sm:$0xff]
        %v1313 = vld [vmem:[#allocation10 + $0x1d8] sm:$0xff]
        %v1314 = vld [vmem:[#allocation10 + $0x1e0] sm:$0xff]
        %v1315 = vld [vmem:[#allocation10 + $0x1e8] sm:$0xff]
        %v1316 = vld [vmem:[#allocation10 + $0x1f0] sm:$0xff]
        %v1317 = vld [vmem:[#allocation10 + $0x1f8] sm:$0xff]
        %v1318 = vld [vmem:[#allocation10 + $0x200] sm:$0xff]
        %v1319 = vld [vmem:[#allocation10 + $0x208] sm:$0xff]
        %v1320 = vld [vmem:[#allocation10 + $0x210] sm:$0xff]
        %v1321 = vld [vmem:[#allocation10 + $0x218] sm:$0xff]
        %v1322 = vld [vmem:[#allocation10 + $0x220] sm:$0xff]
        %v1323 = vld [vmem:[#allocation10 + $0x228] sm:$0xff]
        %v1324 = vld [vmem:[#allocation10 + $0x230] sm:$0xff]
        %v1325 = vld [vmem:[#allocation10 + $0x238] sm:$0xff]
        %v1326 = vld [vmem:[#allocation10 + $0x240] sm:$0xff]
        %v1327 = vld [vmem:[#allocation10 + $0x248] sm:$0xff]
        %v1328 = vld [vmem:[#allocation10 + $0x250] sm:$0xff]
        %v1329 = vld [vmem:[#allocation10 + $0x258] sm:$0xff]
        %v1330 = vld [vmem:[#allocation10 + $0x260] sm:$0xff]
        %v1331 = vld [vmem:[#allocation10 + $0x268] sm:$0xff]
        %v1332 = vld [vmem:[#allocation10 + $0x270] sm:$0xff]
        %v1333 = vld [vmem:[#allocation10 + $0x278] sm:$0xff]
        %v1334 = vld [vmem:[#allocation10 + $0x280] sm:$0xff]
        %v1335 = vld [vmem:[#allocation10 + $0x288] sm:$0xff]
        %v1336 = vld [vmem:[#allocation10 + $0x290] sm:$0xff]
        %v1337 = vld [vmem:[#allocation10 + $0x298] sm:$0xff]
        %v1338 = vld [vmem:[#allocation10 + $0x2a0] sm:$0xff]
        %v1339 = vld [vmem:[#allocation10 + $0x2a8] sm:$0xff]
        %v1340 = vld [vmem:[#allocation10 + $0x2b0] sm:$0xff]
        %v1341 = vld [vmem:[#allocation10 + $0x2b8] sm:$0xff]
        %v1342 = vld [vmem:[#allocation10 + $0x2c0] sm:$0xff]
        %v1343 = vld [vmem:[#allocation10 + $0x2c8] sm:$0xff]
        %v1344 = vld [vmem:[#allocation10 + $0x2d0] sm:$0xff]
        %v1345 = vld [vmem:[#allocation10 + $0x2d8] sm:$0xff]
        %v1346 = vld [vmem:[#allocation10 + $0x2e0] sm:$0xff]
        %v1347 = vld [vmem:[#allocation10 + $0x2e8] sm:$0xff]
        %v1348 = vld [vmem:[#allocation10 + $0x2f0] sm:$0xff]
        %v1349 = vld [vmem:[#allocation10 + $0x2f8] sm:$0xff]
        %v1350 = vld [vmem:[#allocation10 + $0x300] sm:$0xff]
        %v1351 = vld [vmem:[#allocation10 + $0x308] sm:$0xff]
        %v1352 = vld [vmem:[#allocation10 + $0x310] sm:$0xff]
        %v1353 = vld [vmem:[#allocation10 + $0x318] sm:$0xff]
        %v1354 = vld [vmem:[#allocation10 + $0x320] sm:$0xff]
        %v1355 = vld [vmem:[#allocation10 + $0x328] sm:$0xff]
        %v1356 = vld [vmem:[#allocation10 + $0x330] sm:$0xff]
        %v1357 = vld [vmem:[#allocation10 + $0x338] sm:$0xff]
        %v1358 = vld [vmem:[#allocation10 + $0x340] sm:$0xff]
        %v1359 = vld [vmem:[#allocation10 + $0x348] sm:$0xff]
        %v1360 = vld [vmem:[#allocation10 + $0x350] sm:$0xff]
        %v1361 = vld [vmem:[#allocation10 + $0x358] sm:$0xff]
        %v1362 = vld [vmem:[#allocation10 + $0x360] sm:$0xff]
        %v1363 = vld [vmem:[#allocation10 + $0x368] sm:$0xff]
        %v1364 = vld [vmem:[#allocation10 + $0x370] sm:$0xff]
        %v1365 = vld [vmem:[#allocation10 + $0x378] sm:$0xff]
        %v1366 = vld [vmem:[#allocation10 + $0x380] sm:$0xff]
        %v1367 = vld [vmem:[#allocation10 + $0x388] sm:$0xff]
        %v1368 = vld [vmem:[#allocation10 + $0x390] sm:$0xff]
        %v1369 = vld [vmem:[#allocation10 + $0x398] sm:$0xff]
        %v1370 = vld [vmem:[#allocation10 + $0x3a0] sm:$0xff]
        %v1371 = vld [vmem:[#allocation10 + $0x3a8] sm:$0xff]
        %v1372 = vld [vmem:[#allocation10 + $0x3b0] sm:$0xff]
        %v1373 = vld [vmem:[#allocation10 + $0x3b8] sm:$0xff]
        %v1374 = vld [vmem:[#allocation10 + $0x3c0] sm:$0xff]
        %v1375 = vld [vmem:[#allocation10 + $0x3c8] sm:$0xff]
        %v1376 = vld [vmem:[#allocation10 + $0x3d0] sm:$0xff]
        %v1377 = vld [vmem:[#allocation10 + $0x3d8] sm:$0xff]
        %v1378 = vld [vmem:[#allocation10 + $0x3e0] sm:$0xff]
        %v1379 = vld [vmem:[#allocation10 + $0x3e8] sm:$0xff]
        %v1380 = vld [vmem:[#allocation10 + $0x3f0] sm:$0xff]
        %v1381 = vld [vmem:[#allocation10 + $0x3f8] sm:$0xff]
        %v1382 = vld [vmem:[%s7] sm:$0xf]
        %v1384 = vlaneseq
        %v1385 = vshrl.u32 %v1384, 7
        %v1386 = vsub.s32 0, %v1385
        %v1387 = vrot.slane %v1382, %v1386
        %v1388 = vlaneseq
        %v1389 = vshrl.u32 %v1388, 7
        %v1390 = vsub.s32 1, %v1389
        %v1391 = vrot.slane %v1382, %v1390
        %v1392 = vlaneseq
        %v1393 = vshrl.u32 %v1392, 7
        %v1394 = vsub.s32 2, %v1393
        %v1395 = vrot.slane %v1382, %v1394
        %v1396 = vlaneseq
        %v1397 = vshrl.u32 %v1396, 7
        %v1398 = vsub.s32 3, %v1397
        %v1399 = vrot.slane %v1382, %v1398
        %1404 = vmatprep.subr.mxu0 %v1255
        %1405 = vmatpush1.msra.mxu0 %v1254
        %1406 = vmatprep.subr.mxu0 %v1259
        %1407 = vmatpush1.msra.mxu0 %v1258
        %1408 = vmatprep.subr.mxu0 %v1263
        %1409 = vmatpush1.msra.mxu0 %v1262
        %1410 = vmatprep.subr.mxu0 %v1267
        %1411 = vmatpush1.msra.mxu0 %v1266
        %1412 = vmatprep.subr.mxu0 %v1271
        %1413 = vmatpush1.msra.mxu0 %v1270
        %1414 = vmatprep.subr.mxu0 %v1275
        %1415 = vmatpush1.msra.mxu0 %v1274
        %1416 = vmatprep.subr.mxu0 %v1279
        %1417 = vmatpush1.msra.mxu0 %v1278
        %1418 = vmatprep.subr.mxu0 %v1283
        %1419 = vmatpush1.msra.mxu0 %v1282
        %1420 = vmatprep.subr.mxu0 %v1287
        %1421 = vmatpush1.msra.mxu0 %v1286
        %1422 = vmatprep.subr.mxu0 %v1291
        %1423 = vmatpush1.msra.mxu0 %v1290
        %1424 = vmatprep.subr.mxu0 %v1295
        %1425 = vmatpush1.msra.mxu0 %v1294
        %1426 = vmatprep.subr.mxu0 %v1299
        %1427 = vmatpush1.msra.mxu0 %v1298
        %1428 = vmatprep.subr.mxu0 %v1303
        %1429 = vmatpush1.msra.mxu0 %v1302
        %1430 = vmatprep.subr.mxu0 %v1307
        %1431 = vmatpush1.msra.mxu0 %v1306
        %1432 = vmatprep.subr.mxu0 %v1311
        %1433 = vmatpush1.msra.mxu0 %v1310
        %1434 = vmatprep.subr.mxu0 %v1315
        %1435 = vmatpush1.msra.mxu0 %v1314
        %1436 = vmatprep.subr.mxu0 %v1319
        %1437 = vmatpush1.msra.mxu0 %v1318
        %1438 = vmatprep.subr.mxu0 %v1323
        %1439 = vmatpush1.msra.mxu0 %v1322
        %1440 = vmatprep.subr.mxu0 %v1327
        %1441 = vmatpush1.msra.mxu0 %v1326
        %1442 = vmatprep.subr.mxu0 %v1331
        %1443 = vmatpush1.msra.mxu0 %v1330
        %1444 = vmatprep.subr.mxu0 %v1335
        %1445 = vmatpush1.msra.mxu0 %v1334
        %1446 = vmatprep.subr.mxu0 %v1339
        %1447 = vmatpush1.msra.mxu0 %v1338
        %1448 = vmatprep.subr.mxu0 %v1343
        %1449 = vmatpush1.msra.mxu0 %v1342
        %1450 = vmatprep.subr.mxu0 %v1347
        %1451 = vmatpush1.msra.mxu0 %v1346
        %1452 = vmatprep.subr.mxu0 %v1351
        %1453 = vmatpush1.msra.mxu0 %v1350
        %1454 = vmatprep.subr.mxu0 %v1355
        %1455 = vmatpush1.msra.mxu0 %v1354
        %1456 = vmatprep.subr.mxu0 %v1359
        %1457 = vmatpush1.msra.mxu0 %v1358
        %1458 = vmatprep.subr.mxu0 %v1363
        %1459 = vmatpush1.msra.mxu0 %v1362
        %1460 = vmatprep.subr.mxu0 %v1367
        %1461 = vmatpush1.msra.mxu0 %v1366
        %1462 = vmatprep.subr.mxu0 %v1371
        %1463 = vmatpush1.msra.mxu0 %v1370
        %1464 = vmatprep.subr.mxu0 %v1375
        %1465 = vmatpush1.msra.mxu0 %v1374
        %1466 = vmatprep.subr.mxu0 %v1379
        %1467 = vmatpush1.msra.mxu0 %v1378
        %1468 = vmatprep.mubr.f32.mxu0 %v1253
        %1469 = vmatmul.mubr.f32.gmra.mrb[0].mxu0 %v1249
        %v1470 = vpop.f32.mrb[0].mxu0
        %v1471 = vadd.f32 %v1387, %v1470
        %v1472 = vpop.f32.mrb[0].mxu0
        %v1473 = vadd.f32 %v1391, %v1472
        %1474 = vdwg.mxu0
        %1475 = vmatprep.subr.mxu0 %v1257
        %1476 = vmatpush1.msra.mxu0 %v1256
        %1477 = vmatprep.subr.mxu0 %v1261
        %1478 = vmatpush1.msra.mxu0 %v1260
        %1479 = vmatprep.subr.mxu0 %v1265
        %1480 = vmatpush1.msra.mxu0 %v1264
        %1481 = vmatprep.subr.mxu0 %v1269
        %1482 = vmatpush1.msra.mxu0 %v1268
        %1483 = vmatprep.subr.mxu0 %v1273
        %1484 = vmatpush1.msra.mxu0 %v1272
        %1485 = vmatprep.subr.mxu0 %v1277
        %1486 = vmatpush1.msra.mxu0 %v1276
        %1487 = vmatprep.subr.mxu0 %v1281
        %1488 = vmatpush1.msra.mxu0 %v1280
        %1489 = vmatprep.subr.mxu0 %v1285
        %1490 = vmatpush1.msra.mxu0 %v1284
        %1491 = vmatprep.subr.mxu0 %v1289
        %1492 = vmatpush1.msra.mxu0 %v1288
        %1493 = vmatprep.subr.mxu0 %v1293
        %1494 = vmatpush1.msra.mxu0 %v1292
        %1495 = vmatprep.subr.mxu0 %v1297
        %1496 = vmatpush1.msra.mxu0 %v1296
        %1497 = vmatprep.subr.mxu0 %v1301
        %1498 = vmatpush1.msra.mxu0 %v1300
        %1499 = vmatprep.subr.mxu0 %v1305
        %1500 = vmatpush1.msra.mxu0 %v1304
        %1501 = vmatprep.subr.mxu0 %v1309
        %1502 = vmatpush1.msra.mxu0 %v1308
        %1503 = vmatprep.subr.mxu0 %v1313
        %1504 = vmatpush1.msra.mxu0 %v1312
        %1505 = vmatprep.subr.mxu0 %v1317
        %1506 = vmatpush1.msra.mxu0 %v1316
        %1507 = vmatprep.subr.mxu0 %v1321
        %1508 = vmatpush1.msra.mxu0 %v1320
        %1509 = vmatprep.subr.mxu0 %v1325
        %1510 = vmatpush1.msra.mxu0 %v1324
        %1511 = vmatprep.subr.mxu0 %v1329
        %1512 = vmatpush1.msra.mxu0 %v1328
        %1513 = vmatprep.subr.mxu0 %v1333
        %1514 = vmatpush1.msra.mxu0 %v1332
        %1515 = vmatprep.subr.mxu0 %v1337
        %1516 = vmatpush1.msra.mxu0 %v1336
        %1517 = vmatprep.subr.mxu0 %v1341
        %1518 = vmatpush1.msra.mxu0 %v1340
        %1519 = vmatprep.subr.mxu0 %v1345
        %1520 = vmatpush1.msra.mxu0 %v1344
        %1521 = vmatprep.subr.mxu0 %v1349
        %1522 = vmatpush1.msra.mxu0 %v1348
        %1523 = vmatprep.subr.mxu0 %v1353
        %1524 = vmatpush1.msra.mxu0 %v1352
        %1525 = vmatprep.subr.mxu0 %v1357
        %1526 = vmatpush1.msra.mxu0 %v1356
        %1527 = vmatprep.subr.mxu0 %v1361
        %1528 = vmatpush1.msra.mxu0 %v1360
        %1529 = vmatprep.subr.mxu0 %v1365
        %1530 = vmatpush1.msra.mxu0 %v1364
        %1531 = vmatprep.subr.mxu0 %v1369
        %1532 = vmatpush1.msra.mxu0 %v1368
        %1533 = vmatprep.subr.mxu0 %v1373
        %1534 = vmatpush1.msra.mxu0 %v1372
        %1535 = vmatprep.subr.mxu0 %v1377
        %1536 = vmatpush1.msra.mxu0 %v1376
        %1537 = vmatprep.subr.mxu0 %v1381
        %1538 = vmatpush1.msra.mxu0 %v1380
        %1539 = vmatprep.mubr.f32.mxu0 %v1253
        %1540 = vmatmul.mubr.f32.gmra.mrb[0].mxu0 %v1249
        %v1541 = vpop.f32.mrb[0].mxu0
        %v1542 = vadd.f32 %v1395, %v1541
        %v1543 = vpop.f32.mrb[0].mxu0
        %v1544 = vadd.f32 %v1399, %v1543
        %1545 = vdwg.mxu0
        %s1546 = scalar_lea.vmem [#allocation4], 16
        %v1547 = vld [vmem:[%s1546] sm:$0xff]
        %v1548 = vmul.f32 %v1471, 0.5
        %v1549 = vtanh.pop %v1548
        %v1550 = vmul.f32 %v1549, 0.5
        %v1551 = vadd.f32 %v1550, 0.5
        %v1552 = vmul.f32 %v1473, 0.5
        %v1553 = vtanh.pop %v1552
        %v1554 = vmul.f32 %v1553, 0.5
        %v1555 = vadd.f32 %v1554, 0.5
        %v1556 = vtanh.pop %v1542
        %v1557 = vmul.f32 %v1544, 0.5
        %v1558 = vtanh.pop %v1557
        %v1559 = vmul.f32 %v1558, 0.5
        %v1560 = vadd.f32 %v1559, 0.5
        %v1561 = vmul.f32 %v1555, %v1547
        %v1562 = vmul.f32 %v1551, %v1556
        %v1563 = vadd.f32 %v1561, %v1562
        %v1564 = vtanh.pop %v1563
        %v1565 = vmul.f32 %v1560, %v1564
        %1566 = vst [vmem:[%s1252] sm:$0xff] %v1565
        %1567 = vst [vmem:[%s1546] sm:$0xff] %v1563
        %v1568 = vld [vmem:[#allocation2 + $0x20] sm:$0xff]
        %v1569 = vld [vmem:[#allocation2 + $0x28] sm:$0xff]
        %v1570 = vld [vmem:[#allocation2 + $0x30] sm:$0xff]
        %v1571 = vld [vmem:[#allocation2 + $0x38] sm:$0xff]
        %v1572 = vld [vmem:[#allocation3] sm:$0xff]
        %v1573 = vld [vmem:[#allocation7] sm:$0xff]
        %v1574 = vld [vmem:[#allocation7 + $0x8] sm:$0xff]
        %v1575 = vld [vmem:[#allocation7 + $0x10] sm:$0xff]
        %v1576 = vld [vmem:[#allocation7 + $0x18] sm:$0xff]
        %v1577 = vld [vmem:[#allocation7 + $0x20] sm:$0xff]
        %v1578 = vld [vmem:[#allocation7 + $0x28] sm:$0xff]
        %v1579 = vld [vmem:[#allocation7 + $0x30] sm:$0xff]
        %v1580 = vld [vmem:[#allocation7 + $0x38] sm:$0xff]
        %v1581 = vld [vmem:[#allocation7 + $0x40] sm:$0xff]
        %v1582 = vld [vmem:[#allocation7 + $0x48] sm:$0xff]
        %v1583 = vld [vmem:[#allocation7 + $0x50] sm:$0xff]
        %v1584 = vld [vmem:[#allocation7 + $0x58] sm:$0xff]
        %v1585 = vld [vmem:[#allocation7 + $0x60] sm:$0xff]
        %v1586 = vld [vmem:[#allocation7 + $0x68] sm:$0xff]
        %v1587 = vld [vmem:[#allocation7 + $0x70] sm:$0xff]
        %v1588 = vld [vmem:[#allocation7 + $0x78] sm:$0xff]
        %v1589 = vld [vmem:[#allocation7 + $0x80] sm:$0xff]
        %v1590 = vld [vmem:[#allocation7 + $0x88] sm:$0xff]
        %v1591 = vld [vmem:[#allocation7 + $0x90] sm:$0xff]
        %v1592 = vld [vmem:[#allocation7 + $0x98] sm:$0xff]
        %v1593 = vld [vmem:[#allocation7 + $0xa0] sm:$0xff]
        %v1594 = vld [vmem:[#allocation7 + $0xa8] sm:$0xff]
        %v1595 = vld [vmem:[#allocation7 + $0xb0] sm:$0xff]
        %v1596 = vld [vmem:[#allocation7 + $0xb8] sm:$0xff]
        %v1597 = vld [vmem:[#allocation7 + $0xc0] sm:$0xff]
        %v1598 = vld [vmem:[#allocation7 + $0xc8] sm:$0xff]
        %v1599 = vld [vmem:[#allocation7 + $0xd0] sm:$0xff]
        %v1600 = vld [vmem:[#allocation7 + $0xd8] sm:$0xff]
        %v1601 = vld [vmem:[#allocation7 + $0xe0] sm:$0xff]
        %v1602 = vld [vmem:[#allocation7 + $0xe8] sm:$0xff]
        %v1603 = vld [vmem:[#allocation7 + $0xf0] sm:$0xff]
        %v1604 = vld [vmem:[#allocation7 + $0xf8] sm:$0xff]
        %v1605 = vld [vmem:[#allocation7 + $0x100] sm:$0xff]
        %v1606 = vld [vmem:[#allocation7 + $0x108] sm:$0xff]
        %v1607 = vld [vmem:[#allocation7 + $0x110] sm:$0xff]
        %v1608 = vld [vmem:[#allocation7 + $0x118] sm:$0xff]
        %v1609 = vld [vmem:[#allocation7 + $0x120] sm:$0xff]
        %v1610 = vld [vmem:[#allocation7 + $0x128] sm:$0xff]
        %v1611 = vld [vmem:[#allocation7 + $0x130] sm:$0xff]
        %v1612 = vld [vmem:[#allocation7 + $0x138] sm:$0xff]
        %v1613 = vld [vmem:[#allocation7 + $0x140] sm:$0xff]
        %v1614 = vld [vmem:[#allocation7 + $0x148] sm:$0xff]
        %v1615 = vld [vmem:[#allocation7 + $0x150] sm:$0xff]
        %v1616 = vld [vmem:[#allocation7 + $0x158] sm:$0xff]
        %v1617 = vld [vmem:[#allocation7 + $0x160] sm:$0xff]
        %v1618 = vld [vmem:[#allocation7 + $0x168] sm:$0xff]
        %v1619 = vld [vmem:[#allocation7 + $0x170] sm:$0xff]
        %v1620 = vld [vmem:[#allocation7 + $0x178] sm:$0xff]
        %v1621 = vld [vmem:[#allocation7 + $0x180] sm:$0xff]
        %v1622 = vld [vmem:[#allocation7 + $0x188] sm:$0xff]
        %v1623 = vld [vmem:[#allocation7 + $0x190] sm:$0xff]
        %v1624 = vld [vmem:[#allocation7 + $0x198] sm:$0xff]
        %v1625 = vld [vmem:[#allocation7 + $0x1a0] sm:$0xff]
        %v1626 = vld [vmem:[#allocation7 + $0x1a8] sm:$0xff]
        %v1627 = vld [vmem:[#allocation7 + $0x1b0] sm:$0xff]
        %v1628 = vld [vmem:[#allocation7 + $0x1b8] sm:$0xff]
        %v1629 = vld [vmem:[#allocation7 + $0x1c0] sm:$0xff]
        %v1630 = vld [vmem:[#allocation7 + $0x1c8] sm:$0xff]
        %v1631 = vld [vmem:[#allocation7 + $0x1d0] sm:$0xff]
        %v1632 = vld [vmem:[#allocation7 + $0x1d8] sm:$0xff]
        %v1633 = vld [vmem:[#allocation7 + $0x1e0] sm:$0xff]
        %v1634 = vld [vmem:[#allocation7 + $0x1e8] sm:$0xff]
        %v1635 = vld [vmem:[#allocation7 + $0x1f0] sm:$0xff]
        %v1636 = vld [vmem:[#allocation7 + $0x1f8] sm:$0xff]
        %1637 = vmatprep.subr.mxu0 %v1574
        %1638 = vmatpush1.msra.mxu0 %v1573
        %1639 = vmatprep.subr.mxu0 %v1578
        %1640 = vmatpush1.msra.mxu0 %v1577
        %1641 = vmatprep.subr.mxu0 %v1582
        %1642 = vmatpush1.msra.mxu0 %v1581
        %1643 = vmatprep.subr.mxu0 %v1586
        %1644 = vmatpush1.msra.mxu0 %v1585
        %1645 = vmatprep.subr.mxu0 %v1590
        %1646 = vmatpush1.msra.mxu0 %v1589
        %1647 = vmatprep.subr.mxu0 %v1594
        %1648 = vmatpush1.msra.mxu0 %v1593
        %1649 = vmatprep.subr.mxu0 %v1598
        %1650 = vmatpush1.msra.mxu0 %v1597
        %1651 = vmatprep.subr.mxu0 %v1602
        %1652 = vmatpush1.msra.mxu0 %v1601
        %1653 = vmatprep.subr.mxu0 %v1606
        %1654 = vmatpush1.msra.mxu0 %v1605
        %1655 = vmatprep.subr.mxu0 %v1610
        %1656 = vmatpush1.msra.mxu0 %v1609
        %1657 = vmatprep.subr.mxu0 %v1614
        %1658 = vmatpush1.msra.mxu0 %v1613
        %1659 = vmatprep.subr.mxu0 %v1618
        %1660 = vmatpush1.msra.mxu0 %v1617
        %1661 = vmatprep.subr.mxu0 %v1622
        %1662 = vmatpush1.msra.mxu0 %v1621
        %1663 = vmatprep.subr.mxu0 %v1626
        %1664 = vmatpush1.msra.mxu0 %v1625
        %1665 = vmatprep.subr.mxu0 %v1630
        %1666 = vmatpush1.msra.mxu0 %v1629
        %1667 = vmatprep.subr.mxu0 %v1634
        %1668 = vmatpush1.msra.mxu0 %v1633
        %1669 = vmatprep.subr.mxu0 0.0
        %1670 = vmatpush1.msra.mxu0 0.0
        %1671 = vmatprep.subr.mxu0 0.0
        %1672 = vmatpush1.msra.mxu0 0.0
        %1673 = vmatprep.subr.mxu0 0.0
        %1674 = vmatpush1.msra.mxu0 0.0
        %1675 = vmatprep.subr.mxu0 0.0
        %1676 = vmatpush1.msra.mxu0 0.0
        %1677 = vmatprep.subr.mxu0 0.0
        %1678 = vmatpush1.msra.mxu0 0.0
        %1679 = vmatprep.subr.mxu0 0.0
        %1680 = vmatpush1.msra.mxu0 0.0
        %1681 = vmatprep.subr.mxu0 0.0
        %1682 = vmatpush1.msra.mxu0 0.0
        %1683 = vmatprep.subr.mxu0 0.0
        %1684 = vmatpush1.msra.mxu0 0.0
        %1685 = vmatprep.subr.mxu0 0.0
        %1686 = vmatpush1.msra.mxu0 0.0
        %1687 = vmatprep.subr.mxu0 0.0
        %1688 = vmatpush1.msra.mxu0 0.0
        %1689 = vmatprep.subr.mxu0 0.0
        %1690 = vmatpush1.msra.mxu0 0.0
        %1691 = vmatprep.subr.mxu0 0.0
        %1692 = vmatpush1.msra.mxu0 0.0
        %1693 = vmatprep.subr.mxu0 0.0
        %1694 = vmatpush1.msra.mxu0 0.0
        %1695 = vmatprep.subr.mxu0 0.0
        %1696 = vmatpush1.msra.mxu0 0.0
        %1697 = vmatprep.subr.mxu0 0.0
        %1698 = vmatpush1.msra.mxu0 0.0
        %1699 = vmatprep.subr.mxu0 0.0
        %1700 = vmatpush1.msra.mxu0 0.0
        %1701 = vmatprep.mubr.f32.mxu0 0.0
        %1702 = vmatmul.mubr.f32.gmra.mrb[0].mxu0 %v1572
        %v1703 = vpop.f32.mrb[0].mxu0
        %v1704 = vadd.f32 0.0, %v1703
        %v1705 = vpop.f32.mrb[0].mxu0
        %v1706 = vadd.f32 0.0, %v1705
        %1707 = vdwg.mxu0
        %1708 = vmatprep.subr.mxu0 %v1576
        %1709 = vmatpush1.msra.mxu0 %v1575
        %1710 = vmatprep.subr.mxu0 %v1580
        %1711 = vmatpush1.msra.mxu0 %v1579
        %1712 = vmatprep.subr.mxu0 %v1584
        %1713 = vmatpush1.msra.mxu0 %v1583
        %1714 = vmatprep.subr.mxu0 %v1588
        %1715 = vmatpush1.msra.mxu0 %v1587
        %1716 = vmatprep.subr.mxu0 %v1592
        %1717 = vmatpush1.msra.mxu0 %v1591
        %1718 = vmatprep.subr.mxu0 %v1596
        %1719 = vmatpush1.msra.mxu0 %v1595
        %1720 = vmatprep.subr.mxu0 %v1600
        %1721 = vmatpush1.msra.mxu0 %v1599
        %1722 = vmatprep.subr.mxu0 %v1604
        %1723 = vmatpush1.msra.mxu0 %v1603
        %1724 = vmatprep.subr.mxu0 %v1608
        %1725 = vmatpush1.msra.mxu0 %v1607
        %1726 = vmatprep.subr.mxu0 %v1612
        %1727 = vmatpush1.msra.mxu0 %v1611
        %1728 = vmatprep.subr.mxu0 %v1616
        %1729 = vmatpush1.msra.mxu0 %v1615
        %1730 = vmatprep.subr.mxu0 %v1620
        %1731 = vmatpush1.msra.mxu0 %v1619
        %1732 = vmatprep.subr.mxu0 %v1624
        %1733 = vmatpush1.msra.mxu0 %v1623
        %1734 = vmatprep.subr.mxu0 %v1628
        %1735 = vmatpush1.msra.mxu0 %v1627
        %1736 = vmatprep.subr.mxu0 %v1632
        %1737 = vmatpush1.msra.mxu0 %v1631
        %1738 = vmatprep.subr.mxu0 %v1636
        %1739 = vmatpush1.msra.mxu0 %v1635
        %1740 = vmatprep.subr.mxu0 0.0
        %1741 = vmatpush1.msra.mxu0 0.0
        %1742 = vmatprep.subr.mxu0 0.0
        %1743 = vmatpush1.msra.mxu0 0.0
        %1744 = vmatprep.subr.mxu0 0.0
        %1745 = vmatpush1.msra.mxu0 0.0
        %1746 = vmatprep.subr.mxu0 0.0
        %1747 = vmatpush1.msra.mxu0 0.0
        %1748 = vmatprep.subr.mxu0 0.0
        %1749 = vmatpush1.msra.mxu0 0.0
        %1750 = vmatprep.subr.mxu0 0.0
        %1751 = vmatpush1.msra.mxu0 0.0
        %1752 = vmatprep.subr.mxu0 0.0
        %1753 = vmatpush1.msra.mxu0 0.0
        %1754 = vmatprep.subr.mxu0 0.0
        %1755 = vmatpush1.msra.mxu0 0.0
        %1756 = vmatprep.subr.mxu0 0.0
        %1757 = vmatpush1.msra.mxu0 0.0
        %1758 = vmatprep.subr.mxu0 0.0
        %1759 = vmatpush1.msra.mxu0 0.0
        %1760 = vmatprep.subr.mxu0 0.0
        %1761 = vmatpush1.msra.mxu0 0.0
        %1762 = vmatprep.subr.mxu0 0.0
        %1763 = vmatpush1.msra.mxu0 0.0
        %1764 = vmatprep.subr.mxu0 0.0
        %1765 = vmatpush1.msra.mxu0 0.0
        %1766 = vmatprep.subr.mxu0 0.0
        %1767 = vmatpush1.msra.mxu0 0.0
        %1768 = vmatprep.subr.mxu0 0.0
        %1769 = vmatpush1.msra.mxu0 0.0
        %1770 = vmatprep.subr.mxu0 0.0
        %1771 = vmatpush1.msra.mxu0 0.0
        %1772 = vmatprep.mubr.f32.mxu0 0.0
        %1773 = vmatmul.mubr.f32.gmra.mrb[0].mxu0 %v1572
        %v1774 = vpop.f32.mrb[0].mxu0
        %v1775 = vadd.f32 0.0, %v1774
        %v1776 = vpop.f32.mrb[0].mxu0
        %v1777 = vadd.f32 0.0, %v1776
        %1778 = vdwg.mxu0
        %v1779 = vadd.f32 %v1568, %v1704
        %v1780 = vadd.f32 %v1569, %v1706
        %v1781 = vadd.f32 %v1570, %v1775
        %v1782 = vadd.f32 %v1571, %v1777
        %v1783 = vld [vmem:[#allocation4] sm:$0xff]
        %v1784 = vmul.f32 %v1779, 0.5
        %v1785 = vtanh.pop %v1784
        %v1786 = vmul.f32 %v1785, 0.5
        %v1787 = vadd.f32 %v1786, 0.5
        %v1788 = vmul.f32 %v1780, 0.5
        %v1789 = vtanh.pop %v1788
        %v1790 = vmul.f32 %v1789, 0.5
        %v1791 = vadd.f32 %v1790, 0.5
        %v1792 = vtanh.pop %v1781
        %v1793 = vmul.f32 %v1782, 0.5
        %v1794 = vtanh.pop %v1793
        %v1795 = vmul.f32 %v1794, 0.5
        %v1796 = vadd.f32 %v1795, 0.5
        %v1797 = vmul.f32 %v1791, %v1783
        %v1798 = vmul.f32 %v1787, %v1792
        %v1799 = vadd.f32 %v1797, %v1798
        %v1800 = vtanh.pop %v1799
        %v1801 = vmul.f32 %v1796, %v1800
        %1802 = vst [vmem:[#allocation3] sm:$0xff] %v1801
        %1803 = vst [vmem:[#allocation4] sm:$0xff] %v1799
        %v1804 = vld [vmem:[%s936] sm:$0xff]
        %v1805 = vld [vmem:[#allocation9] sm:$0xff]
        %v1806 = vld [vmem:[#allocation9 + $0x8] sm:$0xff]
        %v1807 = vld [vmem:[#allocation9 + $0x10] sm:$0xff]
        %v1808 = vld [vmem:[#allocation9 + $0x18] sm:$0xff]
        %v1809 = vld [vmem:[#allocation9 + $0x20] sm:$0xff]
        %v1810 = vld [vmem:[#allocation9 + $0x28] sm:$0xff]
        %v1811 = vld [vmem:[#allocation9 + $0x30] sm:$0xff]
        %v1812 = vld [vmem:[#allocation9 + $0x38] sm:$0xff]
        %v1813 = vld [vmem:[#allocation9 + $0x40] sm:$0xff]
        %v1814 = vld [vmem:[#allocation9 + $0x48] sm:$0xff]
        %v1815 = vld [vmem:[#allocation9 + $0x50] sm:$0xff]
        %v1816 = vld [vmem:[#allocation9 + $0x58] sm:$0xff]
        %v1817 = vld [vmem:[#allocation9 + $0x60] sm:$0xff]
        %v1818 = vld [vmem:[#allocation9 + $0x68] sm:$0xff]
        %v1819 = vld [vmem:[#allocation9 + $0x70] sm:$0xff]
        %v1820 = vld [vmem:[#allocation9 + $0x78] sm:$0xff]
        %v1821 = vld [vmem:[#allocation9 + $0x80] sm:$0xff]
        %v1822 = vld [vmem:[#allocation9 + $0x88] sm:$0xff]
        %v1823 = vld [vmem:[#allocation9 + $0x90] sm:$0xff]
        %v1824 = vld [vmem:[#allocation9 + $0x98] sm:$0xff]
        %v1825 = vld [vmem:[#allocation9 + $0xa0] sm:$0xff]
        %v1826 = vld [vmem:[#allocation9 + $0xa8] sm:$0xff]
        %v1827 = vld [vmem:[#allocation9 + $0xb0] sm:$0xff]
        %v1828 = vld [vmem:[#allocation9 + $0xb8] sm:$0xff]
        %v1829 = vld [vmem:[#allocation9 + $0xc0] sm:$0xff]
        %v1830 = vld [vmem:[#allocation9 + $0xc8] sm:$0xff]
        %v1831 = vld [vmem:[#allocation9 + $0xd0] sm:$0xff]
        %v1832 = vld [vmem:[#allocation9 + $0xd8] sm:$0xff]
        %v1833 = vld [vmem:[#allocation9 + $0xe0] sm:$0xff]
        %v1834 = vld [vmem:[#allocation9 + $0xe8] sm:$0xff]
        %v1835 = vld [vmem:[#allocation9 + $0xf0] sm:$0xff]
        %v1836 = vld [vmem:[#allocation9 + $0xf8] sm:$0xff]
        %v1837 = vld [vmem:[#allocation9 + $0x100] sm:$0xff]
        %v1838 = vld [vmem:[#allocation9 + $0x108] sm:$0xff]
        %v1839 = vld [vmem:[#allocation9 + $0x110] sm:$0xff]
        %v1840 = vld [vmem:[#allocation9 + $0x118] sm:$0xff]
        %v1841 = vld [vmem:[#allocation9 + $0x120] sm:$0xff]
        %v1842 = vld [vmem:[#allocation9 + $0x128] sm:$0xff]
        %v1843 = vld [vmem:[#allocation9 + $0x130] sm:$0xff]
        %v1844 = vld [vmem:[#allocation9 + $0x138] sm:$0xff]
        %v1845 = vld [vmem:[#allocation9 + $0x140] sm:$0xff]
        %v1846 = vld [vmem:[#allocation9 + $0x148] sm:$0xff]
        %v1847 = vld [vmem:[#allocation9 + $0x150] sm:$0xff]
        %v1848 = vld [vmem:[#allocation9 + $0x158] sm:$0xff]
        %v1849 = vld [vmem:[#allocation9 + $0x160] sm:$0xff]
        %v1850 = vld [vmem:[#allocation9 + $0x168] sm:$0xff]
        %v1851 = vld [vmem:[#allocation9 + $0x170] sm:$0xff]
        %v1852 = vld [vmem:[#allocation9 + $0x178] sm:$0xff]
        %v1853 = vld [vmem:[#allocation9 + $0x180] sm:$0xff]
        %v1854 = vld [vmem:[#allocation9 + $0x188] sm:$0xff]
        %v1855 = vld [vmem:[#allocation9 + $0x190] sm:$0xff]
        %v1856 = vld [vmem:[#allocation9 + $0x198] sm:$0xff]
        %v1857 = vld [vmem:[#allocation9 + $0x1a0] sm:$0xff]
        %v1858 = vld [vmem:[#allocation9 + $0x1a8] sm:$0xff]
        %v1859 = vld [vmem:[#allocation9 + $0x1b0] sm:$0xff]
        %v1860 = vld [vmem:[#allocation9 + $0x1b8] sm:$0xff]
        %v1861 = vld [vmem:[#allocation9 + $0x1c0] sm:$0xff]
        %v1862 = vld [vmem:[#allocation9 + $0x1c8] sm:$0xff]
        %v1863 = vld [vmem:[#allocation9 + $0x1d0] sm:$0xff]
        %v1864 = vld [vmem:[#allocation9 + $0x1d8] sm:$0xff]
        %v1865 = vld [vmem:[#allocation9 + $0x1e0] sm:$0xff]
        %v1866 = vld [vmem:[#allocation9 + $0x1e8] sm:$0xff]
        %v1867 = vld [vmem:[#allocation9 + $0x1f0] sm:$0xff]
        %v1868 = vld [vmem:[#allocation9 + $0x1f8] sm:$0xff]
        %v1869 = vld [vmem:[#allocation9 + $0x200] sm:$0xff]
        %v1870 = vld [vmem:[#allocation9 + $0x208] sm:$0xff]
        %v1871 = vld [vmem:[#allocation9 + $0x210] sm:$0xff]
        %v1872 = vld [vmem:[#allocation9 + $0x218] sm:$0xff]
        %v1873 = vld [vmem:[#allocation9 + $0x220] sm:$0xff]
        %v1874 = vld [vmem:[#allocation9 + $0x228] sm:$0xff]
        %v1875 = vld [vmem:[#allocation9 + $0x230] sm:$0xff]
        %v1876 = vld [vmem:[#allocation9 + $0x238] sm:$0xff]
        %v1877 = vld [vmem:[#allocation9 + $0x240] sm:$0xff]
        %v1878 = vld [vmem:[#allocation9 + $0x248] sm:$0xff]
        %v1879 = vld [vmem:[#allocation9 + $0x250] sm:$0xff]
        %v1880 = vld [vmem:[#allocation9 + $0x258] sm:$0xff]
        %v1881 = vld [vmem:[#allocation9 + $0x260] sm:$0xff]
        %v1882 = vld [vmem:[#allocation9 + $0x268] sm:$0xff]
        %v1883 = vld [vmem:[#allocation9 + $0x270] sm:$0xff]
        %v1884 = vld [vmem:[#allocation9 + $0x278] sm:$0xff]
        %v1885 = vld [vmem:[#allocation9 + $0x280] sm:$0xff]
        %v1886 = vld [vmem:[#allocation9 + $0x288] sm:$0xff]
        %v1887 = vld [vmem:[#allocation9 + $0x290] sm:$0xff]
        %v1888 = vld [vmem:[#allocation9 + $0x298] sm:$0xff]
        %v1889 = vld [vmem:[#allocation9 + $0x2a0] sm:$0xff]
        %v1890 = vld [vmem:[#allocation9 + $0x2a8] sm:$0xff]
        %v1891 = vld [vmem:[#allocation9 + $0x2b0] sm:$0xff]
        %v1892 = vld [vmem:[#allocation9 + $0x2b8] sm:$0xff]
        %v1893 = vld [vmem:[#allocation9 + $0x2c0] sm:$0xff]
        %v1894 = vld [vmem:[#allocation9 + $0x2c8] sm:$0xff]
        %v1895 = vld [vmem:[#allocation9 + $0x2d0] sm:$0xff]
        %v1896 = vld [vmem:[#allocation9 + $0x2d8] sm:$0xff]
        %v1897 = vld [vmem:[#allocation9 + $0x2e0] sm:$0xff]
        %v1898 = vld [vmem:[#allocation9 + $0x2e8] sm:$0xff]
        %v1899 = vld [vmem:[#allocation9 + $0x2f0] sm:$0xff]
        %v1900 = vld [vmem:[#allocation9 + $0x2f8] sm:$0xff]
        %v1901 = vld [vmem:[#allocation9 + $0x300] sm:$0xff]
        %v1902 = vld [vmem:[#allocation9 + $0x308] sm:$0xff]
        %v1903 = vld [vmem:[#allocation9 + $0x310] sm:$0xff]
        %v1904 = vld [vmem:[#allocation9 + $0x318] sm:$0xff]
        %v1905 = vld [vmem:[#allocation9 + $0x320] sm:$0xff]
        %v1906 = vld [vmem:[#allocation9 + $0x328] sm:$0xff]
        %v1907 = vld [vmem:[#allocation9 + $0x330] sm:$0xff]
        %v1908 = vld [vmem:[#allocation9 + $0x338] sm:$0xff]
        %v1909 = vld [vmem:[#allocation9 + $0x340] sm:$0xff]
        %v1910 = vld [vmem:[#allocation9 + $0x348] sm:$0xff]
        %v1911 = vld [vmem:[#allocation9 + $0x350] sm:$0xff]
        %v1912 = vld [vmem:[#allocation9 + $0x358] sm:$0xff]
        %v1913 = vld [vmem:[#allocation9 + $0x360] sm:$0xff]
        %v1914 = vld [vmem:[#allocation9 + $0x368] sm:$0xff]
        %v1915 = vld [vmem:[#allocation9 + $0x370] sm:$0xff]
        %v1916 = vld [vmem:[#allocation9 + $0x378] sm:$0xff]
        %v1917 = vld [vmem:[#allocation9 + $0x380] sm:$0xff]
        %v1918 = vld [vmem:[#allocation9 + $0x388] sm:$0xff]
        %v1919 = vld [vmem:[#allocation9 + $0x390] sm:$0xff]
        %v1920 = vld [vmem:[#allocation9 + $0x398] sm:$0xff]
        %v1921 = vld [vmem:[#allocation9 + $0x3a0] sm:$0xff]
        %v1922 = vld [vmem:[#allocation9 + $0x3a8] sm:$0xff]
        %v1923 = vld [vmem:[#allocation9 + $0x3b0] sm:$0xff]
        %v1924 = vld [vmem:[#allocation9 + $0x3b8] sm:$0xff]
        %v1925 = vld [vmem:[#allocation9 + $0x3c0] sm:$0xff]
        %v1926 = vld [vmem:[#allocation9 + $0x3c8] sm:$0xff]
        %v1927 = vld [vmem:[#allocation9 + $0x3d0] sm:$0xff]
        %v1928 = vld [vmem:[#allocation9 + $0x3d8] sm:$0xff]
        %v1929 = vld [vmem:[#allocation9 + $0x3e0] sm:$0xff]
        %v1930 = vld [vmem:[#allocation9 + $0x3e8] sm:$0xff]
        %v1931 = vld [vmem:[#allocation9 + $0x3f0] sm:$0xff]
        %v1932 = vld [vmem:[#allocation9 + $0x3f8] sm:$0xff]
        %v1933 = vld [vmem:[%s5] sm:$0xf]
        %v1935 = vlaneseq
        %v1936 = vshrl.u32 %v1935, 7
        %v1937 = vsub.s32 0, %v1936
        %v1938 = vrot.slane %v1933, %v1937
        %v1939 = vlaneseq
        %v1940 = vshrl.u32 %v1939, 7
        %v1941 = vsub.s32 1, %v1940
        %v1942 = vrot.slane %v1933, %v1941
        %v1943 = vlaneseq
        %v1944 = vshrl.u32 %v1943, 7
        %v1945 = vsub.s32 2, %v1944
        %v1946 = vrot.slane %v1933, %v1945
        %v1947 = vlaneseq
        %v1948 = vshrl.u32 %v1947, 7
        %v1949 = vsub.s32 3, %v1948
        %v1950 = vrot.slane %v1933, %v1949
        %1955 = vmatprep.subr.mxu0 %v1806
        %1956 = vmatpush1.msra.mxu0 %v1805
        %1957 = vmatprep.subr.mxu0 %v1810
        %1958 = vmatpush1.msra.mxu0 %v1809
        %1959 = vmatprep.subr.mxu0 %v1814
        %1960 = vmatpush1.msra.mxu0 %v1813
        %1961 = vmatprep.subr.mxu0 %v1818
        %1962 = vmatpush1.msra.mxu0 %v1817
        %1963 = vmatprep.subr.mxu0 %v1822
        %1964 = vmatpush1.msra.mxu0 %v1821
        %1965 = vmatprep.subr.mxu0 %v1826
        %1966 = vmatpush1.msra.mxu0 %v1825
        %1967 = vmatprep.subr.mxu0 %v1830
        %1968 = vmatpush1.msra.mxu0 %v1829
        %1969 = vmatprep.subr.mxu0 %v1834
        %1970 = vmatpush1.msra.mxu0 %v1833
        %1971 = vmatprep.subr.mxu0 %v1838
        %1972 = vmatpush1.msra.mxu0 %v1837
        %1973 = vmatprep.subr.mxu0 %v1842
        %1974 = vmatpush1.msra.mxu0 %v1841
        %1975 = vmatprep.subr.mxu0 %v1846
        %1976 = vmatpush1.msra.mxu0 %v1845
        %1977 = vmatprep.subr.mxu0 %v1850
        %1978 = vmatpush1.msra.mxu0 %v1849
        %1979 = vmatprep.subr.mxu0 %v1854
        %1980 = vmatpush1.msra.mxu0 %v1853
        %1981 = vmatprep.subr.mxu0 %v1858
        %1982 = vmatpush1.msra.mxu0 %v1857
        %1983 = vmatprep.subr.mxu0 %v1862
        %1984 = vmatpush1.msra.mxu0 %v1861
        %1985 = vmatprep.subr.mxu0 %v1866
        %1986 = vmatpush1.msra.mxu0 %v1865
        %1987 = vmatprep.subr.mxu0 %v1870
        %1988 = vmatpush1.msra.mxu0 %v1869
        %1989 = vmatprep.subr.mxu0 %v1874
        %1990 = vmatpush1.msra.mxu0 %v1873
        %1991 = vmatprep.subr.mxu0 %v1878
        %1992 = vmatpush1.msra.mxu0 %v1877
        %1993 = vmatprep.subr.mxu0 %v1882
        %1994 = vmatpush1.msra.mxu0 %v1881
        %1995 = vmatprep.subr.mxu0 %v1886
        %1996 = vmatpush1.msra.mxu0 %v1885
        %1997 = vmatprep.subr.mxu0 %v1890
        %1998 = vmatpush1.msra.mxu0 %v1889
        %1999 = vmatprep.subr.mxu0 %v1894
        %2000 = vmatpush1.msra.mxu0 %v1893
        %2001 = vmatprep.subr.mxu0 %v1898
        %2002 = vmatpush1.msra.mxu0 %v1897
        %2003 = vmatprep.subr.mxu0 %v1902
        %2004 = vmatpush1.msra.mxu0 %v1901
        %2005 = vmatprep.subr.mxu0 %v1906
        %2006 = vmatpush1.msra.mxu0 %v1905
        %2007 = vmatprep.subr.mxu0 %v1910
        %2008 = vmatpush1.msra.mxu0 %v1909
        %2009 = vmatprep.subr.mxu0 %v1914
        %2010 = vmatpush1.msra.mxu0 %v1913
        %2011 = vmatprep.subr.mxu0 %v1918
        %2012 = vmatpush1.msra.mxu0 %v1917
        %2013 = vmatprep.subr.mxu0 %v1922
        %2014 = vmatpush1.msra.mxu0 %v1921
        %2015 = vmatprep.subr.mxu0 %v1926
        %2016 = vmatpush1.msra.mxu0 %v1925
        %2017 = vmatprep.subr.mxu0 %v1930
        %2018 = vmatpush1.msra.mxu0 %v1929
        %2019 = vmatprep.mubr.f32.mxu0 %v1804
        %2020 = vmatmul.mubr.f32.gmra.mrb[0].mxu0 %v1801
        %v2021 = vpop.f32.mrb[0].mxu0
        %v2022 = vadd.f32 %v1938, %v2021
        %v2023 = vpop.f32.mrb[0].mxu0
        %v2024 = vadd.f32 %v1942, %v2023
        %2025 = vdwg.mxu0
        %2026 = vmatprep.subr.mxu0 %v1808
        %2027 = vmatpush1.msra.mxu0 %v1807
        %2028 = vmatprep.subr.mxu0 %v1812
        %2029 = vmatpush1.msra.mxu0 %v1811
        %2030 = vmatprep.subr.mxu0 %v1816
        %2031 = vmatpush1.msra.mxu0 %v1815
        %2032 = vmatprep.subr.mxu0 %v1820
        %2033 = vmatpush1.msra.mxu0 %v1819
        %2034 = vmatprep.subr.mxu0 %v1824
        %2035 = vmatpush1.msra.mxu0 %v1823
        %2036 = vmatprep.subr.mxu0 %v1828
        %2037 = vmatpush1.msra.mxu0 %v1827
        %2038 = vmatprep.subr.mxu0 %v1832
        %2039 = vmatpush1.msra.mxu0 %v1831
        %2040 = vmatprep.subr.mxu0 %v1836
        %2041 = vmatpush1.msra.mxu0 %v1835
        %2042 = vmatprep.subr.mxu0 %v1840
        %2043 = vmatpush1.msra.mxu0 %v1839
        %2044 = vmatprep.subr.mxu0 %v1844
        %2045 = vmatpush1.msra.mxu0 %v1843
        %2046 = vmatprep.subr.mxu0 %v1848
        %2047 = vmatpush1.msra.mxu0 %v1847
        %2048 = vmatprep.subr.mxu0 %v1852
        %2049 = vmatpush1.msra.mxu0 %v1851
        %2050 = vmatprep.subr.mxu0 %v1856
        %2051 = vmatpush1.msra.mxu0 %v1855
        %2052 = vmatprep.subr.mxu0 %v1860
        %2053 = vmatpush1.msra.mxu0 %v1859
        %2054 = vmatprep.subr.mxu0 %v1864
        %2055 = vmatpush1.msra.mxu0 %v1863
        %2056 = vmatprep.subr.mxu0 %v1868
        %2057 = vmatpush1.msra.mxu0 %v1867
        %2058 = vmatprep.subr.mxu0 %v1872
        %2059 = vmatpush1.msra.mxu0 %v1871
        %2060 = vmatprep.subr.mxu0 %v1876
        %2061 = vmatpush1.msra.mxu0 %v1875
        %2062 = vmatprep.subr.mxu0 %v1880
        %2063 = vmatpush1.msra.mxu0 %v1879
        %2064 = vmatprep.subr.mxu0 %v1884
        %2065 = vmatpush1.msra.mxu0 %v1883
        %2066 = vmatprep.subr.mxu0 %v1888
        %2067 = vmatpush1.msra.mxu0 %v1887
        %2068 = vmatprep.subr.mxu0 %v1892
        %2069 = vmatpush1.msra.mxu0 %v1891
        %2070 = vmatprep.subr.mxu0 %v1896
        %2071 = vmatpush1.msra.mxu0 %v1895
        %2072 = vmatprep.subr.mxu0 %v1900
        %2073 = vmatpush1.msra.mxu0 %v1899
        %2074 = vmatprep.subr.mxu0 %v1904
        %2075 = vmatpush1.msra.mxu0 %v1903
        %2076 = vmatprep.subr.mxu0 %v1908
        %2077 = vmatpush1.msra.mxu0 %v1907
        %2078 = vmatprep.subr.mxu0 %v1912
        %2079 = vmatpush1.msra.mxu0 %v1911
        %2080 = vmatprep.subr.mxu0 %v1916
        %2081 = vmatpush1.msra.mxu0 %v1915
        %2082 = vmatprep.subr.mxu0 %v1920
        %2083 = vmatpush1.msra.mxu0 %v1919
        %2084 = vmatprep.subr.mxu0 %v1924
        %2085 = vmatpush1.msra.mxu0 %v1923
        %2086 = vmatprep.subr.mxu0 %v1928
        %2087 = vmatpush1.msra.mxu0 %v1927
        %2088 = vmatprep.subr.mxu0 %v1932
        %2089 = vmatpush1.msra.mxu0 %v1931
        %2090 = vmatprep.mubr.f32.mxu0 %v1804
        %2091 = vmatmul.mubr.f32.gmra.mrb[0].mxu0 %v1801
        %v2092 = vpop.f32.mrb[0].mxu0
        %v2093 = vadd.f32 %v1946, %v2092
        %v2094 = vpop.f32.mrb[0].mxu0
        %v2095 = vadd.f32 %v1950, %v2094
        %2096 = vdwg.mxu0
        %v2097 = vld [vmem:[%s1230] sm:$0xff]
        %v2098 = vmul.f32 %v2022, 0.5
        %v2099 = vtanh.pop %v2098
        %v2100 = vmul.f32 %v2099, 0.5
        %v2101 = vadd.f32 %v2100, 0.5
        %v2102 = vmul.f32 %v2024, 0.5
        %v2103 = vtanh.pop %v2102
        %v2104 = vmul.f32 %v2103, 0.5
        %v2105 = vadd.f32 %v2104, 0.5
        %v2106 = vtanh.pop %v2093
        %v2107 = vmul.f32 %v2095, 0.5
        %v2108 = vtanh.pop %v2107
        %v2109 = vmul.f32 %v2108, 0.5
        %v2110 = vadd.f32 %v2109, 0.5
        %v2111 = vmul.f32 %v2105, %v2097
        %v2112 = vmul.f32 %v2101, %v2106
        %v2113 = vadd.f32 %v2111, %v2112
        %v2114 = vtanh.pop %v2113
        %v2115 = vmul.f32 %v2110, %v2114
        %2116 = vst [vmem:[%s936] sm:$0xff] %v2115
        %2117 = vst [vmem:[%s1230] sm:$0xff] %v2113
        %v2118 = vld [vmem:[%s1252] sm:$0xff]
        %v2119 = vld [vmem:[#allocation10] sm:$0xff]
        %v2120 = vld [vmem:[#allocation10 + $0x8] sm:$0xff]
        %v2121 = vld [vmem:[#allocation10 + $0x10] sm:$0xff]
        %v2122 = vld [vmem:[#allocation10 + $0x18] sm:$0xff]
        %v2123 = vld [vmem:[#allocation10 + $0x20] sm:$0xff]
        %v2124 = vld [vmem:[#allocation10 + $0x28] sm:$0xff]
        %v2125 = vld [vmem:[#allocation10 + $0x30] sm:$0xff]
        %v2126 = vld [vmem:[#allocation10 + $0x38] sm:$0xff]
        %v2127 = vld [vmem:[#allocation10 + $0x40] sm:$0xff]
        %v2128 = vld [vmem:[#allocation10 + $0x48] sm:$0xff]
        %v2129 = vld [vmem:[#allocation10 + $0x50] sm:$0xff]
        %v2130 = vld [vmem:[#allocation10 + $0x58] sm:$0xff]
        %v2131 = vld [vmem:[#allocation10 + $0x60] sm:$0xff]
        %v2132 = vld [vmem:[#allocation10 + $0x68] sm:$0xff]
        %v2133 = vld [vmem:[#allocation10 + $0x70] sm:$0xff]
        %v2134 = vld [vmem:[#allocation10 + $0x78] sm:$0xff]
        %v2135 = vld [vmem:[#allocation10 + $0x80] sm:$0xff]
        %v2136 = vld [vmem:[#allocation10 + $0x88] sm:$0xff]
        %v2137 = vld [vmem:[#allocation10 + $0x90] sm:$0xff]
        %v2138 = vld [vmem:[#allocation10 + $0x98] sm:$0xff]
        %v2139 = vld [vmem:[#allocation10 + $0xa0] sm:$0xff]
        %v2140 = vld [vmem:[#allocation10 + $0xa8] sm:$0xff]
        %v2141 = vld [vmem:[#allocation10 + $0xb0] sm:$0xff]
        %v2142 = vld [vmem:[#allocation10 + $0xb8] sm:$0xff]
        %v2143 = vld [vmem:[#allocation10 + $0xc0] sm:$0xff]
        %v2144 = vld [vmem:[#allocation10 + $0xc8] sm:$0xff]
        %v2145 = vld [vmem:[#allocation10 + $0xd0] sm:$0xff]
        %v2146 = vld [vmem:[#allocation10 + $0xd8] sm:$0xff]
        %v2147 = vld [vmem:[#allocation10 + $0xe0] sm:$0xff]
        %v2148 = vld [vmem:[#allocation10 + $0xe8] sm:$0xff]
        %v2149 = vld [vmem:[#allocation10 + $0xf0] sm:$0xff]
        %v2150 = vld [vmem:[#allocation10 + $0xf8] sm:$0xff]
        %v2151 = vld [vmem:[#allocation10 + $0x100] sm:$0xff]
        %v2152 = vld [vmem:[#allocation10 + $0x108] sm:$0xff]
        %v2153 = vld [vmem:[#allocation10 + $0x110] sm:$0xff]
        %v2154 = vld [vmem:[#allocation10 + $0x118] sm:$0xff]
        %v2155 = vld [vmem:[#allocation10 + $0x120] sm:$0xff]
        %v2156 = vld [vmem:[#allocation10 + $0x128] sm:$0xff]
        %v2157 = vld [vmem:[#allocation10 + $0x130] sm:$0xff]
        %v2158 = vld [vmem:[#allocation10 + $0x138] sm:$0xff]
        %v2159 = vld [vmem:[#allocation10 + $0x140] sm:$0xff]
        %v2160 = vld [vmem:[#allocation10 + $0x148] sm:$0xff]
        %v2161 = vld [vmem:[#allocation10 + $0x150] sm:$0xff]
        %v2162 = vld [vmem:[#allocation10 + $0x158] sm:$0xff]
        %v2163 = vld [vmem:[#allocation10 + $0x160] sm:$0xff]
        %v2164 = vld [vmem:[#allocation10 + $0x168] sm:$0xff]
        %v2165 = vld [vmem:[#allocation10 + $0x170] sm:$0xff]
        %v2166 = vld [vmem:[#allocation10 + $0x178] sm:$0xff]
        %v2167 = vld [vmem:[#allocation10 + $0x180] sm:$0xff]
        %v2168 = vld [vmem:[#allocation10 + $0x188] sm:$0xff]
        %v2169 = vld [vmem:[#allocation10 + $0x190] sm:$0xff]
        %v2170 = vld [vmem:[#allocation10 + $0x198] sm:$0xff]
        %v2171 = vld [vmem:[#allocation10 + $0x1a0] sm:$0xff]
        %v2172 = vld [vmem:[#allocation10 + $0x1a8] sm:$0xff]
        %v2173 = vld [vmem:[#allocation10 + $0x1b0] sm:$0xff]
        %v2174 = vld [vmem:[#allocation10 + $0x1b8] sm:$0xff]
        %v2175 = vld [vmem:[#allocation10 + $0x1c0] sm:$0xff]
        %v2176 = vld [vmem:[#allocation10 + $0x1c8] sm:$0xff]
        %v2177 = vld [vmem:[#allocation10 + $0x1d0] sm:$0xff]
        %v2178 = vld [vmem:[#allocation10 + $0x1d8] sm:$0xff]
        %v2179 = vld [vmem:[#allocation10 + $0x1e0] sm:$0xff]
        %v2180 = vld [vmem:[#allocation10 + $0x1e8] sm:$0xff]
        %v2181 = vld [vmem:[#allocation10 + $0x1f0] sm:$0xff]
        %v2182 = vld [vmem:[#allocation10 + $0x1f8] sm:$0xff]
        %v2183 = vld [vmem:[#allocation10 + $0x200] sm:$0xff]
        %v2184 = vld [vmem:[#allocation10 + $0x208] sm:$0xff]
        %v2185 = vld [vmem:[#allocation10 + $0x210] sm:$0xff]
        %v2186 = vld [vmem:[#allocation10 + $0x218] sm:$0xff]
        %v2187 = vld [vmem:[#allocation10 + $0x220] sm:$0xff]
        %v2188 = vld [vmem:[#allocation10 + $0x228] sm:$0xff]
        %v2189 = vld [vmem:[#allocation10 + $0x230] sm:$0xff]
        %v2190 = vld [vmem:[#allocation10 + $0x238] sm:$0xff]
        %v2191 = vld [vmem:[#allocation10 + $0x240] sm:$0xff]
        %v2192 = vld [vmem:[#allocation10 + $0x248] sm:$0xff]
        %v2193 = vld [vmem:[#allocation10 + $0x250] sm:$0xff]
        %v2194 = vld [vmem:[#allocation10 + $0x258] sm:$0xff]
        %v2195 = vld [vmem:[#allocation10 + $0x260] sm:$0xff]
        %v2196 = vld [vmem:[#allocation10 + $0x268] sm:$0xff]
        %v2197 = vld [vmem:[#allocation10 + $0x270] sm:$0xff]
        %v2198 = vld [vmem:[#allocation10 + $0x278] sm:$0xff]
        %v2199 = vld [vmem:[#allocation10 + $0x280] sm:$0xff]
        %v2200 = vld [vmem:[#allocation10 + $0x288] sm:$0xff]
        %v2201 = vld [vmem:[#allocation10 + $0x290] sm:$0xff]
        %v2202 = vld [vmem:[#allocation10 + $0x298] sm:$0xff]
        %v2203 = vld [vmem:[#allocation10 + $0x2a0] sm:$0xff]
        %v2204 = vld [vmem:[#allocation10 + $0x2a8] sm:$0xff]
        %v2205 = vld [vmem:[#allocation10 + $0x2b0] sm:$0xff]
        %v2206 = vld [vmem:[#allocation10 + $0x2b8] sm:$0xff]
        %v2207 = vld [vmem:[#allocation10 + $0x2c0] sm:$0xff]
        %v2208 = vld [vmem:[#allocation10 + $0x2c8] sm:$0xff]
        %v2209 = vld [vmem:[#allocation10 + $0x2d0] sm:$0xff]
        %v2210 = vld [vmem:[#allocation10 + $0x2d8] sm:$0xff]
        %v2211 = vld [vmem:[#allocation10 + $0x2e0] sm:$0xff]
        %v2212 = vld [vmem:[#allocation10 + $0x2e8] sm:$0xff]
        %v2213 = vld [vmem:[#allocation10 + $0x2f0] sm:$0xff]
        %v2214 = vld [vmem:[#allocation10 + $0x2f8] sm:$0xff]
        %v2215 = vld [vmem:[#allocation10 + $0x300] sm:$0xff]
        %v2216 = vld [vmem:[#allocation10 + $0x308] sm:$0xff]
        %v2217 = vld [vmem:[#allocation10 + $0x310] sm:$0xff]
        %v2218 = vld [vmem:[#allocation10 + $0x318] sm:$0xff]
        %v2219 = vld [vmem:[#allocation10 + $0x320] sm:$0xff]
        %v2220 = vld [vmem:[#allocation10 + $0x328] sm:$0xff]
        %v2221 = vld [vmem:[#allocation10 + $0x330] sm:$0xff]
        %v2222 = vld [vmem:[#allocation10 + $0x338] sm:$0xff]
        %v2223 = vld [vmem:[#allocation10 + $0x340] sm:$0xff]
        %v2224 = vld [vmem:[#allocation10 + $0x348] sm:$0xff]
        %v2225 = vld [vmem:[#allocation10 + $0x350] sm:$0xff]
        %v2226 = vld [vmem:[#allocation10 + $0x358] sm:$0xff]
        %v2227 = vld [vmem:[#allocation10 + $0x360] sm:$0xff]
        %v2228 = vld [vmem:[#allocation10 + $0x368] sm:$0xff]
        %v2229 = vld [vmem:[#allocation10 + $0x370] sm:$0xff]
        %v2230 = vld [vmem:[#allocation10 + $0x378] sm:$0xff]
        %v2231 = vld [vmem:[#allocation10 + $0x380] sm:$0xff]
        %v2232 = vld [vmem:[#allocation10 + $0x388] sm:$0xff]
        %v2233 = vld [vmem:[#allocation10 + $0x390] sm:$0xff]
        %v2234 = vld [vmem:[#allocation10 + $0x398] sm:$0xff]
        %v2235 = vld [vmem:[#allocation10 + $0x3a0] sm:$0xff]
        %v2236 = vld [vmem:[#allocation10 + $0x3a8] sm:$0xff]
        %v2237 = vld [vmem:[#allocation10 + $0x3b0] sm:$0xff]
        %v2238 = vld [vmem:[#allocation10 + $0x3b8] sm:$0xff]
        %v2239 = vld [vmem:[#allocation10 + $0x3c0] sm:$0xff]
        %v2240 = vld [vmem:[#allocation10 + $0x3c8] sm:$0xff]
        %v2241 = vld [vmem:[#allocation10 + $0x3d0] sm:$0xff]
        %v2242 = vld [vmem:[#allocation10 + $0x3d8] sm:$0xff]
        %v2243 = vld [vmem:[#allocation10 + $0x3e0] sm:$0xff]
        %v2244 = vld [vmem:[#allocation10 + $0x3e8] sm:$0xff]
        %v2245 = vld [vmem:[#allocation10 + $0x3f0] sm:$0xff]
        %v2246 = vld [vmem:[#allocation10 + $0x3f8] sm:$0xff]
        %v2247 = vld [vmem:[%s7] sm:$0xf]
        %v2249 = vlaneseq
        %v2250 = vshrl.u32 %v2249, 7
        %v2251 = vsub.s32 0, %v2250
        %v2252 = vrot.slane %v2247, %v2251
        %v2253 = vlaneseq
        %v2254 = vshrl.u32 %v2253, 7
        %v2255 = vsub.s32 1, %v2254
        %v2256 = vrot.slane %v2247, %v2255
        %v2257 = vlaneseq
        %v2258 = vshrl.u32 %v2257, 7
        %v2259 = vsub.s32 2, %v2258
        %v2260 = vrot.slane %v2247, %v2259
        %v2261 = vlaneseq
        %v2262 = vshrl.u32 %v2261, 7
        %v2263 = vsub.s32 3, %v2262
        %v2264 = vrot.slane %v2247, %v2263
        %2269 = vmatprep.subr.mxu0 %v2120
        %2270 = vmatpush1.msra.mxu0 %v2119
        %2271 = vmatprep.subr.mxu0 %v2124
        %2272 = vmatpush1.msra.mxu0 %v2123
        %2273 = vmatprep.subr.mxu0 %v2128
        %2274 = vmatpush1.msra.mxu0 %v2127
        %2275 = vmatprep.subr.mxu0 %v2132
        %2276 = vmatpush1.msra.mxu0 %v2131
        %2277 = vmatprep.subr.mxu0 %v2136
        %2278 = vmatpush1.msra.mxu0 %v2135
        %2279 = vmatprep.subr.mxu0 %v2140
        %2280 = vmatpush1.msra.mxu0 %v2139
        %2281 = vmatprep.subr.mxu0 %v2144
        %2282 = vmatpush1.msra.mxu0 %v2143
        %2283 = vmatprep.subr.mxu0 %v2148
        %2284 = vmatpush1.msra.mxu0 %v2147
        %2285 = vmatprep.subr.mxu0 %v2152
        %2286 = vmatpush1.msra.mxu0 %v2151
        %2287 = vmatprep.subr.mxu0 %v2156
        %2288 = vmatpush1.msra.mxu0 %v2155
        %2289 = vmatprep.subr.mxu0 %v2160
        %2290 = vmatpush1.msra.mxu0 %v2159
        %2291 = vmatprep.subr.mxu0 %v2164
        %2292 = vmatpush1.msra.mxu0 %v2163
        %2293 = vmatprep.subr.mxu0 %v2168
        %2294 = vmatpush1.msra.mxu0 %v2167
        %2295 = vmatprep.subr.mxu0 %v2172
        %2296 = vmatpush1.msra.mxu0 %v2171
        %2297 = vmatprep.subr.mxu0 %v2176
        %2298 = vmatpush1.msra.mxu0 %v2175
        %2299 = vmatprep.subr.mxu0 %v2180
        %2300 = vmatpush1.msra.mxu0 %v2179
        %2301 = vmatprep.subr.mxu0 %v2184
        %2302 = vmatpush1.msra.mxu0 %v2183
        %2303 = vmatprep.subr.mxu0 %v2188
        %2304 = vmatpush1.msra.mxu0 %v2187
        %2305 = vmatprep.subr.mxu0 %v2192
        %2306 = vmatpush1.msra.mxu0 %v2191
        %2307 = vmatprep.subr.mxu0 %v2196
        %2308 = vmatpush1.msra.mxu0 %v2195
        %2309 = vmatprep.subr.mxu0 %v2200
        %2310 = vmatpush1.msra.mxu0 %v2199
        %2311 = vmatprep.subr.mxu0 %v2204
        %2312 = vmatpush1.msra.mxu0 %v2203
        %2313 = vmatprep.subr.mxu0 %v2208
        %2314 = vmatpush1.msra.mxu0 %v2207
        %2315 = vmatprep.subr.mxu0 %v2212
        %2316 = vmatpush1.msra.mxu0 %v2211
        %2317 = vmatprep.subr.mxu0 %v2216
        %2318 = vmatpush1.msra.mxu0 %v2215
        %2319 = vmatprep.subr.mxu0 %v2220
        %2320 = vmatpush1.msra.mxu0 %v2219
        %2321 = vmatprep.subr.mxu0 %v2224
        %2322 = vmatpush1.msra.mxu0 %v2223
        %2323 = vmatprep.subr.mxu0 %v2228
        %2324 = vmatpush1.msra.mxu0 %v2227
        %2325 = vmatprep.subr.mxu0 %v2232
        %2326 = vmatpush1.msra.mxu0 %v2231
        %2327 = vmatprep.subr.mxu0 %v2236
        %2328 = vmatpush1.msra.mxu0 %v2235
        %2329 = vmatprep.subr.mxu0 %v2240
        %2330 = vmatpush1.msra.mxu0 %v2239
        %2331 = vmatprep.subr.mxu0 %v2244
        %2332 = vmatpush1.msra.mxu0 %v2243
        %2333 = vmatprep.mubr.f32.mxu0 %v2118
        %2334 = vmatmul.mubr.f32.gmra.mrb[0].mxu0 %v2115
        %v2335 = vpop.f32.mrb[0].mxu0
        %v2336 = vadd.f32 %v2252, %v2335
        %v2337 = vpop.f32.mrb[0].mxu0
        %v2338 = vadd.f32 %v2256, %v2337
        %2339 = vdwg.mxu0
        %2340 = vmatprep.subr.mxu0 %v2122
        %2341 = vmatpush1.msra.mxu0 %v2121
        %2342 = vmatprep.subr.mxu0 %v2126
        %2343 = vmatpush1.msra.mxu0 %v2125
        %2344 = vmatprep.subr.mxu0 %v2130
        %2345 = vmatpush1.msra.mxu0 %v2129
        %2346 = vmatprep.subr.mxu0 %v2134
        %2347 = vmatpush1.msra.mxu0 %v2133
        %2348 = vmatprep.subr.mxu0 %v2138
        %2349 = vmatpush1.msra.mxu0 %v2137
        %2350 = vmatprep.subr.mxu0 %v2142
        %2351 = vmatpush1.msra.mxu0 %v2141
        %2352 = vmatprep.subr.mxu0 %v2146
        %2353 = vmatpush1.msra.mxu0 %v2145
        %2354 = vmatprep.subr.mxu0 %v2150
        %2355 = vmatpush1.msra.mxu0 %v2149
        %2356 = vmatprep.subr.mxu0 %v2154
        %2357 = vmatpush1.msra.mxu0 %v2153
        %2358 = vmatprep.subr.mxu0 %v2158
        %2359 = vmatpush1.msra.mxu0 %v2157
        %2360 = vmatprep.subr.mxu0 %v2162
        %2361 = vmatpush1.msra.mxu0 %v2161
        %2362 = vmatprep.subr.mxu0 %v2166
        %2363 = vmatpush1.msra.mxu0 %v2165
        %2364 = vmatprep.subr.mxu0 %v2170
        %2365 = vmatpush1.msra.mxu0 %v2169
        %2366 = vmatprep.subr.mxu0 %v2174
        %2367 = vmatpush1.msra.mxu0 %v2173
        %2368 = vmatprep.subr.mxu0 %v2178
        %2369 = vmatpush1.msra.mxu0 %v2177
        %2370 = vmatprep.subr.mxu0 %v2182
        %2371 = vmatpush1.msra.mxu0 %v2181
        %2372 = vmatprep.subr.mxu0 %v2186
        %2373 = vmatpush1.msra.mxu0 %v2185
        %2374 = vmatprep.subr.mxu0 %v2190
        %2375 = vmatpush1.msra.mxu0 %v2189
        %2376 = vmatprep.subr.mxu0 %v2194
        %2377 = vmatpush1.msra.mxu0 %v2193
        %2378 = vmatprep.subr.mxu0 %v2198
        %2379 = vmatpush1.msra.mxu0 %v2197
        %2380 = vmatprep.subr.mxu0 %v2202
        %2381 = vmatpush1.msra.mxu0 %v2201
        %2382 = vmatprep.subr.mxu0 %v2206
        %2383 = vmatpush1.msra.mxu0 %v2205
        %2384 = vmatprep.subr.mxu0 %v2210
        %2385 = vmatpush1.msra.mxu0 %v2209
        %2386 = vmatprep.subr.mxu0 %v2214
        %2387 = vmatpush1.msra.mxu0 %v2213
        %2388 = vmatprep.subr.mxu0 %v2218
        %2389 = vmatpush1.msra.mxu0 %v2217
        %2390 = vmatprep.subr.mxu0 %v2222
        %2391 = vmatpush1.msra.mxu0 %v2221
        %2392 = vmatprep.subr.mxu0 %v2226
        %2393 = vmatpush1.msra.mxu0 %v2225
        %2394 = vmatprep.subr.mxu0 %v2230
        %2395 = vmatpush1.msra.mxu0 %v2229
        %2396 = vmatprep.subr.mxu0 %v2234
        %2397 = vmatpush1.msra.mxu0 %v2233
        %2398 = vmatprep.subr.mxu0 %v2238
        %2399 = vmatpush1.msra.mxu0 %v2237
        %2400 = vmatprep.subr.mxu0 %v2242
        %2401 = vmatpush1.msra.mxu0 %v2241
        %2402 = vmatprep.subr.mxu0 %v2246
        %2403 = vmatpush1.msra.mxu0 %v2245
        %2404 = vmatprep.mubr.f32.mxu0 %v2118
        %2405 = vmatmul.mubr.f32.gmra.mrb[0].mxu0 %v2115
        %v2406 = vpop.f32.mrb[0].mxu0
        %v2407 = vadd.f32 %v2260, %v2406
        %v2408 = vpop.f32.mrb[0].mxu0
        %v2409 = vadd.f32 %v2264, %v2408
        %2410 = vdwg.mxu0
        %v2411 = vld [vmem:[%s1546] sm:$0xff]
        %v2412 = vmul.f32 %v2336, 0.5
        %v2413 = vtanh.pop %v2412
        %v2414 = vmul.f32 %v2413, 0.5
        %v2415 = vadd.f32 %v2414, 0.5
        %v2416 = vmul.f32 %v2338, 0.5
        %v2417 = vtanh.pop %v2416
        %v2418 = vmul.f32 %v2417, 0.5
        %v2419 = vadd.f32 %v2418, 0.5
        %v2420 = vtanh.pop %v2407
        %v2421 = vmul.f32 %v2409, 0.5
        %v2422 = vtanh.pop %v2421
        %v2423 = vmul.f32 %v2422, 0.5
        %v2424 = vadd.f32 %v2423, 0.5
        %v2425 = vmul.f32 %v2419, %v2411
        %v2426 = vmul.f32 %v2415, %v2420
        %v2427 = vadd.f32 %v2425, %v2426
        %v2428 = vtanh.pop %v2427
        %v2429 = vmul.f32 %v2424, %v2428
        %2430 = vst [vmem:[%s1252] sm:$0xff] %v2429
        %2431 = vst [vmem:[%s1546] sm:$0xff] %v2427
        %v2432 = vld [vmem:[#allocation2 + $0x40] sm:$0xff]
        %v2433 = vld [vmem:[#allocation2 + $0x48] sm:$0xff]
        %v2434 = vld [vmem:[#allocation2 + $0x50] sm:$0xff]
        %v2435 = vld [vmem:[#allocation2 + $0x58] sm:$0xff]
        %v2436 = vld [vmem:[#allocation3] sm:$0xff]
        %v2437 = vld [vmem:[#allocation7] sm:$0xff]
        %v2438 = vld [vmem:[#allocation7 + $0x8] sm:$0xff]
        %v2439 = vld [vmem:[#allocation7 + $0x10] sm:$0xff]
        %v2440 = vld [vmem:[#allocation7 + $0x18] sm:$0xff]
        %v2441 = vld [vmem:[#allocation7 + $0x20] sm:$0xff]
        %v2442 = vld [vmem:[#allocation7 + $0x28] sm:$0xff]
        %v2443 = vld [vmem:[#allocation7 + $0x30] sm:$0xff]
        %v2444 = vld [vmem:[#allocation7 + $0x38] sm:$0xff]
        %v2445 = vld [vmem:[#allocation7 + $0x40] sm:$0xff]
        %v2446 = vld [vmem:[#allocation7 + $0x48] sm:$0xff]
        %v2447 = vld [vmem:[#allocation7 + $0x50] sm:$0xff]
        %v2448 = vld [vmem:[#allocation7 + $0x58] sm:$0xff]
        %v2449 = vld [vmem:[#allocation7 + $0x60] sm:$0xff]
        %v2450 = vld [vmem:[#allocation7 + $0x68] sm:$0xff]
        %v2451 = vld [vmem:[#allocation7 + $0x70] sm:$0xff]
        %v2452 = vld [vmem:[#allocation7 + $0x78] sm:$0xff]
        %v2453 = vld [vmem:[#allocation7 + $0x80] sm:$0xff]
        %v2454 = vld [vmem:[#allocation7 + $0x88] sm:$0xff]
        %v2455 = vld [vmem:[#allocation7 + $0x90] sm:$0xff]
        %v2456 = vld [vmem:[#allocation7 + $0x98] sm:$0xff]
        %v2457 = vld [vmem:[#allocation7 + $0xa0] sm:$0xff]
        %v2458 = vld [vmem:[#allocation7 + $0xa8] sm:$0xff]
        %v2459 = vld [vmem:[#allocation7 + $0xb0] sm:$0xff]
        %v2460 = vld [vmem:[#allocation7 + $0xb8] sm:$0xff]
        %v2461 = vld [vmem:[#allocation7 + $0xc0] sm:$0xff]
        %v2462 = vld [vmem:[#allocation7 + $0xc8] sm:$0xff]
        %v2463 = vld [vmem:[#allocation7 + $0xd0] sm:$0xff]
        %v2464 = vld [vmem:[#allocation7 + $0xd8] sm:$0xff]
        %v2465 = vld [vmem:[#allocation7 + $0xe0] sm:$0xff]
        %v2466 = vld [vmem:[#allocation7 + $0xe8] sm:$0xff]
        %v2467 = vld [vmem:[#allocation7 + $0xf0] sm:$0xff]
        %v2468 = vld [vmem:[#allocation7 + $0xf8] sm:$0xff]
        %v2469 = vld [vmem:[#allocation7 + $0x100] sm:$0xff]
        %v2470 = vld [vmem:[#allocation7 + $0x108] sm:$0xff]
        %v2471 = vld [vmem:[#allocation7 + $0x110] sm:$0xff]
        %v2472 = vld [vmem:[#allocation7 + $0x118] sm:$0xff]
        %v2473 = vld [vmem:[#allocation7 + $0x120] sm:$0xff]
        %v2474 = vld [vmem:[#allocation7 + $0x128] sm:$0xff]
        %v2475 = vld [vmem:[#allocation7 + $0x130] sm:$0xff]
        %v2476 = vld [vmem:[#allocation7 + $0x138] sm:$0xff]
        %v2477 = vld [vmem:[#allocation7 + $0x140] sm:$0xff]
        %v2478 = vld [vmem:[#allocation7 + $0x148] sm:$0xff]
        %v2479 = vld [vmem:[#allocation7 + $0x150] sm:$0xff]
        %v2480 = vld [vmem:[#allocation7 + $0x158] sm:$0xff]
        %v2481 = vld [vmem:[#allocation7 + $0x160] sm:$0xff]
        %v2482 = vld [vmem:[#allocation7 + $0x168] sm:$0xff]
        %v2483 = vld [vmem:[#allocation7 + $0x170] sm:$0xff]
        %v2484 = vld [vmem:[#allocation7 + $0x178] sm:$0xff]
        %v2485 = vld [vmem:[#allocation7 + $0x180] sm:$0xff]
        %v2486 = vld [vmem:[#allocation7 + $0x188] sm:$0xff]
        %v2487 = vld [vmem:[#allocation7 + $0x190] sm:$0xff]
        %v2488 = vld [vmem:[#allocation7 + $0x198] sm:$0xff]
        %v2489 = vld [vmem:[#allocation7 + $0x1a0] sm:$0xff]
        %v2490 = vld [vmem:[#allocation7 + $0x1a8] sm:$0xff]
        %v2491 = vld [vmem:[#allocation7 + $0x1b0] sm:$0xff]
        %v2492 = vld [vmem:[#allocation7 + $0x1b8] sm:$0xff]
        %v2493 = vld [vmem:[#allocation7 + $0x1c0] sm:$0xff]
        %v2494 = vld [vmem:[#allocation7 + $0x1c8] sm:$0xff]
        %v2495 = vld [vmem:[#allocation7 + $0x1d0] sm:$0xff]
        %v2496 = vld [vmem:[#allocation7 + $0x1d8] sm:$0xff]
        %v2497 = vld [vmem:[#allocation7 + $0x1e0] sm:$0xff]
        %v2498 = vld [vmem:[#allocation7 + $0x1e8] sm:$0xff]
        %v2499 = vld [vmem:[#allocation7 + $0x1f0] sm:$0xff]
        %v2500 = vld [vmem:[#allocation7 + $0x1f8] sm:$0xff]
        %2501 = vmatprep.subr.mxu0 %v2438
        %2502 = vmatpush1.msra.mxu0 %v2437
        %2503 = vmatprep.subr.mxu0 %v2442
        %2504 = vmatpush1.msra.mxu0 %v2441
        %2505 = vmatprep.subr.mxu0 %v2446
        %2506 = vmatpush1.msra.mxu0 %v2445
        %2507 = vmatprep.subr.mxu0 %v2450
        %2508 = vmatpush1.msra.mxu0 %v2449
        %2509 = vmatprep.subr.mxu0 %v2454
        %2510 = vmatpush1.msra.mxu0 %v2453
        %2511 = vmatprep.subr.mxu0 %v2458
        %2512 = vmatpush1.msra.mxu0 %v2457
        %2513 = vmatprep.subr.mxu0 %v2462
        %2514 = vmatpush1.msra.mxu0 %v2461
        %2515 = vmatprep.subr.mxu0 %v2466
        %2516 = vmatpush1.msra.mxu0 %v2465
        %2517 = vmatprep.subr.mxu0 %v2470
        %2518 = vmatpush1.msra.mxu0 %v2469
        %2519 = vmatprep.subr.mxu0 %v2474
        %2520 = vmatpush1.msra.mxu0 %v2473
        %2521 = vmatprep.subr.mxu0 %v2478
        %2522 = vmatpush1.msra.mxu0 %v2477
        %2523 = vmatprep.subr.mxu0 %v2482
        %2524 = vmatpush1.msra.mxu0 %v2481
        %2525 = vmatprep.subr.mxu0 %v2486
        %2526 = vmatpush1.msra.mxu0 %v2485
        %2527 = vmatprep.subr.mxu0 %v2490
        %2528 = vmatpush1.msra.mxu0 %v2489
        %2529 = vmatprep.subr.mxu0 %v2494
        %2530 = vmatpush1.msra.mxu0 %v2493
        %2531 = vmatprep.subr.mxu0 %v2498
        %2532 = vmatpush1.msra.mxu0 %v2497
        %2533 = vmatprep.subr.mxu0 0.0
        %2534 = vmatpush1.msra.mxu0 0.0
        %2535 = vmatprep.subr.mxu0 0.0
        %2536 = vmatpush1.msra.mxu0 0.0
        %2537 = vmatprep.subr.mxu0 0.0
        %2538 = vmatpush1.msra.mxu0 0.0
        %2539 = vmatprep.subr.mxu0 0.0
        %2540 = vmatpush1.msra.mxu0 0.0
        %2541 = vmatprep.subr.mxu0 0.0
        %2542 = vmatpush1.msra.mxu0 0.0
        %2543 = vmatprep.subr.mxu0 0.0
        %2544 = vmatpush1.msra.mxu0 0.0
        %2545 = vmatprep.subr.mxu0 0.0
        %2546 = vmatpush1.msra.mxu0 0.0
        %2547 = vmatprep.subr.mxu0 0.0
        %2548 = vmatpush1.msra.mxu0 0.0
        %2549 = vmatprep.subr.mxu0 0.0
        %2550 = vmatpush1.msra.mxu0 0.0
        %2551 = vmatprep.subr.mxu0 0.0
        %2552 = vmatpush1.msra.mxu0 0.0
        %2553 = vmatprep.subr.mxu0 0.0
        %2554 = vmatpush1.msra.mxu0 0.0
        %2555 = vmatprep.subr.mxu0 0.0
        %2556 = vmatpush1.msra.mxu0 0.0
        %2557 = vmatprep.subr.mxu0 0.0
        %2558 = vmatpush1.msra.mxu0 0.0
        %2559 = vmatprep.subr.mxu0 0.0
        %2560 = vmatpush1.msra.mxu0 0.0
        %2561 = vmatprep.subr.mxu0 0.0
        %2562 = vmatpush1.msra.mxu0 0.0
        %2563 = vmatprep.subr.mxu0 0.0
        %2564 = vmatpush1.msra.mxu0 0.0
        %2565 = vmatprep.mubr.f32.mxu0 0.0
        %2566 = vmatmul.mubr.f32.gmra.mrb[0].mxu0 %v2436
        %v2567 = vpop.f32.mrb[0].mxu0
        %v2568 = vadd.f32 0.0, %v2567
        %v2569 = vpop.f32.mrb[0].mxu0
        %v2570 = vadd.f32 0.0, %v2569
        %2571 = vdwg.mxu0
        %2572 = vmatprep.subr.mxu0 %v2440
        %2573 = vmatpush1.msra.mxu0 %v2439
        %2574 = vmatprep.subr.mxu0 %v2444
        %2575 = vmatpush1.msra.mxu0 %v2443
        %2576 = vmatprep.subr.mxu0 %v2448
        %2577 = vmatpush1.msra.mxu0 %v2447
        %2578 = vmatprep.subr.mxu0 %v2452
        %2579 = vmatpush1.msra.mxu0 %v2451
        %2580 = vmatprep.subr.mxu0 %v2456
        %2581 = vmatpush1.msra.mxu0 %v2455
        %2582 = vmatprep.subr.mxu0 %v2460
        %2583 = vmatpush1.msra.mxu0 %v2459
        %2584 = vmatprep.subr.mxu0 %v2464
        %2585 = vmatpush1.msra.mxu0 %v2463
        %2586 = vmatprep.subr.mxu0 %v2468
        %2587 = vmatpush1.msra.mxu0 %v2467
        %2588 = vmatprep.subr.mxu0 %v2472
        %2589 = vmatpush1.msra.mxu0 %v2471
        %2590 = vmatprep.subr.mxu0 %v2476
        %2591 = vmatpush1.msra.mxu0 %v2475
        %2592 = vmatprep.subr.mxu0 %v2480
        %2593 = vmatpush1.msra.mxu0 %v2479
        %2594 = vmatprep.subr.mxu0 %v2484
        %2595 = vmatpush1.msra.mxu0 %v2483
        %2596 = vmatprep.subr.mxu0 %v2488
        %2597 = vmatpush1.msra.mxu0 %v2487
        %2598 = vmatprep.subr.mxu0 %v2492
        %2599 = vmatpush1.msra.mxu0 %v2491
        %2600 = vmatprep.subr.mxu0 %v2496
        %2601 = vmatpush1.msra.mxu0 %v2495
        %2602 = vmatprep.subr.mxu0 %v2500
        %2603 = vmatpush1.msra.mxu0 %v2499
        %2604 = vmatprep.subr.mxu0 0.0
        %2605 = vmatpush1.msra.mxu0 0.0
        %2606 = vmatprep.subr.mxu0 0.0
        %2607 = vmatpush1.msra.mxu0 0.0
        %2608 = vmatprep.subr.mxu0 0.0
        %2609 = vmatpush1.msra.mxu0 0.0
        %2610 = vmatprep.subr.mxu0 0.0
        %2611 = vmatpush1.msra.mxu0 0.0
        %2612 = vmatprep.subr.mxu0 0.0
        %2613 = vmatpush1.msra.mxu0 0.0
        %2614 = vmatprep.subr.mxu0 0.0
        %2615 = vmatpush1.msra.mxu0 0.0
        %2616 = vmatprep.subr.mxu0 0.0
        %2617 = vmatpush1.msra.mxu0 0.0
        %2618 = vmatprep.subr.mxu0 0.0
        %2619 = vmatpush1.msra.mxu0 0.0
        %2620 = vmatprep.subr.mxu0 0.0
        %2621 = vmatpush1.msra.mxu0 0.0
        %2622 = vmatprep.subr.mxu0 0.0
        %2623 = vmatpush1.msra.mxu0 0.0
        %2624 = vmatprep.subr.mxu0 0.0
        %2625 = vmatpush1.msra.mxu0 0.0
        %2626 = vmatprep.subr.mxu0 0.0
        %2627 = vmatpush1.msra.mxu0 0.0
        %2628 = vmatprep.subr.mxu0 0.0
        %2629 = vmatpush1.msra.mxu0 0.0
        %2630 = vmatprep.subr.mxu0 0.0
        %2631 = vmatpush1.msra.mxu0 0.0
        %2632 = vmatprep.subr.mxu0 0.0
        %2633 = vmatpush1.msra.mxu0 0.0
        %2634 = vmatprep.subr.mxu0 0.0
        %2635 = vmatpush1.msra.mxu0 0.0
        %2636 = vmatprep.mubr.f32.mxu0 0.0
        %2637 = vmatmul.mubr.f32.gmra.mrb[0].mxu0 %v2436
        %v2638 = vpop.f32.mrb[0].mxu0
        %v2639 = vadd.f32 0.0, %v2638
        %v2640 = vpop.f32.mrb[0].mxu0
        %v2641 = vadd.f32 0.0, %v2640
        %2642 = vdwg.mxu0
        %v2643 = vadd.f32 %v2432, %v2568
        %v2644 = vadd.f32 %v2433, %v2570
        %v2645 = vadd.f32 %v2434, %v2639
        %v2646 = vadd.f32 %v2435, %v2641
        %v2647 = vld [vmem:[#allocation4] sm:$0xff]
        %v2648 = vmul.f32 %v2643, 0.5
        %v2649 = vtanh.pop %v2648
        %v2650 = vmul.f32 %v2649, 0.5
        %v2651 = vadd.f32 %v2650, 0.5
        %v2652 = vmul.f32 %v2644, 0.5
        %v2653 = vtanh.pop %v2652
        %v2654 = vmul.f32 %v2653, 0.5
        %v2655 = vadd.f32 %v2654, 0.5
        %v2656 = vtanh.pop %v2645
        %v2657 = vmul.f32 %v2646, 0.5
        %v2658 = vtanh.pop %v2657
        %v2659 = vmul.f32 %v2658, 0.5
        %v2660 = vadd.f32 %v2659, 0.5
        %v2661 = vmul.f32 %v2655, %v2647
        %v2662 = vmul.f32 %v2651, %v2656
        %v2663 = vadd.f32 %v2661, %v2662
        %v2664 = vtanh.pop %v2663
        %v2665 = vmul.f32 %v2660, %v2664
        %2666 = vst [vmem:[#allocation3] sm:$0xff] %v2665
        %2667 = vst [vmem:[#allocation4] sm:$0xff] %v2663
        %v2668 = vld [vmem:[%s936] sm:$0xff]
        %v2669 = vld [vmem:[#allocation9] sm:$0xff]
        %v2670 = vld [vmem:[#allocation9 + $0x8] sm:$0xff]
        %v2671 = vld [vmem:[#allocation9 + $0x10] sm:$0xff]
        %v2672 = vld [vmem:[#allocation9 + $0x18] sm:$0xff]
        %v2673 = vld [vmem:[#allocation9 + $0x20] sm:$0xff]
        %v2674 = vld [vmem:[#allocation9 + $0x28] sm:$0xff]
        %v2675 = vld [vmem:[#allocation9 + $0x30] sm:$0xff]
        %v2676 = vld [vmem:[#allocation9 + $0x38] sm:$0xff]
        %v2677 = vld [vmem:[#allocation9 + $0x40] sm:$0xff]
        %v2678 = vld [vmem:[#allocation9 + $0x48] sm:$0xff]
        %v2679 = vld [vmem:[#allocation9 + $0x50] sm:$0xff]
        %v2680 = vld [vmem:[#allocation9 + $0x58] sm:$0xff]
        %v2681 = vld [vmem:[#allocation9 + $0x60] sm:$0xff]
        %v2682 = vld [vmem:[#allocation9 + $0x68] sm:$0xff]
        %v2683 = vld [vmem:[#allocation9 + $0x70] sm:$0xff]
        %v2684 = vld [vmem:[#allocation9 + $0x78] sm:$0xff]
        %v2685 = vld [vmem:[#allocation9 + $0x80] sm:$0xff]
        %v2686 = vld [vmem:[#allocation9 + $0x88] sm:$0xff]
        %v2687 = vld [vmem:[#allocation9 + $0x90] sm:$0xff]
        %v2688 = vld [vmem:[#allocation9 + $0x98] sm:$0xff]
        %v2689 = vld [vmem:[#allocation9 + $0xa0] sm:$0xff]
        %v2690 = vld [vmem:[#allocation9 + $0xa8] sm:$0xff]
        %v2691 = vld [vmem:[#allocation9 + $0xb0] sm:$0xff]
        %v2692 = vld [vmem:[#allocation9 + $0xb8] sm:$0xff]
        %v2693 = vld [vmem:[#allocation9 + $0xc0] sm:$0xff]
        %v2694 = vld [vmem:[#allocation9 + $0xc8] sm:$0xff]
        %v2695 = vld [vmem:[#allocation9 + $0xd0] sm:$0xff]
        %v2696 = vld [vmem:[#allocation9 + $0xd8] sm:$0xff]
        %v2697 = vld [vmem:[#allocation9 + $0xe0] sm:$0xff]
        %v2698 = vld [vmem:[#allocation9 + $0xe8] sm:$0xff]
        %v2699 = vld [vmem:[#allocation9 + $0xf0] sm:$0xff]
        %v2700 = vld [vmem:[#allocation9 + $0xf8] sm:$0xff]
        %v2701 = vld [vmem:[#allocation9 + $0x100] sm:$0xff]
        %v2702 = vld [vmem:[#allocation9 + $0x108] sm:$0xff]
        %v2703 = vld [vmem:[#allocation9 + $0x110] sm:$0xff]
        %v2704 = vld [vmem:[#allocation9 + $0x118] sm:$0xff]
        %v2705 = vld [vmem:[#allocation9 + $0x120] sm:$0xff]
        %v2706 = vld [vmem:[#allocation9 + $0x128] sm:$0xff]
        %v2707 = vld [vmem:[#allocation9 + $0x130] sm:$0xff]
        %v2708 = vld [vmem:[#allocation9 + $0x138] sm:$0xff]
        %v2709 = vld [vmem:[#allocation9 + $0x140] sm:$0xff]
        %v2710 = vld [vmem:[#allocation9 + $0x148] sm:$0xff]
        %v2711 = vld [vmem:[#allocation9 + $0x150] sm:$0xff]
        %v2712 = vld [vmem:[#allocation9 + $0x158] sm:$0xff]
        %v2713 = vld [vmem:[#allocation9 + $0x160] sm:$0xff]
        %v2714 = vld [vmem:[#allocation9 + $0x168] sm:$0xff]
        %v2715 = vld [vmem:[#allocation9 + $0x170] sm:$0xff]
        %v2716 = vld [vmem:[#allocation9 + $0x178] sm:$0xff]
        %v2717 = vld [vmem:[#allocation9 + $0x180] sm:$0xff]
        %v2718 = vld [vmem:[#allocation9 + $0x188] sm:$0xff]
        %v2719 = vld [vmem:[#allocation9 + $0x190] sm:$0xff]
        %v2720 = vld [vmem:[#allocation9 + $0x198] sm:$0xff]
        %v2721 = vld [vmem:[#allocation9 + $0x1a0] sm:$0xff]
        %v2722 = vld [vmem:[#allocation9 + $0x1a8] sm:$0xff]
        %v2723 = vld [vmem:[#allocation9 + $0x1b0] sm:$0xff]
        %v2724 = vld [vmem:[#allocation9 + $0x1b8] sm:$0xff]
        %v2725 = vld [vmem:[#allocation9 + $0x1c0] sm:$0xff]
        %v2726 = vld [vmem:[#allocation9 + $0x1c8] sm:$0xff]
        %v2727 = vld [vmem:[#allocation9 + $0x1d0] sm:$0xff]
        %v2728 = vld [vmem:[#allocation9 + $0x1d8] sm:$0xff]
        %v2729 = vld [vmem:[#allocation9 + $0x1e0] sm:$0xff]
        %v2730 = vld [vmem:[#allocation9 + $0x1e8] sm:$0xff]
        %v2731 = vld [vmem:[#allocation9 + $0x1f0] sm:$0xff]
        %v2732 = vld [vmem:[#allocation9 + $0x1f8] sm:$0xff]
        %v2733 = vld [vmem:[#allocation9 + $0x200] sm:$0xff]
        %v2734 = vld [vmem:[#allocation9 + $0x208] sm:$0xff]
        %v2735 = vld [vmem:[#allocation9 + $0x210] sm:$0xff]
        %v2736 = vld [vmem:[#allocation9 + $0x218] sm:$0xff]
        %v2737 = vld [vmem:[#allocation9 + $0x220] sm:$0xff]
        %v2738 = vld [vmem:[#allocation9 + $0x228] sm:$0xff]
        %v2739 = vld [vmem:[#allocation9 + $0x230] sm:$0xff]
        %v2740 = vld [vmem:[#allocation9 + $0x238] sm:$0xff]
        %v2741 = vld [vmem:[#allocation9 + $0x240] sm:$0xff]
        %v2742 = vld [vmem:[#allocation9 + $0x248] sm:$0xff]
        %v2743 = vld [vmem:[#allocation9 + $0x250] sm:$0xff]
        %v2744 = vld [vmem:[#allocation9 + $0x258] sm:$0xff]
        %v2745 = vld [vmem:[#allocation9 + $0x260] sm:$0xff]
        %v2746 = vld [vmem:[#allocation9 + $0x268] sm:$0xff]
        %v2747 = vld [vmem:[#allocation9 + $0x270] sm:$0xff]
        %v2748 = vld [vmem:[#allocation9 + $0x278] sm:$0xff]
        %v2749 = vld [vmem:[#allocation9 + $0x280] sm:$0xff]
        %v2750 = vld [vmem:[#allocation9 + $0x288] sm:$0xff]
        %v2751 = vld [vmem:[#allocation9 + $0x290] sm:$0xff]
        %v2752 = vld [vmem:[#allocation9 + $0x298] sm:$0xff]
        %v2753 = vld [vmem:[#allocation9 + $0x2a0] sm:$0xff]
        %v2754 = vld [vmem:[#allocation9 + $0x2a8] sm:$0xff]
        %v2755 = vld [vmem:[#allocation9 + $0x2b0] sm:$0xff]
        %v2756 = vld [vmem:[#allocation9 + $0x2b8] sm:$0xff]
        %v2757 = vld [vmem:[#allocation9 + $0x2c0] sm:$0xff]
        %v2758 = vld [vmem:[#allocation9 + $0x2c8] sm:$0xff]
        %v2759 = vld [vmem:[#allocation9 + $0x2d0] sm:$0xff]
        %v2760 = vld [vmem:[#allocation9 + $0x2d8] sm:$0xff]
        %v2761 = vld [vmem:[#allocation9 + $0x2e0] sm:$0xff]
        %v2762 = vld [vmem:[#allocation9 + $0x2e8] sm:$0xff]
        %v2763 = vld [vmem:[#allocation9 + $0x2f0] sm:$0xff]
        %v2764 = vld [vmem:[#allocation9 + $0x2f8] sm:$0xff]
        %v2765 = vld [vmem:[#allocation9 + $0x300] sm:$0xff]
        %v2766 = vld [vmem:[#allocation9 + $0x308] sm:$0xff]
        %v2767 = vld [vmem:[#allocation9 + $0x310] sm:$0xff]
        %v2768 = vld [vmem:[#allocation9 + $0x318] sm:$0xff]
        %v2769 = vld [vmem:[#allocation9 + $0x320] sm:$0xff]
        %v2770 = vld [vmem:[#allocation9 + $0x328] sm:$0xff]
        %v2771 = vld [vmem:[#allocation9 + $0x330] sm:$0xff]
        %v2772 = vld [vmem:[#allocation9 + $0x338] sm:$0xff]
        %v2773 = vld [vmem:[#allocation9 + $0x340] sm:$0xff]
        %v2774 = vld [vmem:[#allocation9 + $0x348] sm:$0xff]
        %v2775 = vld [vmem:[#allocation9 + $0x350] sm:$0xff]
        %v2776 = vld [vmem:[#allocation9 + $0x358] sm:$0xff]
        %v2777 = vld [vmem:[#allocation9 + $0x360] sm:$0xff]
        %v2778 = vld [vmem:[#allocation9 + $0x368] sm:$0xff]
        %v2779 = vld [vmem:[#allocation9 + $0x370] sm:$0xff]
        %v2780 = vld [vmem:[#allocation9 + $0x378] sm:$0xff]
        %v2781 = vld [vmem:[#allocation9 + $0x380] sm:$0xff]
        %v2782 = vld [vmem:[#allocation9 + $0x388] sm:$0xff]
        %v2783 = vld [vmem:[#allocation9 + $0x390] sm:$0xff]
        %v2784 = vld [vmem:[#allocation9 + $0x398] sm:$0xff]
        %v2785 = vld [vmem:[#allocation9 + $0x3a0] sm:$0xff]
        %v2786 = vld [vmem:[#allocation9 + $0x3a8] sm:$0xff]
        %v2787 = vld [vmem:[#allocation9 + $0x3b0] sm:$0xff]
        %v2788 = vld [vmem:[#allocation9 + $0x3b8] sm:$0xff]
        %v2789 = vld [vmem:[#allocation9 + $0x3c0] sm:$0xff]
        %v2790 = vld [vmem:[#allocation9 + $0x3c8] sm:$0xff]
        %v2791 = vld [vmem:[#allocation9 + $0x3d0] sm:$0xff]
        %v2792 = vld [vmem:[#allocation9 + $0x3d8] sm:$0xff]
        %v2793 = vld [vmem:[#allocation9 + $0x3e0] sm:$0xff]
        %v2794 = vld [vmem:[#allocation9 + $0x3e8] sm:$0xff]
        %v2795 = vld [vmem:[#allocation9 + $0x3f0] sm:$0xff]
        %v2796 = vld [vmem:[#allocation9 + $0x3f8] sm:$0xff]
        %v2797 = vld [vmem:[%s5] sm:$0xf]
        %v2799 = vlaneseq
        %v2800 = vshrl.u32 %v2799, 7
        %v2801 = vsub.s32 0, %v2800
        %v2802 = vrot.slane %v2797, %v2801
        %v2803 = vlaneseq
        %v2804 = vshrl.u32 %v2803, 7
        %v2805 = vsub.s32 1, %v2804
        %v2806 = vrot.slane %v2797, %v2805
        %v2807 = vlaneseq
        %v2808 = vshrl.u32 %v2807, 7
        %v2809 = vsub.s32 2, %v2808
        %v2810 = vrot.slane %v2797, %v2809
        %v2811 = vlaneseq
        %v2812 = vshrl.u32 %v2811, 7
        %v2813 = vsub.s32 3, %v2812
        %v2814 = vrot.slane %v2797, %v2813
        %2819 = vmatprep.subr.mxu0 %v2670
        %2820 = vmatpush1.msra.mxu0 %v2669
        %2821 = vmatprep.subr.mxu0 %v2674
        %2822 = vmatpush1.msra.mxu0 %v2673
        %2823 = vmatprep.subr.mxu0 %v2678
        %2824 = vmatpush1.msra.mxu0 %v2677
        %2825 = vmatprep.subr.mxu0 %v2682
        %2826 = vmatpush1.msra.mxu0 %v2681
        %2827 = vmatprep.subr.mxu0 %v2686
        %2828 = vmatpush1.msra.mxu0 %v2685
        %2829 = vmatprep.subr.mxu0 %v2690
        %2830 = vmatpush1.msra.mxu0 %v2689
        %2831 = vmatprep.subr.mxu0 %v2694
        %2832 = vmatpush1.msra.mxu0 %v2693
        %2833 = vmatprep.subr.mxu0 %v2698
        %2834 = vmatpush1.msra.mxu0 %v2697
        %2835 = vmatprep.subr.mxu0 %v2702
        %2836 = vmatpush1.msra.mxu0 %v2701
        %2837 = vmatprep.subr.mxu0 %v2706
        %2838 = vmatpush1.msra.mxu0 %v2705
        %2839 = vmatprep.subr.mxu0 %v2710
        %2840 = vmatpush1.msra.mxu0 %v2709
        %2841 = vmatprep.subr.mxu0 %v2714
        %2842 = vmatpush1.msra.mxu0 %v2713
        %2843 = vmatprep.subr.mxu0 %v2718
        %2844 = vmatpush1.msra.mxu0 %v2717
        %2845 = vmatprep.subr.mxu0 %v2722
        %2846 = vmatpush1.msra.mxu0 %v2721
        %2847 = vmatprep.subr.mxu0 %v2726
        %2848 = vmatpush1.msra.mxu0 %v2725
        %2849 = vmatprep.subr.mxu0 %v2730
        %2850 = vmatpush1.msra.mxu0 %v2729
        %2851 = vmatprep.subr.mxu0 %v2734
        %2852 = vmatpush1.msra.mxu0 %v2733
        %2853 = vmatprep.subr.mxu0 %v2738
        %2854 = vmatpush1.msra.mxu0 %v2737
        %2855 = vmatprep.subr.mxu0 %v2742
        %2856 = vmatpush1.msra.mxu0 %v2741
        %2857 = vmatprep.subr.mxu0 %v2746
        %2858 = vmatpush1.msra.mxu0 %v2745
        %2859 = vmatprep.subr.mxu0 %v2750
        %2860 = vmatpush1.msra.mxu0 %v2749
        %2861 = vmatprep.subr.mxu0 %v2754
        %2862 = vmatpush1.msra.mxu0 %v2753
        %2863 = vmatprep.subr.mxu0 %v2758
        %2864 = vmatpush1.msra.mxu0 %v2757
        %2865 = vmatprep.subr.mxu0 %v2762
        %2866 = vmatpush1.msra.mxu0 %v2761
        %2867 = vmatprep.subr.mxu0 %v2766
        %2868 = vmatpush1.msra.mxu0 %v2765
        %2869 = vmatprep.subr.mxu0 %v2770
        %2870 = vmatpush1.msra.mxu0 %v2769
        %2871 = vmatprep.subr.mxu0 %v2774
        %2872 = vmatpush1.msra.mxu0 %v2773
        %2873 = vmatprep.subr.mxu0 %v2778
        %2874 = vmatpush1.msra.mxu0 %v2777
        %2875 = vmatprep.subr.mxu0 %v2782
        %2876 = vmatpush1.msra.mxu0 %v2781
        %2877 = vmatprep.subr.mxu0 %v2786
        %2878 = vmatpush1.msra.mxu0 %v2785
        %2879 = vmatprep.subr.mxu0 %v2790
        %2880 = vmatpush1.msra.mxu0 %v2789
        %2881 = vmatprep.subr.mxu0 %v2794
        %2882 = vmatpush1.msra.mxu0 %v2793
        %2883 = vmatprep.mubr.f32.mxu0 %v2668
        %2884 = vmatmul.mubr.f32.gmra.mrb[0].mxu0 %v2665
        %v2885 = vpop.f32.mrb[0].mxu0
        %v2886 = vadd.f32 %v2802, %v2885
        %v2887 = vpop.f32.mrb[0].mxu0
        %v2888 = vadd.f32 %v2806, %v2887
        %2889 = vdwg.mxu0
        %2890 = vmatprep.subr.mxu0 %v2672
        %2891 = vmatpush1.msra.mxu0 %v2671
        %2892 = vmatprep.subr.mxu0 %v2676
        %2893 = vmatpush1.msra.mxu0 %v2675
        %2894 = vmatprep.subr.mxu0 %v2680
        %2895 = vmatpush1.msra.mxu0 %v2679
        %2896 = vmatprep.subr.mxu0 %v2684
        %2897 = vmatpush1.msra.mxu0 %v2683
        %2898 = vmatprep.subr.mxu0 %v2688
        %2899 = vmatpush1.msra.mxu0 %v2687
        %2900 = vmatprep.subr.mxu0 %v2692
        %2901 = vmatpush1.msra.mxu0 %v2691
        %2902 = vmatprep.subr.mxu0 %v2696
        %2903 = vmatpush1.msra.mxu0 %v2695
        %2904 = vmatprep.subr.mxu0 %v2700
        %2905 = vmatpush1.msra.mxu0 %v2699
        %2906 = vmatprep.subr.mxu0 %v2704
        %2907 = vmatpush1.msra.mxu0 %v2703
        %2908 = vmatprep.subr.mxu0 %v2708
        %2909 = vmatpush1.msra.mxu0 %v2707
        %2910 = vmatprep.subr.mxu0 %v2712
        %2911 = vmatpush1.msra.mxu0 %v2711
        %2912 = vmatprep.subr.mxu0 %v2716
        %2913 = vmatpush1.msra.mxu0 %v2715
        %2914 = vmatprep.subr.mxu0 %v2720
        %2915 = vmatpush1.msra.mxu0 %v2719
        %2916 = vmatprep.subr.mxu0 %v2724
        %2917 = vmatpush1.msra.mxu0 %v2723
        %2918 = vmatprep.subr.mxu0 %v2728
        %2919 = vmatpush1.msra.mxu0 %v2727
        %2920 = vmatprep.subr.mxu0 %v2732
        %2921 = vmatpush1.msra.mxu0 %v2731
        %2922 = vmatprep.subr.mxu0 %v2736
        %2923 = vmatpush1.msra.mxu0 %v2735
        %2924 = vmatprep.subr.mxu0 %v2740
        %2925 = vmatpush1.msra.mxu0 %v2739
        %2926 = vmatprep.subr.mxu0 %v2744
        %2927 = vmatpush1.msra.mxu0 %v2743
        %2928 = vmatprep.subr.mxu0 %v2748
        %2929 = vmatpush1.msra.mxu0 %v2747
        %2930 = vmatprep.subr.mxu0 %v2752
        %2931 = vmatpush1.msra.mxu0 %v2751
        %2932 = vmatprep.subr.mxu0 %v2756
        %2933 = vmatpush1.msra.mxu0 %v2755
        %2934 = vmatprep.subr.mxu0 %v2760
        %2935 = vmatpush1.msra.mxu0 %v2759
        %2936 = vmatprep.subr.mxu0 %v2764
        %2937 = vmatpush1.msra.mxu0 %v2763
        %2938 = vmatprep.subr.mxu0 %v2768
        %2939 = vmatpush1.msra.mxu0 %v2767
        %2940 = vmatprep.subr.mxu0 %v2772
        %2941 = vmatpush1.msra.mxu0 %v2771
        %2942 = vmatprep.subr.mxu0 %v2776
        %2943 = vmatpush1.msra.mxu0 %v2775
        %2944 = vmatprep.subr.mxu0 %v2780
        %2945 = vmatpush1.msra.mxu0 %v2779
        %2946 = vmatprep.subr.mxu0 %v2784
        %2947 = vmatpush1.msra.mxu0 %v2783
        %2948 = vmatprep.subr.mxu0 %v2788
        %2949 = vmatpush1.msra.mxu0 %v2787
        %2950 = vmatprep.subr.mxu0 %v2792
        %2951 = vmatpush1.msra.mxu0 %v2791
        %2952 = vmatprep.subr.mxu0 %v2796
        %2953 = vmatpush1.msra.mxu0 %v2795
        %2954 = vmatprep.mubr.f32.mxu0 %v2668
        %2955 = vmatmul.mubr.f32.gmra.mrb[0].mxu0 %v2665
        %v2956 = vpop.f32.mrb[0].mxu0
        %v2957 = vadd.f32 %v2810, %v2956
        %v2958 = vpop.f32.mrb[0].mxu0
        %v2959 = vadd.f32 %v2814, %v2958
        %2960 = vdwg.mxu0
        %v2961 = vld [vmem:[%s1230] sm:$0xff]
        %v2962 = vmul.f32 %v2886, 0.5
        %v2963 = vtanh.pop %v2962
        %v2964 = vmul.f32 %v2963, 0.5
        %v2965 = vadd.f32 %v2964, 0.5
        %v2966 = vmul.f32 %v2888, 0.5
        %v2967 = vtanh.pop %v2966
        %v2968 = vmul.f32 %v2967, 0.5
        %v2969 = vadd.f32 %v2968, 0.5
        %v2970 = vtanh.pop %v2957
        %v2971 = vmul.f32 %v2959, 0.5
        %v2972 = vtanh.pop %v2971
        %v2973 = vmul.f32 %v2972, 0.5
        %v2974 = vadd.f32 %v2973, 0.5
        %v2975 = vmul.f32 %v2969, %v2961
        %v2976 = vmul.f32 %v2965, %v2970
        %v2977 = vadd.f32 %v2975, %v2976
        %v2978 = vtanh.pop %v2977
        %v2979 = vmul.f32 %v2974, %v2978
        %2980 = vst [vmem:[%s936] sm:$0xff] %v2979
        %2981 = vst [vmem:[%s1230] sm:$0xff] %v2977
        %v2982 = vld [vmem:[%s1252] sm:$0xff]
        %v2983 = vld [vmem:[#allocation10] sm:$0xff]
        %v2984 = vld [vmem:[#allocation10 + $0x8] sm:$0xff]
        %v2985 = vld [vmem:[#allocation10 + $0x10] sm:$0xff]
        %v2986 = vld [vmem:[#allocation10 + $0x18] sm:$0xff]
        %v2987 = vld [vmem:[#allocation10 + $0x20] sm:$0xff]
        %v2988 = vld [vmem:[#allocation10 + $0x28] sm:$0xff]
        %v2989 = vld [vmem:[#allocation10 + $0x30] sm:$0xff]
        %v2990 = vld [vmem:[#allocation10 + $0x38] sm:$0xff]
        %v2991 = vld [vmem:[#allocation10 + $0x40] sm:$0xff]
        %v2992 = vld [vmem:[#allocation10 + $0x48] sm:$0xff]
        %v2993 = vld [vmem:[#allocation10 + $0x50] sm:$0xff]
        %v2994 = vld [vmem:[#allocation10 + $0x58] sm:$0xff]
        %v2995 = vld [vmem:[#allocation10 + $0x60] sm:$0xff]
        %v2996 = vld [vmem:[#allocation10 + $0x68] sm:$0xff]
        %v2997 = vld [vmem:[#allocation10 + $0x70] sm:$0xff]
        %v2998 = vld [vmem:[#allocation10 + $0x78] sm:$0xff]
        %v2999 = vld [vmem:[#allocation10 + $0x80] sm:$0xff]
        %v3000 = vld [vmem:[#allocation10 + $0x88] sm:$0xff]
        %v3001 = vld [vmem:[#allocation10 + $0x90] sm:$0xff]
        %v3002 = vld [vmem:[#allocation10 + $0x98] sm:$0xff]
        %v3003 = vld [vmem:[#allocation10 + $0xa0] sm:$0xff]
        %v3004 = vld [vmem:[#allocation10 + $0xa8] sm:$0xff]
        %v3005 = vld [vmem:[#allocation10 + $0xb0] sm:$0xff]
        %v3006 = vld [vmem:[#allocation10 + $0xb8] sm:$0xff]
        %v3007 = vld [vmem:[#allocation10 + $0xc0] sm:$0xff]
        %v3008 = vld [vmem:[#allocation10 + $0xc8] sm:$0xff]
        %v3009 = vld [vmem:[#allocation10 + $0xd0] sm:$0xff]
        %v3010 = vld [vmem:[#allocation10 + $0xd8] sm:$0xff]
        %v3011 = vld [vmem:[#allocation10 + $0xe0] sm:$0xff]
        %v3012 = vld [vmem:[#allocation10 + $0xe8] sm:$0xff]
        %v3013 = vld [vmem:[#allocation10 + $0xf0] sm:$0xff]
        %v3014 = vld [vmem:[#allocation10 + $0xf8] sm:$0xff]
        %v3015 = vld [vmem:[#allocation10 + $0x100] sm:$0xff]
        %v3016 = vld [vmem:[#allocation10 + $0x108] sm:$0xff]
        %v3017 = vld [vmem:[#allocation10 + $0x110] sm:$0xff]
        %v3018 = vld [vmem:[#allocation10 + $0x118] sm:$0xff]
        %v3019 = vld [vmem:[#allocation10 + $0x120] sm:$0xff]
        %v3020 = vld [vmem:[#allocation10 + $0x128] sm:$0xff]
        %v3021 = vld [vmem:[#allocation10 + $0x130] sm:$0xff]
        %v3022 = vld [vmem:[#allocation10 + $0x138] sm:$0xff]
        %v3023 = vld [vmem:[#allocation10 + $0x140] sm:$0xff]
        %v3024 = vld [vmem:[#allocation10 + $0x148] sm:$0xff]
        %v3025 = vld [vmem:[#allocation10 + $0x150] sm:$0xff]
        %v3026 = vld [vmem:[#allocation10 + $0x158] sm:$0xff]
        %v3027 = vld [vmem:[#allocation10 + $0x160] sm:$0xff]
        %v3028 = vld [vmem:[#allocation10 + $0x168] sm:$0xff]
        %v3029 = vld [vmem:[#allocation10 + $0x170] sm:$0xff]
        %v3030 = vld [vmem:[#allocation10 + $0x178] sm:$0xff]
        %v3031 = vld [vmem:[#allocation10 + $0x180] sm:$0xff]
        %v3032 = vld [vmem:[#allocation10 + $0x188] sm:$0xff]
        %v3033 = vld [vmem:[#allocation10 + $0x190] sm:$0xff]
        %v3034 = vld [vmem:[#allocation10 + $0x198] sm:$0xff]
        %v3035 = vld [vmem:[#allocation10 + $0x1a0] sm:$0xff]
        %v3036 = vld [vmem:[#allocation10 + $0x1a8] sm:$0xff]
        %v3037 = vld [vmem:[#allocation10 + $0x1b0] sm:$0xff]
        %v3038 = vld [vmem:[#allocation10 + $0x1b8] sm:$0xff]
        %v3039 = vld [vmem:[#allocation10 + $0x1c0] sm:$0xff]
        %v3040 = vld [vmem:[#allocation10 + $0x1c8] sm:$0xff]
        %v3041 = vld [vmem:[#allocation10 + $0x1d0] sm:$0xff]
        %v3042 = vld [vmem:[#allocation10 + $0x1d8] sm:$0xff]
        %v3043 = vld [vmem:[#allocation10 + $0x1e0] sm:$0xff]
        %v3044 = vld [vmem:[#allocation10 + $0x1e8] sm:$0xff]
        %v3045 = vld [vmem:[#allocation10 + $0x1f0] sm:$0xff]
        %v3046 = vld [vmem:[#allocation10 + $0x1f8] sm:$0xff]
        %v3047 = vld [vmem:[#allocation10 + $0x200] sm:$0xff]
        %v3048 = vld [vmem:[#allocation10 + $0x208] sm:$0xff]
        %v3049 = vld [vmem:[#allocation10 + $0x210] sm:$0xff]
        %v3050 = vld [vmem:[#allocation10 + $0x218] sm:$0xff]
        %v3051 = vld [vmem:[#allocation10 + $0x220] sm:$0xff]
        %v3052 = vld [vmem:[#allocation10 + $0x228] sm:$0xff]
        %v3053 = vld [vmem:[#allocation10 + $0x230] sm:$0xff]
        %v3054 = vld [vmem:[#allocation10 + $0x238] sm:$0xff]
        %v3055 = vld [vmem:[#allocation10 + $0x240] sm:$0xff]
        %v3056 = vld [vmem:[#allocation10 + $0x248] sm:$0xff]
        %v3057 = vld [vmem:[#allocation10 + $0x250] sm:$0xff]
        %v3058 = vld [vmem:[#allocation10 + $0x258] sm:$0xff]
        %v3059 = vld [vmem:[#allocation10 + $0x260] sm:$0xff]
        %v3060 = vld [vmem:[#allocation10 + $0x268] sm:$0xff]
        %v3061 = vld [vmem:[#allocation10 + $0x270] sm:$0xff]
        %v3062 = vld [vmem:[#allocation10 + $0x278] sm:$0xff]
        %v3063 = vld [vmem:[#allocation10 + $0x280] sm:$0xff]
        %v3064 = vld [vmem:[#allocation10 + $0x288] sm:$0xff]
        %v3065 = vld [vmem:[#allocation10 + $0x290] sm:$0xff]
        %v3066 = vld [vmem:[#allocation10 + $0x298] sm:$0xff]
        %v3067 = vld [vmem:[#allocation10 + $0x2a0] sm:$0xff]
        %v3068 = vld [vmem:[#allocation10 + $0x2a8] sm:$0xff]
        %v3069 = vld [vmem:[#allocation10 + $0x2b0] sm:$0xff]
        %v3070 = vld [vmem:[#allocation10 + $0x2b8] sm:$0xff]
        %v3071 = vld [vmem:[#allocation10 + $0x2c0] sm:$0xff]
        %v3072 = vld [vmem:[#allocation10 + $0x2c8] sm:$0xff]
        %v3073 = vld [vmem:[#allocation10 + $0x2d0] sm:$0xff]
        %v3074 = vld [vmem:[#allocation10 + $0x2d8] sm:$0xff]
        %v3075 = vld [vmem:[#allocation10 + $0x2e0] sm:$0xff]
        %v3076 = vld [vmem:[#allocation10 + $0x2e8] sm:$0xff]
        %v3077 = vld [vmem:[#allocation10 + $0x2f0] sm:$0xff]
        %v3078 = vld [vmem:[#allocation10 + $0x2f8] sm:$0xff]
        %v3079 = vld [vmem:[#allocation10 + $0x300] sm:$0xff]
        %v3080 = vld [vmem:[#allocation10 + $0x308] sm:$0xff]
        %v3081 = vld [vmem:[#allocation10 + $0x310] sm:$0xff]
        %v3082 = vld [vmem:[#allocation10 + $0x318] sm:$0xff]
        %v3083 = vld [vmem:[#allocation10 + $0x320] sm:$0xff]
        %v3084 = vld [vmem:[#allocation10 + $0x328] sm:$0xff]
        %v3085 = vld [vmem:[#allocation10 + $0x330] sm:$0xff]
        %v3086 = vld [vmem:[#allocation10 + $0x338] sm:$0xff]
        %v3087 = vld [vmem:[#allocation10 + $0x340] sm:$0xff]
        %v3088 = vld [vmem:[#allocation10 + $0x348] sm:$0xff]
        %v3089 = vld [vmem:[#allocation10 + $0x350] sm:$0xff]
        %v3090 = vld [vmem:[#allocation10 + $0x358] sm:$0xff]
        %v3091 = vld [vmem:[#allocation10 + $0x360] sm:$0xff]
        %v3092 = vld [vmem:[#allocation10 + $0x368] sm:$0xff]
        %v3093 = vld [vmem:[#allocation10 + $0x370] sm:$0xff]
        %v3094 = vld [vmem:[#allocation10 + $0x378] sm:$0xff]
        %v3095 = vld [vmem:[#allocation10 + $0x380] sm:$0xff]
        %v3096 = vld [vmem:[#allocation10 + $0x388] sm:$0xff]
        %v3097 = vld [vmem:[#allocation10 + $0x390] sm:$0xff]
        %v3098 = vld [vmem:[#allocation10 + $0x398] sm:$0xff]
        %v3099 = vld [vmem:[#allocation10 + $0x3a0] sm:$0xff]
        %v3100 = vld [vmem:[#allocation10 + $0x3a8] sm:$0xff]
        %v3101 = vld [vmem:[#allocation10 + $0x3b0] sm:$0xff]
        %v3102 = vld [vmem:[#allocation10 + $0x3b8] sm:$0xff]
        %v3103 = vld [vmem:[#allocation10 + $0x3c0] sm:$0xff]
        %v3104 = vld [vmem:[#allocation10 + $0x3c8] sm:$0xff]
        %v3105 = vld [vmem:[#allocation10 + $0x3d0] sm:$0xff]
        %v3106 = vld [vmem:[#allocation10 + $0x3d8] sm:$0xff]
        %v3107 = vld [vmem:[#allocation10 + $0x3e0] sm:$0xff]
        %v3108 = vld [vmem:[#allocation10 + $0x3e8] sm:$0xff]
        %v3109 = vld [vmem:[#allocation10 + $0x3f0] sm:$0xff]
        %v3110 = vld [vmem:[#allocation10 + $0x3f8] sm:$0xff]
        %v3111 = vld [vmem:[%s7] sm:$0xf]
        %v3113 = vlaneseq
        %v3114 = vshrl.u32 %v3113, 7
        %v3115 = vsub.s32 0, %v3114
        %v3116 = vrot.slane %v3111, %v3115
        %v3117 = vlaneseq
        %v3118 = vshrl.u32 %v3117, 7
        %v3119 = vsub.s32 1, %v3118
        %v3120 = vrot.slane %v3111, %v3119
        %v3121 = vlaneseq
        %v3122 = vshrl.u32 %v3121, 7
        %v3123 = vsub.s32 2, %v3122
        %v3124 = vrot.slane %v3111, %v3123
        %v3125 = vlaneseq
        %v3126 = vshrl.u32 %v3125, 7
        %v3127 = vsub.s32 3, %v3126
        %v3128 = vrot.slane %v3111, %v3127
        %3133 = vmatprep.subr.mxu0 %v2984
        %3134 = vmatpush1.msra.mxu0 %v2983
        %3135 = vmatprep.subr.mxu0 %v2988
        %3136 = vmatpush1.msra.mxu0 %v2987
        %3137 = vmatprep.subr.mxu0 %v2992
        %3138 = vmatpush1.msra.mxu0 %v2991
        %3139 = vmatprep.subr.mxu0 %v2996
        %3140 = vmatpush1.msra.mxu0 %v2995
        %3141 = vmatprep.subr.mxu0 %v3000
        %3142 = vmatpush1.msra.mxu0 %v2999
        %3143 = vmatprep.subr.mxu0 %v3004
        %3144 = vmatpush1.msra.mxu0 %v3003
        %3145 = vmatprep.subr.mxu0 %v3008
        %3146 = vmatpush1.msra.mxu0 %v3007
        %3147 = vmatprep.subr.mxu0 %v3012
        %3148 = vmatpush1.msra.mxu0 %v3011
        %3149 = vmatprep.subr.mxu0 %v3016
        %3150 = vmatpush1.msra.mxu0 %v3015
        %3151 = vmatprep.subr.mxu0 %v3020
        %3152 = vmatpush1.msra.mxu0 %v3019
        %3153 = vmatprep.subr.mxu0 %v3024
        %3154 = vmatpush1.msra.mxu0 %v3023
        %3155 = vmatprep.subr.mxu0 %v3028
        %3156 = vmatpush1.msra.mxu0 %v3027
        %3157 = vmatprep.subr.mxu0 %v3032
        %3158 = vmatpush1.msra.mxu0 %v3031
        %3159 = vmatprep.subr.mxu0 %v3036
        %3160 = vmatpush1.msra.mxu0 %v3035
        %3161 = vmatprep.subr.mxu0 %v3040
        %3162 = vmatpush1.msra.mxu0 %v3039
        %3163 = vmatprep.subr.mxu0 %v3044
        %3164 = vmatpush1.msra.mxu0 %v3043
        %3165 = vmatprep.subr.mxu0 %v3048
        %3166 = vmatpush1.msra.mxu0 %v3047
        %3167 = vmatprep.subr.mxu0 %v3052
        %3168 = vmatpush1.msra.mxu0 %v3051
        %3169 = vmatprep.subr.mxu0 %v3056
        %3170 = vmatpush1.msra.mxu0 %v3055
        %3171 = vmatprep.subr.mxu0 %v3060
        %3172 = vmatpush1.msra.mxu0 %v3059
        %3173 = vmatprep.subr.mxu0 %v3064
        %3174 = vmatpush1.msra.mxu0 %v3063
        %3175 = vmatprep.subr.mxu0 %v3068
        %3176 = vmatpush1.msra.mxu0 %v3067
        %3177 = vmatprep.subr.mxu0 %v3072
        %3178 = vmatpush1.msra.mxu0 %v3071
        %3179 = vmatprep.subr.mxu0 %v3076
        %3180 = vmatpush1.msra.mxu0 %v3075
        %3181 = vmatprep.subr.mxu0 %v3080
        %3182 = vmatpush1.msra.mxu0 %v3079
        %3183 = vmatprep.subr.mxu0 %v3084
        %3184 = vmatpush1.msra.mxu0 %v3083
        %3185 = vmatprep.subr.mxu0 %v3088
        %3186 = vmatpush1.msra.mxu0 %v3087
        %3187 = vmatprep.subr.mxu0 %v3092
        %3188 = vmatpush1.msra.mxu0 %v3091
        %3189 = vmatprep.subr.mxu0 %v3096
        %3190 = vmatpush1.msra.mxu0 %v3095
        %3191 = vmatprep.subr.mxu0 %v3100
        %3192 = vmatpush1.msra.mxu0 %v3099
        %3193 = vmatprep.subr.mxu0 %v3104
        %3194 = vmatpush1.msra.mxu0 %v3103
        %3195 = vmatprep.subr.mxu0 %v3108
        %3196 = vmatpush1.msra.mxu0 %v3107
        %3197 = vmatprep.mubr.f32.mxu0 %v2982
        %3198 = vmatmul.mubr.f32.gmra.mrb[0].mxu0 %v2979
        %v3199 = vpop.f32.mrb[0].mxu0
        %v3200 = vadd.f32 %v3116, %v3199
        %v3201 = vpop.f32.mrb[0].mxu0
        %v3202 = vadd.f32 %v3120, %v3201
        %3203 = vdwg.mxu0
        %3204 = vmatprep.subr.mxu0 %v2986
        %3205 = vmatpush1.msra.mxu0 %v2985
        %3206 = vmatprep.subr.mxu0 %v2990
        %3207 = vmatpush1.msra.mxu0 %v2989
        %3208 = vmatprep.subr.mxu0 %v2994
        %3209 = vmatpush1.msra.mxu0 %v2993
        %3210 = vmatprep.subr.mxu0 %v2998
        %3211 = vmatpush1.msra.mxu0 %v2997
        %3212 = vmatprep.subr.mxu0 %v3002
        %3213 = vmatpush1.msra.mxu0 %v3001
        %3214 = vmatprep.subr.mxu0 %v3006
        %3215 = vmatpush1.msra.mxu0 %v3005
        %3216 = vmatprep.subr.mxu0 %v3010
        %3217 = vmatpush1.msra.mxu0 %v3009
        %3218 = vmatprep.subr.mxu0 %v3014
        %3219 = vmatpush1.msra.mxu0 %v3013
        %3220 = vmatprep.subr.mxu0 %v3018
        %3221 = vmatpush1.msra.mxu0 %v3017
        %3222 = vmatprep.subr.mxu0 %v3022
        %3223 = vmatpush1.msra.mxu0 %v3021
        %3224 = vmatprep.subr.mxu0 %v3026
        %3225 = vmatpush1.msra.mxu0 %v3025
        %3226 = vmatprep.subr.mxu0 %v3030
        %3227 = vmatpush1.msra.mxu0 %v3029
        %3228 = vmatprep.subr.mxu0 %v3034
        %3229 = vmatpush1.msra.mxu0 %v3033
        %3230 = vmatprep.subr.mxu0 %v3038
        %3231 = vmatpush1.msra.mxu0 %v3037
        %3232 = vmatprep.subr.mxu0 %v3042
        %3233 = vmatpush1.msra.mxu0 %v3041
        %3234 = vmatprep.subr.mxu0 %v3046
        %3235 = vmatpush1.msra.mxu0 %v3045
        %3236 = vmatprep.subr.mxu0 %v3050
        %3237 = vmatpush1.msra.mxu0 %v3049
        %3238 = vmatprep.subr.mxu0 %v3054
        %3239 = vmatpush1.msra.mxu0 %v3053
        %3240 = vmatprep.subr.mxu0 %v3058
        %3241 = vmatpush1.msra.mxu0 %v3057
        %3242 = vmatprep.subr.mxu0 %v3062
        %3243 = vmatpush1.msra.mxu0 %v3061
        %3244 = vmatprep.subr.mxu0 %v3066
        %3245 = vmatpush1.msra.mxu0 %v3065
        %3246 = vmatprep.subr.mxu0 %v3070
        %3247 = vmatpush1.msra.mxu0 %v3069
        %3248 = vmatprep.subr.mxu0 %v3074
        %3249 = vmatpush1.msra.mxu0 %v3073
        %3250 = vmatprep.subr.mxu0 %v3078
        %3251 = vmatpush1.msra.mxu0 %v3077
        %3252 = vmatprep.subr.mxu0 %v3082
        %3253 = vmatpush1.msra.mxu0 %v3081
        %3254 = vmatprep.subr.mxu0 %v3086
        %3255 = vmatpush1.msra.mxu0 %v3085
        %3256 = vmatprep.subr.mxu0 %v3090
        %3257 = vmatpush1.msra.mxu0 %v3089
        %3258 = vmatprep.subr.mxu0 %v3094
        %3259 = vmatpush1.msra.mxu0 %v3093
        %3260 = vmatprep.subr.mxu0 %v3098
        %3261 = vmatpush1.msra.mxu0 %v3097
        %3262 = vmatprep.subr.mxu0 %v3102
        %3263 = vmatpush1.msra.mxu0 %v3101
        %3264 = vmatprep.subr.mxu0 %v3106
        %3265 = vmatpush1.msra.mxu0 %v3105
        %3266 = vmatprep.subr.mxu0 %v3110
        %3267 = vmatpush1.msra.mxu0 %v3109
        %3268 = vmatprep.mubr.f32.mxu0 %v2982
        %3269 = vmatmul.mubr.f32.gmra.mrb[0].mxu0 %v2979
        %v3270 = vpop.f32.mrb[0].mxu0
        %v3271 = vadd.f32 %v3124, %v3270
        %v3272 = vpop.f32.mrb[0].mxu0
        %v3273 = vadd.f32 %v3128, %v3272
        %3274 = vdwg.mxu0
        %v3275 = vld [vmem:[%s1546] sm:$0xff]
        %v3276 = vmul.f32 %v3200, 0.5
        %v3277 = vtanh.pop %v3276
        %v3278 = vmul.f32 %v3277, 0.5
        %v3279 = vadd.f32 %v3278, 0.5
        %v3280 = vmul.f32 %v3202, 0.5
        %v3281 = vtanh.pop %v3280
        %v3282 = vmul.f32 %v3281, 0.5
        %v3283 = vadd.f32 %v3282, 0.5
        %v3284 = vtanh.pop %v3271
        %v3285 = vmul.f32 %v3273, 0.5
        %v3286 = vtanh.pop %v3285
        %v3287 = vmul.f32 %v3286, 0.5
        %v3288 = vadd.f32 %v3287, 0.5
        %v3289 = vmul.f32 %v3283, %v3275
        %v3290 = vmul.f32 %v3279, %v3284
        %v3291 = vadd.f32 %v3289, %v3290
        %v3292 = vtanh.pop %v3291
        %v3293 = vmul.f32 %v3288, %v3292
        %3294 = vst [vmem:[%s1252] sm:$0xff] %v3293
        %3295 = vst [vmem:[%s1546] sm:$0xff] %v3291
        %v3296 = vld [vmem:[#allocation2 + $0x60] sm:$0xff]
        %v3297 = vld [vmem:[#allocation2 + $0x68] sm:$0xff]
        %v3298 = vld [vmem:[#allocation2 + $0x70] sm:$0xff]
        %v3299 = vld [vmem:[#allocation2 + $0x78] sm:$0xff]
        %v3300 = vld [vmem:[#allocation3] sm:$0xff]
        %v3301 = vld [vmem:[#allocation7] sm:$0xff]
        %v3302 = vld [vmem:[#allocation7 + $0x8] sm:$0xff]
        %v3303 = vld [vmem:[#allocation7 + $0x10] sm:$0xff]
        %v3304 = vld [vmem:[#allocation7 + $0x18] sm:$0xff]
        %v3305 = vld [vmem:[#allocation7 + $0x20] sm:$0xff]
        %v3306 = vld [vmem:[#allocation7 + $0x28] sm:$0xff]
        %v3307 = vld [vmem:[#allocation7 + $0x30] sm:$0xff]
        %v3308 = vld [vmem:[#allocation7 + $0x38] sm:$0xff]
        %v3309 = vld [vmem:[#allocation7 + $0x40] sm:$0xff]
        %v3310 = vld [vmem:[#allocation7 + $0x48] sm:$0xff]
        %v3311 = vld [vmem:[#allocation7 + $0x50] sm:$0xff]
        %v3312 = vld [vmem:[#allocation7 + $0x58] sm:$0xff]
        %v3313 = vld [vmem:[#allocation7 + $0x60] sm:$0xff]
        %v3314 = vld [vmem:[#allocation7 + $0x68] sm:$0xff]
        %v3315 = vld [vmem:[#allocation7 + $0x70] sm:$0xff]
        %v3316 = vld [vmem:[#allocation7 + $0x78] sm:$0xff]
        %v3317 = vld [vmem:[#allocation7 + $0x80] sm:$0xff]
        %v3318 = vld [vmem:[#allocation7 + $0x88] sm:$0xff]
        %v3319 = vld [vmem:[#allocation7 + $0x90] sm:$0xff]
        %v3320 = vld [vmem:[#allocation7 + $0x98] sm:$0xff]
        %v3321 = vld [vmem:[#allocation7 + $0xa0] sm:$0xff]
        %v3322 = vld [vmem:[#allocation7 + $0xa8] sm:$0xff]
        %v3323 = vld [vmem:[#allocation7 + $0xb0] sm:$0xff]
        %v3324 = vld [vmem:[#allocation7 + $0xb8] sm:$0xff]
        %v3325 = vld [vmem:[#allocation7 + $0xc0] sm:$0xff]
        %v3326 = vld [vmem:[#allocation7 + $0xc8] sm:$0xff]
        %v3327 = vld [vmem:[#allocation7 + $0xd0] sm:$0xff]
        %v3328 = vld [vmem:[#allocation7 + $0xd8] sm:$0xff]
        %v3329 = vld [vmem:[#allocation7 + $0xe0] sm:$0xff]
        %v3330 = vld [vmem:[#allocation7 + $0xe8] sm:$0xff]
        %v3331 = vld [vmem:[#allocation7 + $0xf0] sm:$0xff]
        %v3332 = vld [vmem:[#allocation7 + $0xf8] sm:$0xff]
        %v3333 = vld [vmem:[#allocation7 + $0x100] sm:$0xff]
        %v3334 = vld [vmem:[#allocation7 + $0x108] sm:$0xff]
        %v3335 = vld [vmem:[#allocation7 + $0x110] sm:$0xff]
        %v3336 = vld [vmem:[#allocation7 + $0x118] sm:$0xff]
        %v3337 = vld [vmem:[#allocation7 + $0x120] sm:$0xff]
        %v3338 = vld [vmem:[#allocation7 + $0x128] sm:$0xff]
        %v3339 = vld [vmem:[#allocation7 + $0x130] sm:$0xff]
        %v3340 = vld [vmem:[#allocation7 + $0x138] sm:$0xff]
        %v3341 = vld [vmem:[#allocation7 + $0x140] sm:$0xff]
        %v3342 = vld [vmem:[#allocation7 + $0x148] sm:$0xff]
        %v3343 = vld [vmem:[#allocation7 + $0x150] sm:$0xff]
        %v3344 = vld [vmem:[#allocation7 + $0x158] sm:$0xff]
        %v3345 = vld [vmem:[#allocation7 + $0x160] sm:$0xff]
        %v3346 = vld [vmem:[#allocation7 + $0x168] sm:$0xff]
        %v3347 = vld [vmem:[#allocation7 + $0x170] sm:$0xff]
        %v3348 = vld [vmem:[#allocation7 + $0x178] sm:$0xff]
        %v3349 = vld [vmem:[#allocation7 + $0x180] sm:$0xff]
        %v3350 = vld [vmem:[#allocation7 + $0x188] sm:$0xff]
        %v3351 = vld [vmem:[#allocation7 + $0x190] sm:$0xff]
        %v3352 = vld [vmem:[#allocation7 + $0x198] sm:$0xff]
        %v3353 = vld [vmem:[#allocation7 + $0x1a0] sm:$0xff]
        %v3354 = vld [vmem:[#allocation7 + $0x1a8] sm:$0xff]
        %v3355 = vld [vmem:[#allocation7 + $0x1b0] sm:$0xff]
        %v3356 = vld [vmem:[#allocation7 + $0x1b8] sm:$0xff]
        %v3357 = vld [vmem:[#allocation7 + $0x1c0] sm:$0xff]
        %v3358 = vld [vmem:[#allocation7 + $0x1c8] sm:$0xff]
        %v3359 = vld [vmem:[#allocation7 + $0x1d0] sm:$0xff]
        %v3360 = vld [vmem:[#allocation7 + $0x1d8] sm:$0xff]
        %v3361 = vld [vmem:[#allocation7 + $0x1e0] sm:$0xff]
        %v3362 = vld [vmem:[#allocation7 + $0x1e8] sm:$0xff]
        %v3363 = vld [vmem:[#allocation7 + $0x1f0] sm:$0xff]
        %v3364 = vld [vmem:[#allocation7 + $0x1f8] sm:$0xff]
        %3365 = vmatprep.subr.mxu0 %v3302
        %3366 = vmatpush1.msra.mxu0 %v3301
        %3367 = vmatprep.subr.mxu0 %v3306
        %3368 = vmatpush1.msra.mxu0 %v3305
        %3369 = vmatprep.subr.mxu0 %v3310
        %3370 = vmatpush1.msra.mxu0 %v3309
        %3371 = vmatprep.subr.mxu0 %v3314
        %3372 = vmatpush1.msra.mxu0 %v3313
        %3373 = vmatprep.subr.mxu0 %v3318
        %3374 = vmatpush1.msra.mxu0 %v3317
        %3375 = vmatprep.subr.mxu0 %v3322
        %3376 = vmatpush1.msra.mxu0 %v3321
        %3377 = vmatprep.subr.mxu0 %v3326
        %3378 = vmatpush1.msra.mxu0 %v3325
        %3379 = vmatprep.subr.mxu0 %v3330
        %3380 = vmatpush1.msra.mxu0 %v3329
        %3381 = vmatprep.subr.mxu0 %v3334
        %3382 = vmatpush1.msra.mxu0 %v3333
        %3383 = vmatprep.subr.mxu0 %v3338
        %3384 = vmatpush1.msra.mxu0 %v3337
        %3385 = vmatprep.subr.mxu0 %v3342
        %3386 = vmatpush1.msra.mxu0 %v3341
        %3387 = vmatprep.subr.mxu0 %v3346
        %3388 = vmatpush1.msra.mxu0 %v3345
        %3389 = vmatprep.subr.mxu0 %v3350
        %3390 = vmatpush1.msra.mxu0 %v3349
        %3391 = vmatprep.subr.mxu0 %v3354
        %3392 = vmatpush1.msra.mxu0 %v3353
        %3393 = vmatprep.subr.mxu0 %v3358
        %3394 = vmatpush1.msra.mxu0 %v3357
        %3395 = vmatprep.subr.mxu0 %v3362
        %3396 = vmatpush1.msra.mxu0 %v3361
        %3397 = vmatprep.subr.mxu0 0.0
        %3398 = vmatpush1.msra.mxu0 0.0
        %3399 = vmatprep.subr.mxu0 0.0
        %3400 = vmatpush1.msra.mxu0 0.0
        %3401 = vmatprep.subr.mxu0 0.0
        %3402 = vmatpush1.msra.mxu0 0.0
        %3403 = vmatprep.subr.mxu0 0.0
        %3404 = vmatpush1.msra.mxu0 0.0
        %3405 = vmatprep.subr.mxu0 0.0
        %3406 = vmatpush1.msra.mxu0 0.0
        %3407 = vmatprep.subr.mxu0 0.0
        %3408 = vmatpush1.msra.mxu0 0.0
        %3409 = vmatprep.subr.mxu0 0.0
        %3410 = vmatpush1.msra.mxu0 0.0
        %3411 = vmatprep.subr.mxu0 0.0
        %3412 = vmatpush1.msra.mxu0 0.0
        %3413 = vmatprep.subr.mxu0 0.0
        %3414 = vmatpush1.msra.mxu0 0.0
        %3415 = vmatprep.subr.mxu0 0.0
        %3416 = vmatpush1.msra.mxu0 0.0
        %3417 = vmatprep.subr.mxu0 0.0
        %3418 = vmatpush1.msra.mxu0 0.0
        %3419 = vmatprep.subr.mxu0 0.0
        %3420 = vmatpush1.msra.mxu0 0.0
        %3421 = vmatprep.subr.mxu0 0.0
        %3422 = vmatpush1.msra.mxu0 0.0
        %3423 = vmatprep.subr.mxu0 0.0
        %3424 = vmatpush1.msra.mxu0 0.0
        %3425 = vmatprep.subr.mxu0 0.0
        %3426 = vmatpush1.msra.mxu0 0.0
        %3427 = vmatprep.subr.mxu0 0.0
        %3428 = vmatpush1.msra.mxu0 0.0
        %3429 = vmatprep.mubr.f32.mxu0 0.0
        %3430 = vmatmul.mubr.f32.gmra.mrb[0].mxu0 %v3300
        %v3431 = vpop.f32.mrb[0].mxu0
        %v3432 = vadd.f32 0.0, %v3431
        %v3433 = vpop.f32.mrb[0].mxu0
        %v3434 = vadd.f32 0.0, %v3433
        %3435 = vdwg.mxu0
        %3436 = vmatprep.subr.mxu0 %v3304
        %3437 = vmatpush1.msra.mxu0 %v3303
        %3438 = vmatprep.subr.mxu0 %v3308
        %3439 = vmatpush1.msra.mxu0 %v3307
        %3440 = vmatprep.subr.mxu0 %v3312
        %3441 = vmatpush1.msra.mxu0 %v3311
        %3442 = vmatprep.subr.mxu0 %v3316
        %3443 = vmatpush1.msra.mxu0 %v3315
        %3444 = vmatprep.subr.mxu0 %v3320
        %3445 = vmatpush1.msra.mxu0 %v3319
        %3446 = vmatprep.subr.mxu0 %v3324
        %3447 = vmatpush1.msra.mxu0 %v3323
        %3448 = vmatprep.subr.mxu0 %v3328
        %3449 = vmatpush1.msra.mxu0 %v3327
        %3450 = vmatprep.subr.mxu0 %v3332
        %3451 = vmatpush1.msra.mxu0 %v3331
        %3452 = vmatprep.subr.mxu0 %v3336
        %3453 = vmatpush1.msra.mxu0 %v3335
        %3454 = vmatprep.subr.mxu0 %v3340
        %3455 = vmatpush1.msra.mxu0 %v3339
        %3456 = vmatprep.subr.mxu0 %v3344
        %3457 = vmatpush1.msra.mxu0 %v3343
        %3458 = vmatprep.subr.mxu0 %v3348
        %3459 = vmatpush1.msra.mxu0 %v3347
        %3460 = vmatprep.subr.mxu0 %v3352
        %3461 = vmatpush1.msra.mxu0 %v3351
        %3462 = vmatprep.subr.mxu0 %v3356
        %3463 = vmatpush1.msra.mxu0 %v3355
        %3464 = vmatprep.subr.mxu0 %v3360
        %3465 = vmatpush1.msra.mxu0 %v3359
        %3466 = vmatprep.subr.mxu0 %v3364
        %3467 = vmatpush1.msra.mxu0 %v3363
        %3468 = vmatprep.subr.mxu0 0.0
        %3469 = vmatpush1.msra.mxu0 0.0
        %3470 = vmatprep.subr.mxu0 0.0
        %3471 = vmatpush1.msra.mxu0 0.0
        %3472 = vmatprep.subr.mxu0 0.0
        %3473 = vmatpush1.msra.mxu0 0.0
        %3474 = vmatprep.subr.mxu0 0.0
        %3475 = vmatpush1.msra.mxu0 0.0
        %3476 = vmatprep.subr.mxu0 0.0
        %3477 = vmatpush1.msra.mxu0 0.0
        %3478 = vmatprep.subr.mxu0 0.0
        %3479 = vmatpush1.msra.mxu0 0.0
        %3480 = vmatprep.subr.mxu0 0.0
        %3481 = vmatpush1.msra.mxu0 0.0
        %3482 = vmatprep.subr.mxu0 0.0
        %3483 = vmatpush1.msra.mxu0 0.0
        %3484 = vmatprep.subr.mxu0 0.0
        %3485 = vmatpush1.msra.mxu0 0.0
        %3486 = vmatprep.subr.mxu0 0.0
        %3487 = vmatpush1.msra.mxu0 0.0
        %3488 = vmatprep.subr.mxu0 0.0
        %3489 = vmatpush1.msra.mxu0 0.0
        %3490 = vmatprep.subr.mxu0 0.0
        %3491 = vmatpush1.msra.mxu0 0.0
        %3492 = vmatprep.subr.mxu0 0.0
        %3493 = vmatpush1.msra.mxu0 0.0
        %3494 = vmatprep.subr.mxu0 0.0
        %3495 = vmatpush1.msra.mxu0 0.0
        %3496 = vmatprep.subr.mxu0 0.0
        %3497 = vmatpush1.msra.mxu0 0.0
        %3498 = vmatprep.subr.mxu0 0.0
        %3499 = vmatpush1.msra.mxu0 0.0
        %3500 = vmatprep.mubr.f32.mxu0 0.0
        %3501 = vmatmul.mubr.f32.gmra.mrb[0].mxu0 %v3300
        %v3502 = vpop.f32.mrb[0].mxu0
        %v3503 = vadd.f32 0.0, %v3502
        %v3504 = vpop.f32.mrb[0].mxu0
        %v3505 = vadd.f32 0.0, %v3504
        %3506 = vdwg.mxu0
        %v3507 = vadd.f32 %v3296, %v3432
        %v3508 = vadd.f32 %v3297, %v3434
        %v3509 = vadd.f32 %v3298, %v3503
        %v3510 = vadd.f32 %v3299, %v3505
        %v3511 = vld [vmem:[#allocation4] sm:$0xff]
        %v3512 = vmul.f32 %v3507, 0.5
        %v3513 = vtanh.pop %v3512
        %v3514 = vmul.f32 %v3513, 0.5
        %v3515 = vadd.f32 %v3514, 0.5
        %v3516 = vmul.f32 %v3508, 0.5
        %v3517 = vtanh.pop %v3516
        %v3518 = vmul.f32 %v3517, 0.5
        %v3519 = vadd.f32 %v3518, 0.5
        %v3520 = vtanh.pop %v3509
        %v3521 = vmul.f32 %v3510, 0.5
        %v3522 = vtanh.pop %v3521
        %v3523 = vmul.f32 %v3522, 0.5
        %v3524 = vadd.f32 %v3523, 0.5
        %v3525 = vmul.f32 %v3519, %v3511
        %v3526 = vmul.f32 %v3515, %v3520
        %v3527 = vadd.f32 %v3525, %v3526
        %v3528 = vtanh.pop %v3527
        %v3529 = vmul.f32 %v3524, %v3528
        %3530 = vst [vmem:[#allocation3] sm:$0xff] %v3529
        %3531 = vst [vmem:[#allocation4] sm:$0xff] %v3527
        %v3532 = vld [vmem:[%s936] sm:$0xff]
        %v3533 = vld [vmem:[#allocation9] sm:$0xff]
        %v3534 = vld [vmem:[#allocation9 + $0x8] sm:$0xff]
        %v3535 = vld [vmem:[#allocation9 + $0x10] sm:$0xff]
        %v3536 = vld [vmem:[#allocation9 + $0x18] sm:$0xff]
        %v3537 = vld [vmem:[#allocation9 + $0x20] sm:$0xff]
        %v3538 = vld [vmem:[#allocation9 + $0x28] sm:$0xff]
        %v3539 = vld [vmem:[#allocation9 + $0x30] sm:$0xff]
        %v3540 = vld [vmem:[#allocation9 + $0x38] sm:$0xff]
        %v3541 = vld [vmem:[#allocation9 + $0x40] sm:$0xff]
        %v3542 = vld [vmem:[#allocation9 + $0x48] sm:$0xff]
        %v3543 = vld [vmem:[#allocation9 + $0x50] sm:$0xff]
        %v3544 = vld [vmem:[#allocation9 + $0x58] sm:$0xff]
        %v3545 = vld [vmem:[#allocation9 + $0x60] sm:$0xff]
        %v3546 = vld [vmem:[#allocation9 + $0x68] sm:$0xff]
        %v3547 = vld [vmem:[#allocation9 + $0x70] sm:$0xff]
        %v3548 = vld [vmem:[#allocation9 + $0x78] sm:$0xff]
        %v3549 = vld [vmem:[#allocation9 + $0x80] sm:$0xff]
        %v3550 = vld [vmem:[#allocation9 + $0x88] sm:$0xff]
        %v3551 = vld [vmem:[#allocation9 + $0x90] sm:$0xff]
        %v3552 = vld [vmem:[#allocation9 + $0x98] sm:$0xff]
        %v3553 = vld [vmem:[#allocation9 + $0xa0] sm:$0xff]
        %v3554 = vld [vmem:[#allocation9 + $0xa8] sm:$0xff]
        %v3555 = vld [vmem:[#allocation9 + $0xb0] sm:$0xff]
        %v3556 = vld [vmem:[#allocation9 + $0xb8] sm:$0xff]
        %v3557 = vld [vmem:[#allocation9 + $0xc0] sm:$0xff]
        %v3558 = vld [vmem:[#allocation9 + $0xc8] sm:$0xff]
        %v3559 = vld [vmem:[#allocation9 + $0xd0] sm:$0xff]
        %v3560 = vld [vmem:[#allocation9 + $0xd8] sm:$0xff]
        %v3561 = vld [vmem:[#allocation9 + $0xe0] sm:$0xff]
        %v3562 = vld [vmem:[#allocation9 + $0xe8] sm:$0xff]
        %v3563 = vld [vmem:[#allocation9 + $0xf0] sm:$0xff]
        %v3564 = vld [vmem:[#allocation9 + $0xf8] sm:$0xff]
        %v3565 = vld [vmem:[#allocation9 + $0x100] sm:$0xff]
        %v3566 = vld [vmem:[#allocation9 + $0x108] sm:$0xff]
        %v3567 = vld [vmem:[#allocation9 + $0x110] sm:$0xff]
        %v3568 = vld [vmem:[#allocation9 + $0x118] sm:$0xff]
        %v3569 = vld [vmem:[#allocation9 + $0x120] sm:$0xff]
        %v3570 = vld [vmem:[#allocation9 + $0x128] sm:$0xff]
        %v3571 = vld [vmem:[#allocation9 + $0x130] sm:$0xff]
        %v3572 = vld [vmem:[#allocation9 + $0x138] sm:$0xff]
        %v3573 = vld [vmem:[#allocation9 + $0x140] sm:$0xff]
        %v3574 = vld [vmem:[#allocation9 + $0x148] sm:$0xff]
        %v3575 = vld [vmem:[#allocation9 + $0x150] sm:$0xff]
        %v3576 = vld [vmem:[#allocation9 + $0x158] sm:$0xff]
        %v3577 = vld [vmem:[#allocation9 + $0x160] sm:$0xff]
        %v3578 = vld [vmem:[#allocation9 + $0x168] sm:$0xff]
        %v3579 = vld [vmem:[#allocation9 + $0x170] sm:$0xff]
        %v3580 = vld [vmem:[#allocation9 + $0x178] sm:$0xff]
        %v3581 = vld [vmem:[#allocation9 + $0x180] sm:$0xff]
        %v3582 = vld [vmem:[#allocation9 + $0x188] sm:$0xff]
        %v3583 = vld [vmem:[#allocation9 + $0x190] sm:$0xff]
        %v3584 = vld [vmem:[#allocation9 + $0x198] sm:$0xff]
        %v3585 = vld [vmem:[#allocation9 + $0x1a0] sm:$0xff]
        %v3586 = vld [vmem:[#allocation9 + $0x1a8] sm:$0xff]
        %v3587 = vld [vmem:[#allocation9 + $0x1b0] sm:$0xff]
        %v3588 = vld [vmem:[#allocation9 + $0x1b8] sm:$0xff]
        %v3589 = vld [vmem:[#allocation9 + $0x1c0] sm:$0xff]
        %v3590 = vld [vmem:[#allocation9 + $0x1c8] sm:$0xff]
        %v3591 = vld [vmem:[#allocation9 + $0x1d0] sm:$0xff]
        %v3592 = vld [vmem:[#allocation9 + $0x1d8] sm:$0xff]
        %v3593 = vld [vmem:[#allocation9 + $0x1e0] sm:$0xff]
        %v3594 = vld [vmem:[#allocation9 + $0x1e8] sm:$0xff]
        %v3595 = vld [vmem:[#allocation9 + $0x1f0] sm:$0xff]
        %v3596 = vld [vmem:[#allocation9 + $0x1f8] sm:$0xff]
        %v3597 = vld [vmem:[#allocation9 + $0x200] sm:$0xff]
        %v3598 = vld [vmem:[#allocation9 + $0x208] sm:$0xff]
        %v3599 = vld [vmem:[#allocation9 + $0x210] sm:$0xff]
        %v3600 = vld [vmem:[#allocation9 + $0x218] sm:$0xff]
        %v3601 = vld [vmem:[#allocation9 + $0x220] sm:$0xff]
        %v3602 = vld [vmem:[#allocation9 + $0x228] sm:$0xff]
        %v3603 = vld [vmem:[#allocation9 + $0x230] sm:$0xff]
        %v3604 = vld [vmem:[#allocation9 + $0x238] sm:$0xff]
        %v3605 = vld [vmem:[#allocation9 + $0x240] sm:$0xff]
        %v3606 = vld [vmem:[#allocation9 + $0x248] sm:$0xff]
        %v3607 = vld [vmem:[#allocation9 + $0x250] sm:$0xff]
        %v3608 = vld [vmem:[#allocation9 + $0x258] sm:$0xff]
        %v3609 = vld [vmem:[#allocation9 + $0x260] sm:$0xff]
        %v3610 = vld [vmem:[#allocation9 + $0x268] sm:$0xff]
        %v3611 = vld [vmem:[#allocation9 + $0x270] sm:$0xff]
        %v3612 = vld [vmem:[#allocation9 + $0x278] sm:$0xff]
        %v3613 = vld [vmem:[#allocation9 + $0x280] sm:$0xff]
        %v3614 = vld [vmem:[#allocation9 + $0x288] sm:$0xff]
        %v3615 = vld [vmem:[#allocation9 + $0x290] sm:$0xff]
        %v3616 = vld [vmem:[#allocation9 + $0x298] sm:$0xff]
        %v3617 = vld [vmem:[#allocation9 + $0x2a0] sm:$0xff]
        %v3618 = vld [vmem:[#allocation9 + $0x2a8] sm:$0xff]
        %v3619 = vld [vmem:[#allocation9 + $0x2b0] sm:$0xff]
        %v3620 = vld [vmem:[#allocation9 + $0x2b8] sm:$0xff]
        %v3621 = vld [vmem:[#allocation9 + $0x2c0] sm:$0xff]
        %v3622 = vld [vmem:[#allocation9 + $0x2c8] sm:$0xff]
        %v3623 = vld [vmem:[#allocation9 + $0x2d0] sm:$0xff]
        %v3624 = vld [vmem:[#allocation9 + $0x2d8] sm:$0xff]
        %v3625 = vld [vmem:[#allocation9 + $0x2e0] sm:$0xff]
        %v3626 = vld [vmem:[#allocation9 + $0x2e8] sm:$0xff]
        %v3627 = vld [vmem:[#allocation9 + $0x2f0] sm:$0xff]
        %v3628 = vld [vmem:[#allocation9 + $0x2f8] sm:$0xff]
        %v3629 = vld [vmem:[#allocation9 + $0x300] sm:$0xff]
        %v3630 = vld [vmem:[#allocation9 + $0x308] sm:$0xff]
        %v3631 = vld [vmem:[#allocation9 + $0x310] sm:$0xff]
        %v3632 = vld [vmem:[#allocation9 + $0x318] sm:$0xff]
        %v3633 = vld [vmem:[#allocation9 + $0x320] sm:$0xff]
        %v3634 = vld [vmem:[#allocation9 + $0x328] sm:$0xff]
        %v3635 = vld [vmem:[#allocation9 + $0x330] sm:$0xff]
        %v3636 = vld [vmem:[#allocation9 + $0x338] sm:$0xff]
        %v3637 = vld [vmem:[#allocation9 + $0x340] sm:$0xff]
        %v3638 = vld [vmem:[#allocation9 + $0x348] sm:$0xff]
        %v3639 = vld [vmem:[#allocation9 + $0x350] sm:$0xff]
        %v3640 = vld [vmem:[#allocation9 + $0x358] sm:$0xff]
        %v3641 = vld [vmem:[#allocation9 + $0x360] sm:$0xff]
        %v3642 = vld [vmem:[#allocation9 + $0x368] sm:$0xff]
        %v3643 = vld [vmem:[#allocation9 + $0x370] sm:$0xff]
        %v3644 = vld [vmem:[#allocation9 + $0x378] sm:$0xff]
        %v3645 = vld [vmem:[#allocation9 + $0x380] sm:$0xff]
        %v3646 = vld [vmem:[#allocation9 + $0x388] sm:$0xff]
        %v3647 = vld [vmem:[#allocation9 + $0x390] sm:$0xff]
        %v3648 = vld [vmem:[#allocation9 + $0x398] sm:$0xff]
        %v3649 = vld [vmem:[#allocation9 + $0x3a0] sm:$0xff]
        %v3650 = vld [vmem:[#allocation9 + $0x3a8] sm:$0xff]
        %v3651 = vld [vmem:[#allocation9 + $0x3b0] sm:$0xff]
        %v3652 = vld [vmem:[#allocation9 + $0x3b8] sm:$0xff]
        %v3653 = vld [vmem:[#allocation9 + $0x3c0] sm:$0xff]
        %v3654 = vld [vmem:[#allocation9 + $0x3c8] sm:$0xff]
        %v3655 = vld [vmem:[#allocation9 + $0x3d0] sm:$0xff]
        %v3656 = vld [vmem:[#allocation9 + $0x3d8] sm:$0xff]
        %v3657 = vld [vmem:[#allocation9 + $0x3e0] sm:$0xff]
        %v3658 = vld [vmem:[#allocation9 + $0x3e8] sm:$0xff]
        %v3659 = vld [vmem:[#allocation9 + $0x3f0] sm:$0xff]
        %v3660 = vld [vmem:[#allocation9 + $0x3f8] sm:$0xff]
        %v3661 = vld [vmem:[%s5] sm:$0xf]
        %v3663 = vlaneseq
        %v3664 = vshrl.u32 %v3663, 7
        %v3665 = vsub.s32 0, %v3664
        %v3666 = vrot.slane %v3661, %v3665
        %v3667 = vlaneseq
        %v3668 = vshrl.u32 %v3667, 7
        %v3669 = vsub.s32 1, %v3668
        %v3670 = vrot.slane %v3661, %v3669
        %v3671 = vlaneseq
        %v3672 = vshrl.u32 %v3671, 7
        %v3673 = vsub.s32 2, %v3672
        %v3674 = vrot.slane %v3661, %v3673
        %v3675 = vlaneseq
        %v3676 = vshrl.u32 %v3675, 7
        %v3677 = vsub.s32 3, %v3676
        %v3678 = vrot.slane %v3661, %v3677
        %3683 = vmatprep.subr.mxu0 %v3534
        %3684 = vmatpush1.msra.mxu0 %v3533
        %3685 = vmatprep.subr.mxu0 %v3538
        %3686 = vmatpush1.msra.mxu0 %v3537
        %3687 = vmatprep.subr.mxu0 %v3542
        %3688 = vmatpush1.msra.mxu0 %v3541
        %3689 = vmatprep.subr.mxu0 %v3546
        %3690 = vmatpush1.msra.mxu0 %v3545
        %3691 = vmatprep.subr.mxu0 %v3550
        %3692 = vmatpush1.msra.mxu0 %v3549
        %3693 = vmatprep.subr.mxu0 %v3554
        %3694 = vmatpush1.msra.mxu0 %v3553
        %3695 = vmatprep.subr.mxu0 %v3558
        %3696 = vmatpush1.msra.mxu0 %v3557
        %3697 = vmatprep.subr.mxu0 %v3562
        %3698 = vmatpush1.msra.mxu0 %v3561
        %3699 = vmatprep.subr.mxu0 %v3566
        %3700 = vmatpush1.msra.mxu0 %v3565
        %3701 = vmatprep.subr.mxu0 %v3570
        %3702 = vmatpush1.msra.mxu0 %v3569
        %3703 = vmatprep.subr.mxu0 %v3574
        %3704 = vmatpush1.msra.mxu0 %v3573
        %3705 = vmatprep.subr.mxu0 %v3578
        %3706 = vmatpush1.msra.mxu0 %v3577
        %3707 = vmatprep.subr.mxu0 %v3582
        %3708 = vmatpush1.msra.mxu0 %v3581
        %3709 = vmatprep.subr.mxu0 %v3586
        %3710 = vmatpush1.msra.mxu0 %v3585
        %3711 = vmatprep.subr.mxu0 %v3590
        %3712 = vmatpush1.msra.mxu0 %v3589
        %3713 = vmatprep.subr.mxu0 %v3594
        %3714 = vmatpush1.msra.mxu0 %v3593
        %3715 = vmatprep.subr.mxu0 %v3598
        %3716 = vmatpush1.msra.mxu0 %v3597
        %3717 = vmatprep.subr.mxu0 %v3602
        %3718 = vmatpush1.msra.mxu0 %v3601
        %3719 = vmatprep.subr.mxu0 %v3606
        %3720 = vmatpush1.msra.mxu0 %v3605
        %3721 = vmatprep.subr.mxu0 %v3610
        %3722 = vmatpush1.msra.mxu0 %v3609
        %3723 = vmatprep.subr.mxu0 %v3614
        %3724 = vmatpush1.msra.mxu0 %v3613
        %3725 = vmatprep.subr.mxu0 %v3618
        %3726 = vmatpush1.msra.mxu0 %v3617
        %3727 = vmatprep.subr.mxu0 %v3622
        %3728 = vmatpush1.msra.mxu0 %v3621
        %3729 = vmatprep.subr.mxu0 %v3626
        %3730 = vmatpush1.msra.mxu0 %v3625
        %3731 = vmatprep.subr.mxu0 %v3630
        %3732 = vmatpush1.msra.mxu0 %v3629
        %3733 = vmatprep.subr.mxu0 %v3634
        %3734 = vmatpush1.msra.mxu0 %v3633
        %3735 = vmatprep.subr.mxu0 %v3638
        %3736 = vmatpush1.msra.mxu0 %v3637
        %3737 = vmatprep.subr.mxu0 %v3642
        %3738 = vmatpush1.msra.mxu0 %v3641
        %3739 = vmatprep.subr.mxu0 %v3646
        %3740 = vmatpush1.msra.mxu0 %v3645
        %3741 = vmatprep.subr.mxu0 %v3650
        %3742 = vmatpush1.msra.mxu0 %v3649
        %3743 = vmatprep.subr.mxu0 %v3654
        %3744 = vmatpush1.msra.mxu0 %v3653
        %3745 = vmatprep.subr.mxu0 %v3658
        %3746 = vmatpush1.msra.mxu0 %v3657
        %3747 = vmatprep.mubr.f32.mxu0 %v3532
        %3748 = vmatmul.mubr.f32.gmra.mrb[0].mxu0 %v3529
        %v3749 = vpop.f32.mrb[0].mxu0
        %v3750 = vadd.f32 %v3666, %v3749
        %v3751 = vpop.f32.mrb[0].mxu0
        %v3752 = vadd.f32 %v3670, %v3751
        %3753 = vdwg.mxu0
        %3754 = vmatprep.subr.mxu0 %v3536
        %3755 = vmatpush1.msra.mxu0 %v3535
        %3756 = vmatprep.subr.mxu0 %v3540
        %3757 = vmatpush1.msra.mxu0 %v3539
        %3758 = vmatprep.subr.mxu0 %v3544
        %3759 = vmatpush1.msra.mxu0 %v3543
        %3760 = vmatprep.subr.mxu0 %v3548
        %3761 = vmatpush1.msra.mxu0 %v3547
        %3762 = vmatprep.subr.mxu0 %v3552
        %3763 = vmatpush1.msra.mxu0 %v3551
        %3764 = vmatprep.subr.mxu0 %v3556
        %3765 = vmatpush1.msra.mxu0 %v3555
        %3766 = vmatprep.subr.mxu0 %v3560
        %3767 = vmatpush1.msra.mxu0 %v3559
        %3768 = vmatprep.subr.mxu0 %v3564
        %3769 = vmatpush1.msra.mxu0 %v3563
        %3770 = vmatprep.subr.mxu0 %v3568
        %3771 = vmatpush1.msra.mxu0 %v3567
        %3772 = vmatprep.subr.mxu0 %v3572
        %3773 = vmatpush1.msra.mxu0 %v3571
        %3774 = vmatprep.subr.mxu0 %v3576
        %3775 = vmatpush1.msra.mxu0 %v3575
        %3776 = vmatprep.subr.mxu0 %v3580
        %3777 = vmatpush1.msra.mxu0 %v3579
        %3778 = vmatprep.subr.mxu0 %v3584
        %3779 = vmatpush1.msra.mxu0 %v3583
        %3780 = vmatprep.subr.mxu0 %v3588
        %3781 = vmatpush1.msra.mxu0 %v3587
        %3782 = vmatprep.subr.mxu0 %v3592
        %3783 = vmatpush1.msra.mxu0 %v3591
        %3784 = vmatprep.subr.mxu0 %v3596
        %3785 = vmatpush1.msra.mxu0 %v3595
        %3786 = vmatprep.subr.mxu0 %v3600
        %3787 = vmatpush1.msra.mxu0 %v3599
        %3788 = vmatprep.subr.mxu0 %v3604
        %3789 = vmatpush1.msra.mxu0 %v3603
        %3790 = vmatprep.subr.mxu0 %v3608
        %3791 = vmatpush1.msra.mxu0 %v3607
        %3792 = vmatprep.subr.mxu0 %v3612
        %3793 = vmatpush1.msra.mxu0 %v3611
        %3794 = vmatprep.subr.mxu0 %v3616
        %3795 = vmatpush1.msra.mxu0 %v3615
        %3796 = vmatprep.subr.mxu0 %v3620
        %3797 = vmatpush1.msra.mxu0 %v3619
        %3798 = vmatprep.subr.mxu0 %v3624
        %3799 = vmatpush1.msra.mxu0 %v3623
        %3800 = vmatprep.subr.mxu0 %v3628
        %3801 = vmatpush1.msra.mxu0 %v3627
        %3802 = vmatprep.subr.mxu0 %v3632
        %3803 = vmatpush1.msra.mxu0 %v3631
        %3804 = vmatprep.subr.mxu0 %v3636
        %3805 = vmatpush1.msra.mxu0 %v3635
        %3806 = vmatprep.subr.mxu0 %v3640
        %3807 = vmatpush1.msra.mxu0 %v3639
        %3808 = vmatprep.subr.mxu0 %v3644
        %3809 = vmatpush1.msra.mxu0 %v3643
        %3810 = vmatprep.subr.mxu0 %v3648
        %3811 = vmatpush1.msra.mxu0 %v3647
        %3812 = vmatprep.subr.mxu0 %v3652
        %3813 = vmatpush1.msra.mxu0 %v3651
        %3814 = vmatprep.subr.mxu0 %v3656
        %3815 = vmatpush1.msra.mxu0 %v3655
        %3816 = vmatprep.subr.mxu0 %v3660
        %3817 = vmatpush1.msra.mxu0 %v3659
        %3818 = vmatprep.mubr.f32.mxu0 %v3532
        %3819 = vmatmul.mubr.f32.gmra.mrb[0].mxu0 %v3529
        %v3820 = vpop.f32.mrb[0].mxu0
        %v3821 = vadd.f32 %v3674, %v3820
        %v3822 = vpop.f32.mrb[0].mxu0
        %v3823 = vadd.f32 %v3678, %v3822
        %3824 = vdwg.mxu0
        %v3825 = vld [vmem:[%s1230] sm:$0xff]
        %v3826 = vmul.f32 %v3750, 0.5
        %v3827 = vtanh.pop %v3826
        %v3828 = vmul.f32 %v3827, 0.5
        %v3829 = vadd.f32 %v3828, 0.5
        %v3830 = vmul.f32 %v3752, 0.5
        %v3831 = vtanh.pop %v3830
        %v3832 = vmul.f32 %v3831, 0.5
        %v3833 = vadd.f32 %v3832, 0.5
        %v3834 = vtanh.pop %v3821
        %v3835 = vmul.f32 %v3823, 0.5
        %v3836 = vtanh.pop %v3835
        %v3837 = vmul.f32 %v3836, 0.5
        %v3838 = vadd.f32 %v3837, 0.5
        %v3839 = vmul.f32 %v3833, %v3825
        %v3840 = vmul.f32 %v3829, %v3834
        %v3841 = vadd.f32 %v3839, %v3840
        %v3842 = vtanh.pop %v3841
        %v3843 = vmul.f32 %v3838, %v3842
        %3844 = vst [vmem:[%s936] sm:$0xff] %v3843
        %3845 = vst [vmem:[%s1230] sm:$0xff] %v3841
        %v3846 = vld [vmem:[%s1252] sm:$0xff]
        %v3847 = vld [vmem:[#allocation10] sm:$0xff]
        %v3848 = vld [vmem:[#allocation10 + $0x8] sm:$0xff]
        %v3849 = vld [vmem:[#allocation10 + $0x10] sm:$0xff]
        %v3850 = vld [vmem:[#allocation10 + $0x18] sm:$0xff]
        %v3851 = vld [vmem:[#allocation10 + $0x20] sm:$0xff]
        %v3852 = vld [vmem:[#allocation10 + $0x28] sm:$0xff]
        %v3853 = vld [vmem:[#allocation10 + $0x30] sm:$0xff]
        %v3854 = vld [vmem:[#allocation10 + $0x38] sm:$0xff]
        %v3855 = vld [vmem:[#allocation10 + $0x40] sm:$0xff]
        %v3856 = vld [vmem:[#allocation10 + $0x48] sm:$0xff]
        %v3857 = vld [vmem:[#allocation10 + $0x50] sm:$0xff]
        %v3858 = vld [vmem:[#allocation10 + $0x58] sm:$0xff]
        %v3859 = vld [vmem:[#allocation10 + $0x60] sm:$0xff]
        %v3860 = vld [vmem:[#allocation10 + $0x68] sm:$0xff]
        %v3861 = vld [vmem:[#allocation10 + $0x70] sm:$0xff]
        %v3862 = vld [vmem:[#allocation10 + $0x78] sm:$0xff]
        %v3863 = vld [vmem:[#allocation10 + $0x80] sm:$0xff]
        %v3864 = vld [vmem:[#allocation10 + $0x88] sm:$0xff]
        %v3865 = vld [vmem:[#allocation10 + $0x90] sm:$0xff]
        %v3866 = vld [vmem:[#allocation10 + $0x98] sm:$0xff]
        %v3867 = vld [vmem:[#allocation10 + $0xa0] sm:$0xff]
        %v3868 = vld [vmem:[#allocation10 + $0xa8] sm:$0xff]
        %v3869 = vld [vmem:[#allocation10 + $0xb0] sm:$0xff]
        %v3870 = vld [vmem:[#allocation10 + $0xb8] sm:$0xff]
        %v3871 = vld [vmem:[#allocation10 + $0xc0] sm:$0xff]
        %v3872 = vld [vmem:[#allocation10 + $0xc8] sm:$0xff]
        %v3873 = vld [vmem:[#allocation10 + $0xd0] sm:$0xff]
        %v3874 = vld [vmem:[#allocation10 + $0xd8] sm:$0xff]
        %v3875 = vld [vmem:[#allocation10 + $0xe0] sm:$0xff]
        %v3876 = vld [vmem:[#allocation10 + $0xe8] sm:$0xff]
        %v3877 = vld [vmem:[#allocation10 + $0xf0] sm:$0xff]
        %v3878 = vld [vmem:[#allocation10 + $0xf8] sm:$0xff]
        %v3879 = vld [vmem:[#allocation10 + $0x100] sm:$0xff]
        %v3880 = vld [vmem:[#allocation10 + $0x108] sm:$0xff]
        %v3881 = vld [vmem:[#allocation10 + $0x110] sm:$0xff]
        %v3882 = vld [vmem:[#allocation10 + $0x118] sm:$0xff]
        %v3883 = vld [vmem:[#allocation10 + $0x120] sm:$0xff]
        %v3884 = vld [vmem:[#allocation10 + $0x128] sm:$0xff]
        %v3885 = vld [vmem:[#allocation10 + $0x130] sm:$0xff]
        %v3886 = vld [vmem:[#allocation10 + $0x138] sm:$0xff]
        %v3887 = vld [vmem:[#allocation10 + $0x140] sm:$0xff]
        %v3888 = vld [vmem:[#allocation10 + $0x148] sm:$0xff]
        %v3889 = vld [vmem:[#allocation10 + $0x150] sm:$0xff]
        %v3890 = vld [vmem:[#allocation10 + $0x158] sm:$0xff]
        %v3891 = vld [vmem:[#allocation10 + $0x160] sm:$0xff]
        %v3892 = vld [vmem:[#allocation10 + $0x168] sm:$0xff]
        %v3893 = vld [vmem:[#allocation10 + $0x170] sm:$0xff]
        %v3894 = vld [vmem:[#allocation10 + $0x178] sm:$0xff]
        %v3895 = vld [vmem:[#allocation10 + $0x180] sm:$0xff]
        %v3896 = vld [vmem:[#allocation10 + $0x188] sm:$0xff]
        %v3897 = vld [vmem:[#allocation10 + $0x190] sm:$0xff]
        %v3898 = vld [vmem:[#allocation10 + $0x198] sm:$0xff]
        %v3899 = vld [vmem:[#allocation10 + $0x1a0] sm:$0xff]
        %v3900 = vld [vmem:[#allocation10 + $0x1a8] sm:$0xff]
        %v3901 = vld [vmem:[#allocation10 + $0x1b0] sm:$0xff]
        %v3902 = vld [vmem:[#allocation10 + $0x1b8] sm:$0xff]
        %v3903 = vld [vmem:[#allocation10 + $0x1c0] sm:$0xff]
        %v3904 = vld [vmem:[#allocation10 + $0x1c8] sm:$0xff]
        %v3905 = vld [vmem:[#allocation10 + $0x1d0] sm:$0xff]
        %v3906 = vld [vmem:[#allocation10 + $0x1d8] sm:$0xff]
        %v3907 = vld [vmem:[#allocation10 + $0x1e0] sm:$0xff]
        %v3908 = vld [vmem:[#allocation10 + $0x1e8] sm:$0xff]
        %v3909 = vld [vmem:[#allocation10 + $0x1f0] sm:$0xff]
        %v3910 = vld [vmem:[#allocation10 + $0x1f8] sm:$0xff]
        %v3911 = vld [vmem:[#allocation10 + $0x200] sm:$0xff]
        %v3912 = vld [vmem:[#allocation10 + $0x208] sm:$0xff]
        %v3913 = vld [vmem:[#allocation10 + $0x210] sm:$0xff]
        %v3914 = vld [vmem:[#allocation10 + $0x218] sm:$0xff]
        %v3915 = vld [vmem:[#allocation10 + $0x220] sm:$0xff]
        %v3916 = vld [vmem:[#allocation10 + $0x228] sm:$0xff]
        %v3917 = vld [vmem:[#allocation10 + $0x230] sm:$0xff]
        %v3918 = vld [vmem:[#allocation10 + $0x238] sm:$0xff]
        %v3919 = vld [vmem:[#allocation10 + $0x240] sm:$0xff]
        %v3920 = vld [vmem:[#allocation10 + $0x248] sm:$0xff]
        %v3921 = vld [vmem:[#allocation10 + $0x250] sm:$0xff]
        %v3922 = vld [vmem:[#allocation10 + $0x258] sm:$0xff]
        %v3923 = vld [vmem:[#allocation10 + $0x260] sm:$0xff]
        %v3924 = vld [vmem:[#allocation10 + $0x268] sm:$0xff]
        %v3925 = vld [vmem:[#allocation10 + $0x270] sm:$0xff]
        %v3926 = vld [vmem:[#allocation10 + $0x278] sm:$0xff]
        %v3927 = vld [vmem:[#allocation10 + $0x280] sm:$0xff]
        %v3928 = vld [vmem:[#allocation10 + $0x288] sm:$0xff]
        %v3929 = vld [vmem:[#allocation10 + $0x290] sm:$0xff]
        %v3930 = vld [vmem:[#allocation10 + $0x298] sm:$0xff]
        %v3931 = vld [vmem:[#allocation10 + $0x2a0] sm:$0xff]
        %v3932 = vld [vmem:[#allocation10 + $0x2a8] sm:$0xff]
        %v3933 = vld [vmem:[#allocation10 + $0x2b0] sm:$0xff]
        %v3934 = vld [vmem:[#allocation10 + $0x2b8] sm:$0xff]
        %v3935 = vld [vmem:[#allocation10 + $0x2c0] sm:$0xff]
        %v3936 = vld [vmem:[#allocation10 + $0x2c8] sm:$0xff]
        %v3937 = vld [vmem:[#allocation10 + $0x2d0] sm:$0xff]
        %v3938 = vld [vmem:[#allocation10 + $0x2d8] sm:$0xff]
        %v3939 = vld [vmem:[#allocation10 + $0x2e0] sm:$0xff]
        %v3940 = vld [vmem:[#allocation10 + $0x2e8] sm:$0xff]
        %v3941 = vld [vmem:[#allocation10 + $0x2f0] sm:$0xff]
        %v3942 = vld [vmem:[#allocation10 + $0x2f8] sm:$0xff]
        %v3943 = vld [vmem:[#allocation10 + $0x300] sm:$0xff]
        %v3944 = vld [vmem:[#allocation10 + $0x308] sm:$0xff]
        %v3945 = vld [vmem:[#allocation10 + $0x310] sm:$0xff]
        %v3946 = vld [vmem:[#allocation10 + $0x318] sm:$0xff]
        %v3947 = vld [vmem:[#allocation10 + $0x320] sm:$0xff]
        %v3948 = vld [vmem:[#allocation10 + $0x328] sm:$0xff]
        %v3949 = vld [vmem:[#allocation10 + $0x330] sm:$0xff]
        %v3950 = vld [vmem:[#allocation10 + $0x338] sm:$0xff]
        %v3951 = vld [vmem:[#allocation10 + $0x340] sm:$0xff]
        %v3952 = vld [vmem:[#allocation10 + $0x348] sm:$0xff]
        %v3953 = vld [vmem:[#allocation10 + $0x350] sm:$0xff]
        %v3954 = vld [vmem:[#allocation10 + $0x358] sm:$0xff]
        %v3955 = vld [vmem:[#allocation10 + $0x360] sm:$0xff]
        %v3956 = vld [vmem:[#allocation10 + $0x368] sm:$0xff]
        %v3957 = vld [vmem:[#allocation10 + $0x370] sm:$0xff]
        %v3958 = vld [vmem:[#allocation10 + $0x378] sm:$0xff]
        %v3959 = vld [vmem:[#allocation10 + $0x380] sm:$0xff]
        %v3960 = vld [vmem:[#allocation10 + $0x388] sm:$0xff]
        %v3961 = vld [vmem:[#allocation10 + $0x390] sm:$0xff]
        %v3962 = vld [vmem:[#allocation10 + $0x398] sm:$0xff]
        %v3963 = vld [vmem:[#allocation10 + $0x3a0] sm:$0xff]
        %v3964 = vld [vmem:[#allocation10 + $0x3a8] sm:$0xff]
        %v3965 = vld [vmem:[#allocation10 + $0x3b0] sm:$0xff]
        %v3966 = vld [vmem:[#allocation10 + $0x3b8] sm:$0xff]
        %v3967 = vld [vmem:[#allocation10 + $0x3c0] sm:$0xff]
        %v3968 = vld [vmem:[#allocation10 + $0x3c8] sm:$0xff]
        %v3969 = vld [vmem:[#allocation10 + $0x3d0] sm:$0xff]
        %v3970 = vld [vmem:[#allocation10 + $0x3d8] sm:$0xff]
        %v3971 = vld [vmem:[#allocation10 + $0x3e0] sm:$0xff]
        %v3972 = vld [vmem:[#allocation10 + $0x3e8] sm:$0xff]
        %v3973 = vld [vmem:[#allocation10 + $0x3f0] sm:$0xff]
        %v3974 = vld [vmem:[#allocation10 + $0x3f8] sm:$0xff]
        %v3975 = vld [vmem:[%s7] sm:$0xf]
        %v3977 = vlaneseq
        %v3978 = vshrl.u32 %v3977, 7
        %v3979 = vsub.s32 0, %v3978
        %v3980 = vrot.slane %v3975, %v3979
        %v3981 = vlaneseq
        %v3982 = vshrl.u32 %v3981, 7
        %v3983 = vsub.s32 1, %v3982
        %v3984 = vrot.slane %v3975, %v3983
        %v3985 = vlaneseq
        %v3986 = vshrl.u32 %v3985, 7
        %v3987 = vsub.s32 2, %v3986
        %v3988 = vrot.slane %v3975, %v3987
        %v3989 = vlaneseq
        %v3990 = vshrl.u32 %v3989, 7
        %v3991 = vsub.s32 3, %v3990
        %v3992 = vrot.slane %v3975, %v3991
        %3997 = vmatprep.subr.mxu0 %v3848
        %3998 = vmatpush1.msra.mxu0 %v3847
        %3999 = vmatprep.subr.mxu0 %v3852
        %4000 = vmatpush1.msra.mxu0 %v3851
        %4001 = vmatprep.subr.mxu0 %v3856
        %4002 = vmatpush1.msra.mxu0 %v3855
        %4003 = vmatprep.subr.mxu0 %v3860
        %4004 = vmatpush1.msra.mxu0 %v3859
        %4005 = vmatprep.subr.mxu0 %v3864
        %4006 = vmatpush1.msra.mxu0 %v3863
        %4007 = vmatprep.subr.mxu0 %v3868
        %4008 = vmatpush1.msra.mxu0 %v3867
        %4009 = vmatprep.subr.mxu0 %v3872
        %4010 = vmatpush1.msra.mxu0 %v3871
        %4011 = vmatprep.subr.mxu0 %v3876
        %4012 = vmatpush1.msra.mxu0 %v3875
        %4013 = vmatprep.subr.mxu0 %v3880
        %4014 = vmatpush1.msra.mxu0 %v3879
        %4015 = vmatprep.subr.mxu0 %v3884
        %4016 = vmatpush1.msra.mxu0 %v3883
        %4017 = vmatprep.subr.mxu0 %v3888
        %4018 = vmatpush1.msra.mxu0 %v3887
        %4019 = vmatprep.subr.mxu0 %v3892
        %4020 = vmatpush1.msra.mxu0 %v3891
        %4021 = vmatprep.subr.mxu0 %v3896
        %4022 = vmatpush1.msra.mxu0 %v3895
        %4023 = vmatprep.subr.mxu0 %v3900
        %4024 = vmatpush1.msra.mxu0 %v3899
        %4025 = vmatprep.subr.mxu0 %v3904
        %4026 = vmatpush1.msra.mxu0 %v3903
        %4027 = vmatprep.subr.mxu0 %v3908
        %4028 = vmatpush1.msra.mxu0 %v3907
        %4029 = vmatprep.subr.mxu0 %v3912
        %4030 = vmatpush1.msra.mxu0 %v3911
        %4031 = vmatprep.subr.mxu0 %v3916
        %4032 = vmatpush1.msra.mxu0 %v3915
        %4033 = vmatprep.subr.mxu0 %v3920
        %4034 = vmatpush1.msra.mxu0 %v3919
        %4035 = vmatprep.subr.mxu0 %v3924
        %4036 = vmatpush1.msra.mxu0 %v3923
        %4037 = vmatprep.subr.mxu0 %v3928
        %4038 = vmatpush1.msra.mxu0 %v3927
        %4039 = vmatprep.subr.mxu0 %v3932
        %4040 = vmatpush1.msra.mxu0 %v3931
        %4041 = vmatprep.subr.mxu0 %v3936
        %4042 = vmatpush1.msra.mxu0 %v3935
        %4043 = vmatprep.subr.mxu0 %v3940
        %4044 = vmatpush1.msra.mxu0 %v3939
        %4045 = vmatprep.subr.mxu0 %v3944
        %4046 = vmatpush1.msra.mxu0 %v3943
        %4047 = vmatprep.subr.mxu0 %v3948
        %4048 = vmatpush1.msra.mxu0 %v3947
        %4049 = vmatprep.subr.mxu0 %v3952
        %4050 = vmatpush1.msra.mxu0 %v3951
        %4051 = vmatprep.subr.mxu0 %v3956
        %4052 = vmatpush1.msra.mxu0 %v3955
        %4053 = vmatprep.subr.mxu0 %v3960
        %4054 = vmatpush1.msra.mxu0 %v3959
        %4055 = vmatprep.subr.mxu0 %v3964
        %4056 = vmatpush1.msra.mxu0 %v3963
        %4057 = vmatprep.subr.mxu0 %v3968
        %4058 = vmatpush1.msra.mxu0 %v3967
        %4059 = vmatprep.subr.mxu0 %v3972
        %4060 = vmatpush1.msra.mxu0 %v3971
        %4061 = vmatprep.mubr.f32.mxu0 %v3846
        %4062 = vmatmul.mubr.f32.gmra.mrb[0].mxu0 %v3843
        %v4063 = vpop.f32.mrb[0].mxu0
        %v4064 = vadd.f32 %v3980, %v4063
        %v4065 = vpop.f32.mrb[0].mxu0
        %v4066 = vadd.f32 %v3984, %v4065
        %4067 = vdwg.mxu0
        %4068 = vmatprep.subr.mxu0 %v3850
        %4069 = vmatpush1.msra.mxu0 %v3849
        %4070 = vmatprep.subr.mxu0 %v3854
        %4071 = vmatpush1.msra.mxu0 %v3853
        %4072 = vmatprep.subr.mxu0 %v3858
        %4073 = vmatpush1.msra.mxu0 %v3857
        %4074 = vmatprep.subr.mxu0 %v3862
        %4075 = vmatpush1.msra.mxu0 %v3861
        %4076 = vmatprep.subr.mxu0 %v3866
        %4077 = vmatpush1.msra.mxu0 %v3865
        %4078 = vmatprep.subr.mxu0 %v3870
        %4079 = vmatpush1.msra.mxu0 %v3869
        %4080 = vmatprep.subr.mxu0 %v3874
        %4081 = vmatpush1.msra.mxu0 %v3873
        %4082 = vmatprep.subr.mxu0 %v3878
        %4083 = vmatpush1.msra.mxu0 %v3877
        %4084 = vmatprep.subr.mxu0 %v3882
        %4085 = vmatpush1.msra.mxu0 %v3881
        %4086 = vmatprep.subr.mxu0 %v3886
        %4087 = vmatpush1.msra.mxu0 %v3885
        %4088 = vmatprep.subr.mxu0 %v3890
        %4089 = vmatpush1.msra.mxu0 %v3889
        %4090 = vmatprep.subr.mxu0 %v3894
        %4091 = vmatpush1.msra.mxu0 %v3893
        %4092 = vmatprep.subr.mxu0 %v3898
        %4093 = vmatpush1.msra.mxu0 %v3897
        %4094 = vmatprep.subr.mxu0 %v3902
        %4095 = vmatpush1.msra.mxu0 %v3901
        %4096 = vmatprep.subr.mxu0 %v3906
        %4097 = vmatpush1.msra.mxu0 %v3905
        %4098 = vmatprep.subr.mxu0 %v3910
        %4099 = vmatpush1.msra.mxu0 %v3909
        %4100 = vmatprep.subr.mxu0 %v3914
        %4101 = vmatpush1.msra.mxu0 %v3913
        %4102 = vmatprep.subr.mxu0 %v3918
        %4103 = vmatpush1.msra.mxu0 %v3917
        %4104 = vmatprep.subr.mxu0 %v3922
        %4105 = vmatpush1.msra.mxu0 %v3921
        %4106 = vmatprep.subr.mxu0 %v3926
        %4107 = vmatpush1.msra.mxu0 %v3925
        %4108 = vmatprep.subr.mxu0 %v3930
        %4109 = vmatpush1.msra.mxu0 %v3929
        %4110 = vmatprep.subr.mxu0 %v3934
        %4111 = vmatpush1.msra.mxu0 %v3933
        %4112 = vmatprep.subr.mxu0 %v3938
        %4113 = vmatpush1.msra.mxu0 %v3937
        %4114 = vmatprep.subr.mxu0 %v3942
        %4115 = vmatpush1.msra.mxu0 %v3941
        %4116 = vmatprep.subr.mxu0 %v3946
        %4117 = vmatpush1.msra.mxu0 %v3945
        %4118 = vmatprep.subr.mxu0 %v3950
        %4119 = vmatpush1.msra.mxu0 %v3949
        %4120 = vmatprep.subr.mxu0 %v3954
        %4121 = vmatpush1.msra.mxu0 %v3953
        %4122 = vmatprep.subr.mxu0 %v3958
        %4123 = vmatpush1.msra.mxu0 %v3957
        %4124 = vmatprep.subr.mxu0 %v3962
        %4125 = vmatpush1.msra.mxu0 %v3961
        %4126 = vmatprep.subr.mxu0 %v3966
        %4127 = vmatpush1.msra.mxu0 %v3965
        %4128 = vmatprep.subr.mxu0 %v3970
        %4129 = vmatpush1.msra.mxu0 %v3969
        %4130 = vmatprep.subr.mxu0 %v3974
        %4131 = vmatpush1.msra.mxu0 %v3973
        %4132 = vmatprep.mubr.f32.mxu0 %v3846
        %4133 = vmatmul.mubr.f32.gmra.mrb[0].mxu0 %v3843
        %v4134 = vpop.f32.mrb[0].mxu0
        %v4135 = vadd.f32 %v3988, %v4134
        %v4136 = vpop.f32.mrb[0].mxu0
        %v4137 = vadd.f32 %v3992, %v4136
        %4138 = vdwg.mxu0
        %v4139 = vld [vmem:[%s1546] sm:$0xff]
        %v4140 = vmul.f32 %v4064, 0.5
        %v4141 = vtanh.pop %v4140
        %v4142 = vmul.f32 %v4141, 0.5
        %v4143 = vadd.f32 %v4142, 0.5
        %v4144 = vmul.f32 %v4066, 0.5
        %v4145 = vtanh.pop %v4144
        %v4146 = vmul.f32 %v4145, 0.5
        %v4147 = vadd.f32 %v4146, 0.5
        %v4148 = vtanh.pop %v4135
        %v4149 = vmul.f32 %v4137, 0.5
        %v4150 = vtanh.pop %v4149
        %v4151 = vmul.f32 %v4150, 0.5
        %v4152 = vadd.f32 %v4151, 0.5
        %v4153 = vmul.f32 %v4147, %v4139
        %v4154 = vmul.f32 %v4143, %v4148
        %v4155 = vadd.f32 %v4153, %v4154
        %v4156 = vtanh.pop %v4155
        %v4157 = vmul.f32 %v4152, %v4156
        %4158 = vst [vmem:[%s1252] sm:$0xff] %v4157
        %4159 = vst [vmem:[%s1546] sm:$0xff] %v4155
        %p4160 = scmp.eq.s32.totalorder %s24, 1
        // Predicated region
        $region81: #{forward.1} parent=59 // pred_check
          %p4161 = pneg %p4160
        $region82: #{forward.1} parent=59 // pred_check_branch
          %4163 = sbr.rel (%p4161) target = $region84
        $region83: #{forward.1} parent=59 // pred_region
          %v4164 = vld [vmem:[%s1252] sm:$0xff]
          %v4165 = vld [vmem:[%s8] sm:$0xff]
          %v4166 = vld [vmem:[%s8 + $0x8] sm:$0xff]
          %v4167 = vld [vmem:[%s8 + $0x10] sm:$0xff]
          %v4168 = vld [vmem:[%s8 + $0x18] sm:$0xff]
          %v4169 = vld [vmem:[%s8 + $0x20] sm:$0xff]
          %v4170 = vld [vmem:[%s8 + $0x28] sm:$0xff]
          %v4171 = vld [vmem:[%s8 + $0x30] sm:$0xff]
          %v4172 = vld [vmem:[%s8 + $0x38] sm:$0xff]
          %v4173 = vld [vmem:[%s8 + $0x40] sm:$0xff]
          %v4174 = vld [vmem:[%s8 + $0x48] sm:$0xff]
          %v4175 = vld [vmem:[%s8 + $0x50] sm:$0xff]
          %v4176 = vld [vmem:[%s8 + $0x58] sm:$0xff]
          %v4177 = vld [vmem:[%s8 + $0x60] sm:$0xff]
          %v4178 = vld [vmem:[%s8 + $0x68] sm:$0xff]
          %v4179 = vld [vmem:[%s8 + $0x70] sm:$0xff]
          %v4180 = vld [vmem:[%s8 + $0x78] sm:$0xff]
          %v4181 = vld [vmem:[%s9] sm:$0x1]
          %v4183 = vlaneseq
          %v4184 = vshrl.u32 %v4183, 7
          %v4185 = vsub.s32 0, %v4184
          %v4186 = vrot.slane %v4181, %v4185
          %4188 = vmatprep.subr.mxu0 0.0
          %4189 = vmatpush1.msra.mxu0 %v4165
          %4190 = vmatprep.subr.mxu0 0.0
          %4191 = vmatpush1.msra.mxu0 %v4166
          %4192 = vmatprep.subr.mxu0 0.0
          %4193 = vmatpush1.msra.mxu0 %v4167
          %4194 = vmatprep.subr.mxu0 0.0
          %4195 = vmatpush1.msra.mxu0 %v4168
          %4196 = vmatprep.subr.mxu0 0.0
          %4197 = vmatpush1.msra.mxu0 %v4169
          %4198 = vmatprep.subr.mxu0 0.0
          %4199 = vmatpush1.msra.mxu0 %v4170
          %4200 = vmatprep.subr.mxu0 0.0
          %4201 = vmatpush1.msra.mxu0 %v4171
          %4202 = vmatprep.subr.mxu0 0.0
          %4203 = vmatpush1.msra.mxu0 %v4172
          %4204 = vmatprep.subr.mxu0 0.0
          %4205 = vmatpush1.msra.mxu0 %v4173
          %4206 = vmatprep.subr.mxu0 0.0
          %4207 = vmatpush1.msra.mxu0 %v4174
          %4208 = vmatprep.subr.mxu0 0.0
          %4209 = vmatpush1.msra.mxu0 %v4175
          %4210 = vmatprep.subr.mxu0 0.0
          %4211 = vmatpush1.msra.mxu0 %v4176
          %4212 = vmatprep.subr.mxu0 0.0
          %4213 = vmatpush1.msra.mxu0 %v4177
          %4214 = vmatprep.subr.mxu0 0.0
          %4215 = vmatpush1.msra.mxu0 %v4178
          %4216 = vmatprep.subr.mxu0 0.0
          %4217 = vmatpush1.msra.mxu0 %v4179
          %4218 = vmatprep.subr.mxu0 0.0
          %4219 = vmatpush1.msra.mxu0 %v4180
          %4220 = vmatprep.subr.mxu0 0.0
          %4221 = vmatpush1.msra.mxu0 0.0
          %4222 = vmatprep.subr.mxu0 0.0
          %4223 = vmatpush1.msra.mxu0 0.0
          %4224 = vmatprep.subr.mxu0 0.0
          %4225 = vmatpush1.msra.mxu0 0.0
          %4226 = vmatprep.subr.mxu0 0.0
          %4227 = vmatpush1.msra.mxu0 0.0
          %4228 = vmatprep.subr.mxu0 0.0
          %4229 = vmatpush1.msra.mxu0 0.0
          %4230 = vmatprep.subr.mxu0 0.0
          %4231 = vmatpush1.msra.mxu0 0.0
          %4232 = vmatprep.subr.mxu0 0.0
          %4233 = vmatpush1.msra.mxu0 0.0
          %4234 = vmatprep.subr.mxu0 0.0
          %4235 = vmatpush1.msra.mxu0 0.0
          %4236 = vmatprep.subr.mxu0 0.0
          %4237 = vmatpush1.msra.mxu0 0.0
          %4238 = vmatprep.subr.mxu0 0.0
          %4239 = vmatpush1.msra.mxu0 0.0
          %4240 = vmatprep.subr.mxu0 0.0
          %4241 = vmatpush1.msra.mxu0 0.0
          %4242 = vmatprep.subr.mxu0 0.0
          %4243 = vmatpush1.msra.mxu0 0.0
          %4244 = vmatprep.subr.mxu0 0.0
          %4245 = vmatpush1.msra.mxu0 0.0
          %4246 = vmatprep.subr.mxu0 0.0
          %4247 = vmatpush1.msra.mxu0 0.0
          %4248 = vmatprep.subr.mxu0 0.0
          %4249 = vmatpush1.msra.mxu0 0.0
          %4250 = vmatprep.subr.mxu0 0.0
          %4251 = vmatpush1.msra.mxu0 0.0
          %4252 = vmatprep.mubr.f32.mxu0 0.0
          %4253 = vmatmul.mubr.f32.gmra.mrb[0].mxu0 %v4164
          %v4254 = vpop.f32.mrb[0].mxu0
          %v4255 = vadd.f32 %v4186, %v4254
          %v4256 = vpop.f32.mrb[0].mxu0
          %4257 = vdwg.mxu0
          %4258 = vst [vmem:[%s10] sm:$0xff] %v4255
        $region84: #{forward.1} parent=59 // pred_fallthru
          _
        // Predicated region
        $region85: #{forward.1} parent=59 // pred_check
          %p4259 = pneg %p252
        $region86: #{forward.1} parent=59 // pred_check_branch
          %4261 = sbr.rel (%p4259) target = $region88
        $region87: #{forward.1} parent=59 // pred_region
          _
        $region88: #{forward.1} parent=59 // pred_fallthru
          _
        // Predicated region
        $region89: #{forward.1} parent=59 // pred_check
          %p4262 = pneg %p252
        $region90: #{forward.1} parent=59 // pred_check_branch
          %4264 = sbr.rel (%p4262) target = $region92
        $region91: #{forward.1} parent=59 // pred_region
          _
        $region92: #{forward.1} parent=59 // pred_fallthru
          _
      $region60: #{forward.1} parent=5 // pred_fallthru
        _
      %p4265 = scmp.le.s32.totalorder 2, %s19
      // Predicated region
      $region93: #{forward.1} parent=5 // pred_check
        %p4266 = pneg %p4265
      $region94: #{forward.1} parent=5 // pred_check_branch
        %4268 = sbr.rel (%p4266) target = $region96
      $region95: #{forward.1} parent=5 // pred_region
        %s4269 = ssub.s32 %s19, 2
      $region96: #{forward.1} parent=5 // pred_fallthru
        _
    $region6: #{forward.1} parent=1 // loop_footer
      %s23 = sadd.s32 1, %s19
    $region7: #{forward.1} parent=1 // loop_footer_branch
      %18 = sbr.rel target = $region3
    $region8: #{forward.1} parent=1 // loop_exit
      _
    %4270 = vsyncpa [#allocation6], 1
    %s4271 = scalar_lea.sflag [#allocation6], 1
    %4272 = vsyncpa %s4271, 1
    %4273 = vsyncpa [#allocation8], 1
    %4274 = vsyncpa [#allocation11], 1

</llo_original>
